<compile_context>
chip_gen: v7x
topology: tpu7x:2x2x1
jax: 0.10.0
libtpu: 0.0.40
codegen_flags: <defaults>
</compile_context>

<pallas_src>
import math
import functools

import jax
import jax.numpy as jnp
from jax.experimental import pallas as pl
from jax.experimental.pallas import tpu as pltpu

_LN_EPS = 1e-5  # torch.nn.LayerNorm default


# ----------------------------------------------------------------------------
# helpers
# ----------------------------------------------------------------------------

def _pick_tile(dim, target, align):
    """Largest tile <= target that is a multiple of `align` and divides `dim`;
    falls back to the full dim (always a legal BlockSpec block)."""
    if dim <= target:
        return dim
    start = target - (target % align)
    for t in range(start, 0, -align):
        if dim % t == 0:
            return t
    return dim


def _cparams(dims):
    return pltpu.CompilerParams(
        dimension_semantics=dims,
        vmem_limit_bytes=32 * 1024 * 1024,
    )


# ----------------------------------------------------------------------------
# kernels
# ----------------------------------------------------------------------------

def _matmul_kernel(x_ref, w_ref, b_ref, o_ref, acc_ref, *, activation):
    """Generic tiled matmul: grid (Mt, Nt, Kt); acc over K; bias/act epilogue."""
    k = pl.program_id(2)

    @pl.when(k == 0)
    def _():
        acc_ref[...] = jnp.zeros_like(acc_ref)

    acc_ref[...] += jnp.dot(x_ref[...], w_ref[...],
                            preferred_element_type=jnp.float32)

    @pl.when(k == pl.num_programs(2) - 1)
    def _():
        y = acc_ref[...] + b_ref[...]
        if activation == "relu":
            y = jnp.maximum(y, 0.0)
        o_ref[...] = y.astype(o_ref.dtype)


def _proj_pe_kernel(x_ref, w_ref, b_ref, pe_ref, o_ref):
    """proj_linear_before + positional-encoding add (PE indexed by seq tile only)."""
    y = jnp.dot(x_ref[...], w_ref[...], preferred_element_type=jnp.float32)
    o_ref[...] = (y + b_ref[...] + pe_ref[...]).astype(o_ref.dtype)


def _qkv_kernel(x_ref, wq_ref, wk_ref, wv_ref, bq_ref, bk_ref, bv_ref,
                q_ref, k_ref, v_ref):
    """Fused Q/K/V projection: x is read once per row tile."""
    x = x_ref[...]
    q_ref[...] = (jnp.dot(x, wq_ref[...], preferred_element_type=jnp.float32)
                  + bq_ref[...]).astype(q_ref.dtype)
    k_ref[...] = (jnp.dot(x, wk_ref[...], preferred_element_type=jnp.float32)
                  + bk_ref[...]).astype(k_ref.dtype)
    v_ref[...] = (jnp.dot(x, wv_ref[...], preferred_element_type=jnp.float32)
                  + bv_ref[...]).astype(v_ref.dtype)


def _attention_kernel(q_ref, k_ref, v_ref, o_ref, *, nhead, scale):
    """One batch element per grid step; refs are [L, D]; heads looped in-kernel,
    output written as one lane-dense [L, D] block."""
    q = q_ref[...]
    k = k_ref[...]
    v = v_ref[...]
    D = q.shape[-1]
    dh = D // nhead
    outs = []
    for h in range(nhead):
        sl = slice(h * dh, (h + 1) * dh)
        qh, kh, vh = q[:, sl], k[:, sl], v[:, sl]
        s = jnp.dot(qh, kh.T, preferred_element_type=jnp.float32) * scale
        m = jnp.max(s, axis=-1, keepdims=True)
        e = jnp.exp(s - m)
        denom = jnp.sum(e, axis=-1, keepdims=True)
        pv = jnp.dot(e, vh, preferred_element_type=jnp.float32)
        # normalize after PV; reciprocal goes to the (idle) EUP slot
        outs.append(pv * pl.reciprocal(denom, approx=True))
    o_ref[...] = jnp.concatenate(outs, axis=-1).astype(o_ref.dtype)


def _outproj_ln_kernel(a_ref, res_ref, w_ref, b_ref, g_ref, beta_ref, o_ref):
    """attn_out @ Wo + bo + residual, then LayerNorm (fused epilogue)."""
    y = (jnp.dot(a_ref[...], w_ref[...], preferred_element_type=jnp.float32)
         + b_ref[...] + res_ref[...])
    mean = jnp.mean(y, axis=-1, keepdims=True)
    var = jnp.mean((y - mean) ** 2, axis=-1, keepdims=True)
    inv = jax.lax.rsqrt(var + _LN_EPS)
    o_ref[...] = ((y - mean) * inv * g_ref[...] + beta_ref[...]).astype(o_ref.dtype)


def _ffn_kernel(h1_ref, w1_ref, b1_ref, w2_ref, b2_ref, g_ref, beta_ref,
                o_ref, acc_ref):
    """Fused FFN: relu(h1 @ W1 + b1) @ W2, accumulated over dim_ff tiles in VMEM;
    final step adds b2 + residual and applies LayerNorm."""
    f = pl.program_id(1)

    @pl.when(f == 0)
    def _():
        acc_ref[...] = jnp.zeros_like(acc_ref)

    hidden = (jnp.dot(h1_ref[...], w1_ref[...],
                      preferred_element_type=jnp.float32) + b1_ref[...])
    hidden = jnp.maximum(hidden, 0.0)
    acc_ref[...] += jnp.dot(hidden, w2_ref[...],
                            preferred_element_type=jnp.float32)

    @pl.when(f == pl.num_programs(1) - 1)
    def _():
        y = acc_ref[...] + b2_ref[...] + h1_ref[...]
        mean = jnp.mean(y, axis=-1, keepdims=True)
        var = jnp.mean((y - mean) ** 2, axis=-1, keepdims=True)
        inv = jax.lax.rsqrt(var + _LN_EPS)
        o_ref[...] = ((y - mean) * inv * g_ref[...] + beta_ref[...]).astype(o_ref.dtype)


# ----------------------------------------------------------------------------
# pallas_call wrappers
# ----------------------------------------------------------------------------

def linear(x, w, b, activation=None):
    """x: [M, K]; w: [K, N] (pre-transposed); b: [1, N] -> [M, N]."""
    M, K = x.shape
    N = w.shape[1]
    tm = _pick_tile(M, 256, 8)
    tn = _pick_tile(N, 256, 128)
    tk = _pick_tile(K, 512, 128)
    grid = (M // tm, N // tn, K // tk)
    cost = pl.CostEstimate(flops=2 * M * N * K, transcendentals=0,
                           bytes_accessed=4 * (M * K + K * N + M * N))
    return pl.pallas_call(
        functools.partial(_matmul_kernel, activation=activation),
        out_shape=jax.ShapeDtypeStruct((M, N), x.dtype),
        grid=grid,
        in_specs=[
            pl.BlockSpec((tm, tk), lambda i, j, k: (i, k)),
            pl.BlockSpec((tk, tn), lambda i, j, k: (k, j)),
            pl.BlockSpec((1, tn), lambda i, j, k: (0, j)),
        ],
        out_specs=pl.BlockSpec((tm, tn), lambda i, j, k: (i, j)),
        scratch_shapes=[pltpu.VMEM((tm, tn), jnp.float32)],
        compiler_params=_cparams(("parallel", "parallel", "arbitrary")),
        cost_estimate=cost,
    )(x, w, b)


def proj_with_positional_encoding(x, w, b, pe):
    """x: [B, L, Kin]; w: [Kin, D]; b: [1, D]; pe: [L, D] -> [B, L, D]."""
    B, L, Kin = x.shape
    D = w.shape[1]
    tl = _pick_tile(L, 256, 8)
    grid = (B, L // tl)
    return pl.pallas_call(
        _proj_pe_kernel,
        out_shape=jax.ShapeDtypeStruct((B, L, D), x.dtype),
        grid=grid,
        in_specs=[
            pl.BlockSpec((None, tl, Kin), lambda bb, ll: (bb, ll, 0)),
            pl.BlockSpec((Kin, D), lambda bb, ll: (0, 0)),
            pl.BlockSpec((1, D), lambda bb, ll: (0, 0)),
            pl.BlockSpec((tl, D), lambda bb, ll: (ll, 0)),   # PE: no batch copy
        ],
        out_specs=pl.BlockSpec((None, tl, D), lambda bb, ll: (bb, ll, 0)),
        compiler_params=_cparams(("parallel", "parallel")),
    )(x, w, b, pe)


def qkv_projection(x, layer):
    """x: [M, D] -> (q, k, v) each [M, D]."""
    M, D = x.shape
    tm = _pick_tile(M, 256, 8)
    row = pl.BlockSpec((tm, D), lambda i: (i, 0))
    wsp = pl.BlockSpec((D, D), lambda i: (0, 0))
    vsp = pl.BlockSpec((1, D), lambda i: (0, 0))
    out = jax.ShapeDtypeStruct((M, D), x.dtype)
    return pl.pallas_call(
        _qkv_kernel,
        out_shape=(out, out, out),
        grid=(M // tm,),
        in_specs=[row, wsp, wsp, wsp, vsp, vsp, vsp],
        out_specs=(row, row, row),
        compiler_params=_cparams(("parallel",)),
    )(x, layer["wq"], layer["wk"], layer["wv"],
      layer["bq"], layer["bk"], layer["bv"])


def multi_head_attention(q, k, v, nhead):
    """q, k, v: [B, L, D] -> [B, L, D] (heads split in-kernel)."""
    B, L, D = q.shape
    scale = 1.0 / math.sqrt(D // nhead)
    spec = pl.BlockSpec((None, L, D), lambda b: (b, 0, 0))
    return pl.pallas_call(
        functools.partial(_attention_kernel, nhead=nhead, scale=scale),
        out_shape=jax.ShapeDtypeStruct((B, L, D), q.dtype),
        grid=(B,),
        in_specs=[spec, spec, spec],
        out_specs=spec,
        compiler_params=_cparams(("parallel",)),
    )(q, k, v)


def attn_out_layernorm(attn, residual, layer):
    """LayerNorm(attn @ Wo + bo + residual); attn, residual: [M, D]."""
    M, D = attn.shape
    tm = _pick_tile(M, 256, 8)
    row = pl.BlockSpec((tm, D), lambda i: (i, 0))
    wsp = pl.BlockSpec((D, D), lambda i: (0, 0))
    vsp = pl.BlockSpec((1, D), lambda i: (0, 0))
    return pl.pallas_call(
        _outproj_ln_kernel,
        out_shape=jax.ShapeDtypeStruct((M, D), attn.dtype),
        grid=(M // tm,),
        in_specs=[row, row, wsp, vsp, vsp, vsp],
        out_specs=row,
        compiler_params=_cparams(("parallel",)),
    )(attn, residual, layer["wo"], layer["bo"], layer["ln1_g"], layer["ln1_b"])


def ffn_layernorm(h1, layer):
    """LayerNorm(h1 + relu(h1 @ W1 + b1) @ W2 + b2); h1: [M, D]."""
    M, D = h1.shape
    F = layer["w1"].shape[1]
    tm = _pick_tile(M, 256, 8)
    tf = _pick_tile(F, 512, 128)
    grid = (M // tm, F // tf)
    return pl.pallas_call(
        _ffn_kernel,
        out_shape=jax.ShapeDtypeStruct((M, D), h1.dtype),
        grid=grid,
        in_specs=[
            pl.BlockSpec((tm, D), lambda i, f: (i, 0)),    # h1 (also residual)
            pl.BlockSpec((D, tf), lambda i, f: (0, f)),    # W1 tile
            pl.BlockSpec((1, tf), lambda i, f: (0, f)),    # b1 tile
            pl.BlockSpec((tf, D), lambda i, f: (f, 0)),    # W2 tile
            pl.BlockSpec((1, D), lambda i, f: (0, 0)),     # b2
            pl.BlockSpec((1, D), lambda i, f: (0, 0)),     # ln2 gamma
            pl.BlockSpec((1, D), lambda i, f: (0, 0)),     # ln2 beta
        ],
        out_specs=pl.BlockSpec((tm, D), lambda i, f: (i, 0)),
        scratch_shapes=[pltpu.VMEM((tm, D), jnp.float32)],
        compiler_params=_cparams(("parallel", "arbitrary")),
    )(h1, layer["w1"], layer["b1"], layer["w2"], layer["b2"],
      layer["ln2_g"], layer["ln2_b"])


# ----------------------------------------------------------------------------
# model: parameters + forward
# ----------------------------------------------------------------------------

def _xavier(key, fan_in, fan_out):
    limit = math.sqrt(6.0 / (fan_in + fan_out))
    return jax.random.uniform(key, (fan_in, fan_out), jnp.float32, -limit, limit)


def init_params(key, input_dim, output_dim, d_model, num_layers, dim_ff=2048):
    keys = iter(jax.random.split(key, 2 + 6 * num_layers))
    params = {
        # weights stored pre-transposed as [K, N]; biases as [1, N]
        "proj_before_w": _xavier(next(keys), input_dim, d_model),
        "proj_before_b": jnp.zeros((1, d_model), jnp.float32),
        "proj_after_w": _xavier(next(keys), d_model, output_dim),
        "proj_after_b": jnp.zeros((1, output_dim), jnp.float32),
        "layers": [],
    }
    for _ in range(num_layers):
        layer = {
            "wq": _xavier(next(keys), d_model, d_model),
            "wk": _xavier(next(keys), d_model, d_model),
            "wv": _xavier(next(keys), d_model, d_model),
            "bq": jnp.zeros((1, d_model), jnp.float32),
            "bk": jnp.zeros((1, d_model), jnp.float32),
            "bv": jnp.zeros((1, d_model), jnp.float32),
            "wo": _xavier(next(keys), d_model, d_model),
            "bo": jnp.zeros((1, d_model), jnp.float32),
            "w1": _xavier(next(keys), d_model, dim_ff),
            "b1": jnp.zeros((1, dim_ff), jnp.float32),
            "w2": _xavier(next(keys), dim_ff, d_model),
            "b2": jnp.zeros((1, d_model), jnp.float32),
            "ln1_g": jnp.ones((1, d_model), jnp.float32),
            "ln1_b": jnp.zeros((1, d_model), jnp.float32),
            "ln2_g": jnp.ones((1, d_model), jnp.float32),
            "ln2_b": jnp.zeros((1, d_model), jnp.float32),
        }
        params["layers"].append(layer)
    return params


def positional_encoding(L, d_model):
    position = jnp.arange(L, dtype=jnp.float32)[:, None]
    div_term = jnp.exp(jnp.arange(0, d_model, 2, dtype=jnp.float32)
                       * (-math.log(10000.0) / d_model))
    pe = jnp.zeros((L, d_model), jnp.float32)
    pe = pe.at[:, 0::2].set(jnp.sin(position * div_term))
    pe = pe.at[:, 1::2].set(jnp.cos(position * div_term))
    return pe


def encoder_layer_forward(x, layer, nhead):
    """Post-norm nn.TransformerEncoderLayer (relu, dim_ff). x: [B, L, D]."""
    B, L, D = x.shape
    M = B * L
    xf = x.reshape(M, D)

    # --- self attention ---
    q, k, v = qkv_projection(xf, layer)
    attn = multi_head_attention(q.reshape(B, L, D), k.reshape(B, L, D),
                                v.reshape(B, L, D), nhead)
    h1 = attn_out_layernorm(attn.reshape(M, D), xf, layer)

    # --- feed forward (fused, dim_ff intermediate stays in VMEM) ---
    h2 = ffn_layernorm(h1, layer)
    return h2.reshape(B, L, D)


def transformer_encoder_forward(params, x, nhead):
    """x: [B, L, input_dim] -> [B, L, output_dim]."""
    B, L, _ = x.shape
    d_model = params["proj_before_w"].shape[1]

    # TODO(synk): dropout (PositionalEncoding + encoder layers) is identity here,
    # matching model.eval() semantics.
    pe = positional_encoding(L, d_model)
    h = proj_with_positional_encoding(x, params["proj_before_w"],
                                      params["proj_before_b"], pe)

    # PyTorch permutes to (L, B, D); we stay batch-first, mathematically identical
    # for per-sequence self-attention.
    for layer in params["layers"]:
        h = encoder_layer_forward(h, layer, nhead)

    out = linear(h.reshape(B * L, d_model), params["proj_after_w"],
                 params["proj_after_b"])
    return out.reshape(B, L, -1)


# ----------------------------------------------------------------------------
# demo
# ----------------------------------------------------------------------------

if __name__ == "__main__":
    B, L = 2, 8
    input_dim, output_dim = 16, 16
    d_model, nhead, num_layers = 32, 4, 2

    key = jax.random.PRNGKey(0)
    k_param, k_x = jax.random.split(key)
    params = init_params(k_param, input_dim, output_dim, d_model, num_layers)
    x = jax.random.normal(k_x, (B, L, input_dim), dtype=jnp.float32)

    fwd = jax.jit(functools.partial(transformer_encoder_forward, nhead=nhead))
    out = fwd(params, x)
    jax.block_until_ready(out)
    assert out.shape == (B, L, output_dim)
    print("KERNEL_OK")
</pallas_src>

<mosaic_0001>
module attributes {stable_mosaic.version = 11 : i64} {
  func.func @_proj_pe_kernel(%arg0: i32, %arg1: i32, %arg2: memref<1x8x16xf32, #tpu.memory_space<vmem>>, %arg3: memref<16x32xf32, #tpu.memory_space<vmem>>, %arg4: memref<1x32xf32, #tpu.memory_space<vmem>>, %arg5: memref<8x32xf32, #tpu.memory_space<vmem>>, %arg6: memref<1x8x32xf32, #tpu.memory_space<vmem>>) attributes {dimension_semantics = [#tpu.dimension_semantics<parallel>, #tpu.dimension_semantics<parallel>], iteration_bounds = array<i64: 2, 1>, scalar_prefetch = 0 : i64, scratch_operands = 0 : i64, tpu.core_type = #tpu.core_type<tc>, window_params = [{transform_indices = @transform_0, window_bounds = array<i64: 1, 8, 16>}, {pipeline_mode = #tpu.pipeline_mode<synchronous>, transform_indices = @transform_1, window_bounds = array<i64: 16, 32>}, {pipeline_mode = #tpu.pipeline_mode<synchronous>, transform_indices = @transform_2, window_bounds = array<i64: 1, 32>}, {transform_indices = @transform_3, window_bounds = array<i64: 8, 32>}, {transform_indices = @transform_4, window_bounds = array<i64: 1, 8, 32>}]} {
    %c0 = arith.constant 0 : index
    %c0_0 = arith.constant 0 : index
    %c0_1 = arith.constant 0 : index
    %0 = vector.load %arg2[%c0, %c0_0, %c0_1] : memref<1x8x16xf32, #tpu.memory_space<vmem>>, vector<1x8x16xf32>
    %1 = vector.shape_cast %0 : vector<1x8x16xf32> to vector<8x16xf32>
    %c0_2 = arith.constant 0 : index
    %c0_3 = arith.constant 0 : index
    %2 = vector.load %arg3[%c0_2, %c0_3] : memref<16x32xf32, #tpu.memory_space<vmem>>, vector<16x32xf32>
    %cst = arith.constant dense<0.000000e+00> : vector<8x32xf32>
    %3 = tpu.matmul %1, %2, %cst {dimension_numbers = #tpu.dot_dimension_numbers<[1], [0], [0], [1], [0, 0, 1, 1], [], []>} : vector<8x16xf32>, vector<16x32xf32>, vector<8x32xf32> -> vector<8x32xf32>
    %c0_4 = arith.constant 0 : index
    %c0_5 = arith.constant 0 : index
    %4 = vector.load %arg4[%c0_4, %c0_5] : memref<1x32xf32, #tpu.memory_space<vmem>>, vector<1x32xf32>
    %5 = vector.broadcast %4 : vector<1x32xf32> to vector<8x32xf32>
    %6 = arith.addf %3, %5 : vector<8x32xf32>
    %c0_6 = arith.constant 0 : index
    %c0_7 = arith.constant 0 : index
    %7 = vector.load %arg5[%c0_6, %c0_7] : memref<8x32xf32, #tpu.memory_space<vmem>>, vector<8x32xf32>
    %8 = arith.addf %6, %7 : vector<8x32xf32>
    %c0_8 = arith.constant 0 : index
    %c0_9 = arith.constant 0 : index
    %c0_10 = arith.constant 0 : index
    %9 = vector.load %arg6[%c0_8, %c0_9, %c0_10] : memref<1x8x32xf32, #tpu.memory_space<vmem>>, vector<1x8x32xf32>
    %10 = vector.shape_cast %9 : vector<1x8x32xf32> to vector<8x32xf32>
    %11 = vector.shape_cast %8 : vector<8x32xf32> to vector<1x8x32xf32>
    tpu.vector_store %arg6[%c0_8, %c0_9, %c0_10], %11 {strides = array<i32>} : memref<1x8x32xf32, #tpu.memory_space<vmem>>, vector<1x8x32xf32>,
    return
  }
  func.func @transform_0(%arg0: i32, %arg1: i32) -> (i32, i32, i32) {
    %c0_i32 = arith.constant 0 : i32
    %c0_i32_0 = arith.constant 0 : i32
    return %arg0, %arg1, %c0_i32 : i32, i32, i32
  }
  func.func @transform_1(%arg0: i32, %arg1: i32) -> (i32, i32) {
    %c0_i32 = arith.constant 0 : i32
    %c0_i32_0 = arith.constant 0 : i32
    %c0_i32_1 = arith.constant 0 : i32
    return %c0_i32, %c0_i32_0 : i32, i32
  }
  func.func @transform_2(%arg0: i32, %arg1: i32) -> (i32, i32) {
    %c0_i32 = arith.constant 0 : i32
    %c0_i32_0 = arith.constant 0 : i32
    %c0_i32_1 = arith.constant 0 : i32
    return %c0_i32, %c0_i32_0 : i32, i32
  }
  func.func @transform_3(%arg0: i32, %arg1: i32) -> (i32, i32) {
    %c0_i32 = arith.constant 0 : i32
    %c0_i32_0 = arith.constant 0 : i32
    return %arg1, %c0_i32 : i32, i32
  }
  func.func @transform_4(%arg0: i32, %arg1: i32) -> (i32, i32, i32) {
    %c0_i32 = arith.constant 0 : i32
    %c0_i32_0 = arith.constant 0 : i32
    return %arg0, %arg1, %c0_i32 : i32, i32, i32
  }
}

module attributes {stable_mosaic.version = 11 : i64} {
  func.func @_attention_kernel(%arg0: i32, %arg1: memref<1x8x32xf32, #tpu.memory_space<vmem>>, %arg2: memref<1x8x32xf32, #tpu.memory_space<vmem>>, %arg3: memref<1x8x32xf32, #tpu.memory_space<vmem>>, %arg4: memref<1x8x32xf32, #tpu.memory_space<vmem>>) attributes {dimension_semantics = [#tpu.dimension_semantics<parallel>], iteration_bounds = array<i64: 2>, scalar_prefetch = 0 : i64, scratch_operands = 0 : i64, tpu.core_type = #tpu.core_type<tc>, window_params = [{transform_indices = @transform_0, window_bounds = array<i64: 1, 8, 32>}, {transform_indices = @transform_1, window_bounds = array<i64: 1, 8, 32>}, {transform_indices = @transform_2, window_bounds = array<i64: 1, 8, 32>}, {transform_indices = @transform_3, window_bounds = array<i64: 1, 8, 32>}]} {
    %c0 = arith.constant 0 : index
    %c0_0 = arith.constant 0 : index
    %c0_1 = arith.constant 0 : index
    %0 = vector.load %arg1[%c0, %c0_0, %c0_1] : memref<1x8x32xf32, #tpu.memory_space<vmem>>, vector<1x8x32xf32>
    %1 = vector.shape_cast %0 : vector<1x8x32xf32> to vector<8x32xf32>
    %c0_2 = arith.constant 0 : index
    %c0_3 = arith.constant 0 : index
    %c0_4 = arith.constant 0 : index
    %2 = vector.load %arg2[%c0_2, %c0_3, %c0_4] : memref<1x8x32xf32, #tpu.memory_space<vmem>>, vector<1x8x32xf32>
    %3 = vector.shape_cast %2 : vector<1x8x32xf32> to vector<8x32xf32>
    %c0_5 = arith.constant 0 : index
    %c0_6 = arith.constant 0 : index
    %c0_7 = arith.constant 0 : index
    %4 = vector.load %arg3[%c0_5, %c0_6, %c0_7] : memref<1x8x32xf32, #tpu.memory_space<vmem>>, vector<1x8x32xf32>
    %5 = vector.shape_cast %4 : vector<1x8x32xf32> to vector<8x32xf32>
    %6 = vector.extract_strided_slice %1 {offsets = [0, 0], sizes = [8, 8], strides = [1, 1]} : vector<8x32xf32> to vector<8x8xf32>
    %7 = vector.extract_strided_slice %3 {offsets = [0, 0], sizes = [8, 8], strides = [1, 1]} : vector<8x32xf32> to vector<8x8xf32>
    %8 = vector.extract_strided_slice %5 {offsets = [0, 0], sizes = [8, 8], strides = [1, 1]} : vector<8x32xf32> to vector<8x8xf32>
    %9 = tpu.transpose %7, [1, 0] : vector<8x8xf32> -> vector<8x8xf32>
    %cst = arith.constant dense<0.000000e+00> : vector<8x8xf32>
    %10 = tpu.matmul %6, %9, %cst {dimension_numbers = #tpu.dot_dimension_numbers<[1], [0], [0], [1], [0, 0, 1, 1], [], []>} : vector<8x8xf32>, vector<8x8xf32>, vector<8x8xf32> -> vector<8x8xf32>
    %cst_8 = arith.constant 0.353553385 : f32
    %11 = vector.broadcast %cst_8 : f32 to vector<8x8xf32>
    %12 = arith.mulf %10, %11 : vector<8x8xf32>
    %cst_9 = arith.constant dense<0xFF800000> : vector<8xf32>
    %13 = vector.multi_reduction <maximumf>, %12, %cst_9 [1] : vector<8x8xf32> to vector<8xf32>
    %14 = vector.shape_cast %13 : vector<8xf32> to vector<8x1xf32>
    %15 = vector.broadcast %14 : vector<8x1xf32> to vector<8x8xf32>
    %16 = arith.subf %12, %15 : vector<8x8xf32>
    %17 = math.exp %16 : vector<8x8xf32>
    %cst_10 = arith.constant dense<0.000000e+00> : vector<8xf32>
    %18 = vector.multi_reduction <add>, %17, %cst_10 [1] : vector<8x8xf32> to vector<8xf32>
    %19 = vector.shape_cast %18 : vector<8xf32> to vector<8x1xf32>
    %cst_11 = arith.constant dense<0.000000e+00> : vector<8x8xf32>
    %20 = tpu.matmul %17, %8, %cst_11 {dimension_numbers = #tpu.dot_dimension_numbers<[1], [0], [0], [1], [0, 0, 1, 1], [], []>} : vector<8x8xf32>, vector<8x8xf32>, vector<8x8xf32> -> vector<8x8xf32>
    %21 = tpu.reciprocal %19 {approx = true} : vector<8x1xf32> -> vector<8x1xf32>
    %22 = vector.broadcast %21 : vector<8x1xf32> to vector<8x8xf32>
    %23 = arith.mulf %20, %22 : vector<8x8xf32>
    %24 = vector.extract_strided_slice %1 {offsets = [0, 8], sizes = [8, 8], strides = [1, 1]} : vector<8x32xf32> to vector<8x8xf32>
    %25 = vector.extract_strided_slice %3 {offsets = [0, 8], sizes = [8, 8], strides = [1, 1]} : vector<8x32xf32> to vector<8x8xf32>
    %26 = vector.extract_strided_slice %5 {offsets = [0, 8], sizes = [8, 8], strides = [1, 1]} : vector<8x32xf32> to vector<8x8xf32>
    %27 = tpu.transpose %25, [1, 0] : vector<8x8xf32> -> vector<8x8xf32>
    %cst_12 = arith.constant dense<0.000000e+00> : vector<8x8xf32>
    %28 = tpu.matmul %24, %27, %cst_12 {dimension_numbers = #tpu.dot_dimension_numbers<[1], [0], [0], [1], [0, 0, 1, 1], [], []>} : vector<8x8xf32>, vector<8x8xf32>, vector<8x8xf32> -> vector<8x8xf32>
    %cst_13 = arith.constant 0.353553385 : f32
    %29 = vector.broadcast %cst_13 : f32 to vector<8x8xf32>
    %30 = arith.mulf %28, %29 : vector<8x8xf32>
    %cst_14 = arith.constant dense<0xFF800000> : vector<8xf32>
    %31 = vector.multi_reduction <maximumf>, %30, %cst_14 [1] : vector<8x8xf32> to vector<8xf32>
    %32 = vector.shape_cast %31 : vector<8xf32> to vector<8x1xf32>
    %33 = vector.broadcast %32 : vector<8x1xf32> to vector<8x8xf32>
    %34 = arith.subf %30, %33 : vector<8x8xf32>
    %35 = math.exp %34 : vector<8x8xf32>
    %cst_15 = arith.constant dense<0.000000e+00> : vector<8xf32>
    %36 = vector.multi_reduction <add>, %35, %cst_15 [1] : vector<8x8xf32> to vector<8xf32>
    %37 = vector.shape_cast %36 : vector<8xf32> to vector<8x1xf32>
    %cst_16 = arith.constant dense<0.000000e+00> : vector<8x8xf32>
    %38 = tpu.matmul %35, %26, %cst_16 {dimension_numbers = #tpu.dot_dimension_numbers<[1], [0], [0], [1], [0, 0, 1, 1], [], []>} : vector<8x8xf32>, vector<8x8xf32>, vector<8x8xf32> -> vector<8x8xf32>
    %39 = tpu.reciprocal %37 {approx = true} : vector<8x1xf32> -> vector<8x1xf32>
    %40 = vector.broadcast %39 : vector<8x1xf32> to vector<8x8xf32>
    %41 = arith.mulf %38, %40 : vector<8x8xf32>
    %42 = vector.extract_strided_slice %1 {offsets = [0, 16], sizes = [8, 8], strides = [1, 1]} : vector<8x32xf32> to vector<8x8xf32>
    %43 = vector.extract_strided_slice %3 {offsets = [0, 16], sizes = [8, 8], strides = [1, 1]} : vector<8x32xf32> to vector<8x8xf32>
    %44 = vector.extract_strided_slice %5 {offsets = [0, 16], sizes = [8, 8], strides = [1, 1]} : vector<8x32xf32> to vector<8x8xf32>
    %45 = tpu.transpose %43, [1, 0] : vector<8x8xf32> -> vector<8x8xf32>
    %cst_17 = arith.constant dense<0.000000e+00> : vector<8x8xf32>
    %46 = tpu.matmul %42, %45, %cst_17 {dimension_numbers = #tpu.dot_dimension_numbers<[1], [0], [0], [1], [0, 0, 1, 1], [], []>} : vector<8x8xf32>, vector<8x8xf32>, vector<8x8xf32> -> vector<8x8xf32>
    %cst_18 = arith.constant 0.353553385 : f32
    %47 = vector.broadcast %cst_18 : f32 to vector<8x8xf32>
    %48 = arith.mulf %46, %47 : vector<8x8xf32>
    %cst_19 = arith.constant dense<0xFF800000> : vector<8xf32>
    %49 = vector.multi_reduction <maximumf>, %48, %cst_19 [1] : vector<8x8xf32> to vector<8xf32>
    %50 = vector.shape_cast %49 : vector<8xf32> to vector<8x1xf32>
    %51 = vector.broadcast %50 : vector<8x1xf32> to vector<8x8xf32>
    %52 = arith.subf %48, %51 : vector<8x8xf32>
    %53 = math.exp %52 : vector<8x8xf32>
    %cst_20 = arith.constant dense<0.000000e+00> : vector<8xf32>
    %54 = vector.multi_reduction <add>, %53, %cst_20 [1] : vector<8x8xf32> to vector<8xf32>
    %55 = vector.shape_cast %54 : vector<8xf32> to vector<8x1xf32>
    %cst_21 = arith.constant dense<0.000000e+00> : vector<8x8xf32>
    %56 = tpu.matmul %53, %44, %cst_21 {dimension_numbers = #tpu.dot_dimension_numbers<[1], [0], [0], [1], [0, 0, 1, 1], [], []>} : vector<8x8xf32>, vector<8x8xf32>, vector<8x8xf32> -> vector<8x8xf32>
    %57 = tpu.reciprocal %55 {approx = true} : vector<8x1xf32> -> vector<8x1xf32>
    %58 = vector.broadcast %57 : vector<8x1xf32> to vector<8x8xf32>
    %59 = arith.mulf %56, %58 : vector<8x8xf32>
    %60 = vector.extract_strided_slice %1 {offsets = [0, 24], sizes = [8, 8], strides = [1, 1]} : vector<8x32xf32> to vector<8x8xf32>
    %61 = vector.extract_strided_slice %3 {offsets = [0, 24], sizes = [8, 8], strides = [1, 1]} : vector<8x32xf32> to vector<8x8xf32>
    %62 = vector.extract_strided_slice %5 {offsets = [0, 24], sizes = [8, 8], strides = [1, 1]} : vector<8x32xf32> to vector<8x8xf32>
    %63 = tpu.transpose %61, [1, 0] : vector<8x8xf32> -> vector<8x8xf32>
    %cst_22 = arith.constant dense<0.000000e+00> : vector<8x8xf32>
    %64 = tpu.matmul %60, %63, %cst_22 {dimension_numbers = #tpu.dot_dimension_numbers<[1], [0], [0], [1], [0, 0, 1, 1], [], []>} : vector<8x8xf32>, vector<8x8xf32>, vector<8x8xf32> -> vector<8x8xf32>
    %cst_23 = arith.constant 0.353553385 : f32
    %65 = vector.broadcast %cst_23 : f32 to vector<8x8xf32>
    %66 = arith.mulf %64, %65 : vector<8x8xf32>
    %cst_24 = arith.constant dense<0xFF800000> : vector<8xf32>
    %67 = vector.multi_reduction <maximumf>, %66, %cst_24 [1] : vector<8x8xf32> to vector<8xf32>
    %68 = vector.shape_cast %67 : vector<8xf32> to vector<8x1xf32>
    %69 = vector.broadcast %68 : vector<8x1xf32> to vector<8x8xf32>
    %70 = arith.subf %66, %69 : vector<8x8xf32>
    %71 = math.exp %70 : vector<8x8xf32>
    %cst_25 = arith.constant dense<0.000000e+00> : vector<8xf32>
    %72 = vector.multi_reduction <add>, %71, %cst_25 [1] : vector<8x8xf32> to vector<8xf32>
    %73 = vector.shape_cast %72 : vector<8xf32> to vector<8x1xf32>
    %cst_26 = arith.constant dense<0.000000e+00> : vector<8x8xf32>
    %74 = tpu.matmul %71, %62, %cst_26 {dimension_numbers = #tpu.dot_dimension_numbers<[1], [0], [0], [1], [0, 0, 1, 1], [], []>} : vector<8x8xf32>, vector<8x8xf32>, vector<8x8xf32> -> vector<8x8xf32>
    %75 = tpu.reciprocal %73 {approx = true} : vector<8x1xf32> -> vector<8x1xf32>
    %76 = vector.broadcast %75 : vector<8x1xf32> to vector<8x8xf32>
    %77 = arith.mulf %74, %76 : vector<8x8xf32>
    %78 = tpu.concatenate %23, %41, %59, %77 in 1 : vector<8x8xf32>, vector<8x8xf32>, vector<8x8xf32>, vector<8x8xf32> -> vector<8x32xf32>
    %c0_27 = arith.constant 0 : index
    %c0_28 = arith.constant 0 : index
    %c0_29 = arith.constant 0 : index
    %79 = vector.load %arg4[%c0_27, %c0_28, %c0_29] : memref<1x8x32xf32, #tpu.memory_space<vmem>>, vector<1x8x32xf32>
    %80 = vector.shape_cast %79 : vector<1x8x32xf32> to vector<8x32xf32>
    %81 = vector.shape_cast %78 : vector<8x32xf32> to vector<1x8x32xf32>
    tpu.vector_store %arg4[%c0_27, %c0_28, %c0_29], %81 {strides = array<i32>} : memref<1x8x32xf32, #tpu.memory_space<vmem>>, vector<1x8x32xf32>,
    return
  }
  func.func @transform_0(%arg0: i32) -> (i32, i32, i32) {
    %c0_i32 = arith.constant 0 : i32
    %c0_i32_0 = arith.constant 0 : i32
    %c0_i32_1 = arith.constant 0 : i32
    return %arg0, %c0_i32, %c0_i32_0 : i32, i32, i32
  }
  func.func @transform_1(%arg0: i32) -> (i32, i32, i32) {
    %c0_i32 = arith.constant 0 : i32
    %c0_i32_0 = arith.constant 0 : i32
    %c0_i32_1 = arith.constant 0 : i32
    return %arg0, %c0_i32, %c0_i32_0 : i32, i32, i32
  }
  func.func @transform_2(%arg0: i32) -> (i32, i32, i32) {
    %c0_i32 = arith.constant 0 : i32
    %c0_i32_0 = arith.constant 0 : i32
    %c0_i32_1 = arith.constant 0 : i32
    return %arg0, %c0_i32, %c0_i32_0 : i32, i32, i32
  }
  func.func @transform_3(%arg0: i32) -> (i32, i32, i32) {
    %c0_i32 = arith.constant 0 : i32
    %c0_i32_0 = arith.constant 0 : i32
    %c0_i32_1 = arith.constant 0 : i32
    return %arg0, %c0_i32, %c0_i32_0 : i32, i32, i32
  }
}

module attributes {stable_mosaic.version = 11 : i64} {
  func.func @_qkv_kernel(%arg0: i32, %arg1: memref<16x32xf32, #tpu.memory_space<vmem>>, %arg2: memref<32x32xf32, #tpu.memory_space<vmem>>, %arg3: memref<32x32xf32, #tpu.memory_space<vmem>>, %arg4: memref<32x32xf32, #tpu.memory_space<vmem>>, %arg5: memref<1x32xf32, #tpu.memory_space<vmem>>, %arg6: memref<1x32xf32, #tpu.memory_space<vmem>>, %arg7: memref<1x32xf32, #tpu.memory_space<vmem>>, %arg8: memref<16x32xf32, #tpu.memory_space<vmem>>, %arg9: memref<16x32xf32, #tpu.memory_space<vmem>>, %arg10: memref<16x32xf32, #tpu.memory_space<vmem>>) attributes {dimension_semantics = [#tpu.dimension_semantics<parallel>], iteration_bounds = array<i64: 1>, scalar_prefetch = 0 : i64, scratch_operands = 0 : i64, tpu.core_type = #tpu.core_type<tc>, window_params = [{transform_indices = @transform_0, window_bounds = array<i64: 16, 32>}, {pipeline_mode = #tpu.pipeline_mode<synchronous>, transform_indices = @transform_1, window_bounds = array<i64: 32, 32>}, {pipeline_mode = #tpu.pipeline_mode<synchronous>, transform_indices = @transform_2, window_bounds = array<i64: 32, 32>}, {pipeline_mode = #tpu.pipeline_mode<synchronous>, transform_indices = @transform_3, window_bounds = array<i64: 32, 32>}, {pipeline_mode = #tpu.pipeline_mode<synchronous>, transform_indices = @transform_4, window_bounds = array<i64: 1, 32>}, {pipeline_mode = #tpu.pipeline_mode<synchronous>, transform_indices = @transform_5, window_bounds = array<i64: 1, 32>}, {pipeline_mode = #tpu.pipeline_mode<synchronous>, transform_indices = @transform_6, window_bounds = array<i64: 1, 32>}, {transform_indices = @transform_7, window_bounds = array<i64: 16, 32>}, {transform_indices = @transform_8, window_bounds = array<i64: 16, 32>}, {transform_indices = @transform_9, window_bounds = array<i64: 16, 32>}]} {
    %c0 = arith.constant 0 : index
    %c0_0 = arith.constant 0 : index
    %0 = vector.load %arg1[%c0, %c0_0] : memref<16x32xf32, #tpu.memory_space<vmem>>, vector<16x32xf32>
    %c0_1 = arith.constant 0 : index
    %c0_2 = arith.constant 0 : index
    %1 = vector.load %arg2[%c0_1, %c0_2] : memref<32x32xf32, #tpu.memory_space<vmem>>, vector<32x32xf32>
    %cst = arith.constant dense<0.000000e+00> : vector<16x32xf32>
    %2 = tpu.matmul %0, %1, %cst {dimension_numbers = #tpu.dot_dimension_numbers<[1], [0], [0], [1], [0, 0, 1, 1], [], []>} : vector<16x32xf32>, vector<32x32xf32>, vector<16x32xf32> -> vector<16x32xf32>
    %c0_3 = arith.constant 0 : index
    %c0_4 = arith.constant 0 : index
    %3 = vector.load %arg5[%c0_3, %c0_4] : memref<1x32xf32, #tpu.memory_space<vmem>>, vector<1x32xf32>
    %4 = vector.broadcast %3 : vector<1x32xf32> to vector<16x32xf32>
    %5 = arith.addf %2, %4 : vector<16x32xf32>
    %c0_5 = arith.constant 0 : index
    %c0_6 = arith.constant 0 : index
    %6 = vector.load %arg8[%c0_5, %c0_6] : memref<16x32xf32, #tpu.memory_space<vmem>>, vector<16x32xf32>
    tpu.vector_store %arg8[%c0_5, %c0_6], %5 {strides = array<i32>} : memref<16x32xf32, #tpu.memory_space<vmem>>, vector<16x32xf32>,
    %c0_7 = arith.constant 0 : index
    %c0_8 = arith.constant 0 : index
    %7 = vector.load %arg3[%c0_7, %c0_8] : memref<32x32xf32, #tpu.memory_space<vmem>>, vector<32x32xf32>
    %cst_9 = arith.constant dense<0.000000e+00> : vector<16x32xf32>
    %8 = tpu.matmul %0, %7, %cst_9 {dimension_numbers = #tpu.dot_dimension_numbers<[1], [0], [0], [1], [0, 0, 1, 1], [], []>} : vector<16x32xf32>, vector<32x32xf32>, vector<16x32xf32> -> vector<16x32xf32>
    %c0_10 = arith.constant 0 : index
    %c0_11 = arith.constant 0 : index
    %9 = vector.load %arg6[%c0_10, %c0_11] : memref<1x32xf32, #tpu.memory_space<vmem>>, vector<1x32xf32>
    %10 = vector.broadcast %9 : vector<1x32xf32> to vector<16x32xf32>
    %11 = arith.addf %8, %10 : vector<16x32xf32>
    %c0_12 = arith.constant 0 : index
    %c0_13 = arith.constant 0 : index
    %12 = vector.load %arg9[%c0_12, %c0_13] : memref<16x32xf32, #tpu.memory_space<vmem>>, vector<16x32xf32>
    tpu.vector_store %arg9[%c0_12, %c0_13], %11 {strides = array<i32>} : memref<16x32xf32, #tpu.memory_space<vmem>>, vector<16x32xf32>,
    %c0_14 = arith.constant 0 : index
    %c0_15 = arith.constant 0 : index
    %13 = vector.load %arg4[%c0_14, %c0_15] : memref<32x32xf32, #tpu.memory_space<vmem>>, vector<32x32xf32>
    %cst_16 = arith.constant dense<0.000000e+00> : vector<16x32xf32>
    %14 = tpu.matmul %0, %13, %cst_16 {dimension_numbers = #tpu.dot_dimension_numbers<[1], [0], [0], [1], [0, 0, 1, 1], [], []>} : vector<16x32xf32>, vector<32x32xf32>, vector<16x32xf32> -> vector<16x32xf32>
    %c0_17 = arith.constant 0 : index
    %c0_18 = arith.constant 0 : index
    %15 = vector.load %arg7[%c0_17, %c0_18] : memref<1x32xf32, #tpu.memory_space<vmem>>, vector<1x32xf32>
    %16 = vector.broadcast %15 : vector<1x32xf32> to vector<16x32xf32>
    %17 = arith.addf %14, %16 : vector<16x32xf32>
    %c0_19 = arith.constant 0 : index
    %c0_20 = arith.constant 0 : index
    %18 = vector.load %arg10[%c0_19, %c0_20] : memref<16x32xf32, #tpu.memory_space<vmem>>, vector<16x32xf32>
    tpu.vector_store %arg10[%c0_19, %c0_20], %17 {strides = array<i32>} : memref<16x32xf32, #tpu.memory_space<vmem>>, vector<16x32xf32>,
    return
  }
  func.func @transform_0(%arg0: i32) -> (i32, i32) {
    %c0_i32 = arith.constant 0 : i32
    %c0_i32_0 = arith.constant 0 : i32
    return %arg0, %c0_i32 : i32, i32
  }
  func.func @transform_1(%arg0: i32) -> (i32, i32) {
    %c0_i32 = arith.constant 0 : i32
    %c0_i32_0 = arith.constant 0 : i32
    %c0_i32_1 = arith.constant 0 : i32
    return %c0_i32, %c0_i32_0 : i32, i32
  }
  func.func @transform_2(%arg0: i32) -> (i32, i32) {
    %c0_i32 = arith.constant 0 : i32
    %c0_i32_0 = arith.constant 0 : i32
    %c0_i32_1 = arith.constant 0 : i32
    return %c0_i32, %c0_i32_0 : i32, i32
  }
  func.func @transform_3(%arg0: i32) -> (i32, i32) {
    %c0_i32 = arith.constant 0 : i32
    %c0_i32_0 = arith.constant 0 : i32
    %c0_i32_1 = arith.constant 0 : i32
    return %c0_i32, %c0_i32_0 : i32, i32
  }
  func.func @transform_4(%arg0: i32) -> (i32, i32) {
    %c0_i32 = arith.constant 0 : i32
    %c0_i32_0 = arith.constant 0 : i32
    %c0_i32_1 = arith.constant 0 : i32
    return %c0_i32, %c0_i32_0 : i32, i32
  }
  func.func @transform_5(%arg0: i32) -> (i32, i32) {
    %c0_i32 = arith.constant 0 : i32
    %c0_i32_0 = arith.constant 0 : i32
    %c0_i32_1 = arith.constant 0 : i32
    return %c0_i32, %c0_i32_0 : i32, i32
  }
  func.func @transform_6(%arg0: i32) -> (i32, i32) {
    %c0_i32 = arith.constant 0 : i32
    %c0_i32_0 = arith.constant 0 : i32
    %c0_i32_1 = arith.constant 0 : i32
    return %c0_i32, %c0_i32_0 : i32, i32
  }
  func.func @transform_7(%arg0: i32) -> (i32, i32) {
    %c0_i32 = arith.constant 0 : i32
    %c0_i32_0 = arith.constant 0 : i32
    return %arg0, %c0_i32 : i32, i32
  }
  func.func @transform_8(%arg0: i32) -> (i32, i32) {
    %c0_i32 = arith.constant 0 : i32
    %c0_i32_0 = arith.constant 0 : i32
    return %arg0, %c0_i32 : i32, i32
  }
  func.func @transform_9(%arg0: i32) -> (i32, i32) {
    %c0_i32 = arith.constant 0 : i32
    %c0_i32_0 = arith.constant 0 : i32
    return %arg0, %c0_i32 : i32, i32
  }
}

module attributes {stable_mosaic.version = 11 : i64} {
  func.func @_outproj_ln_kernel(%arg0: i32, %arg1: memref<16x32xf32, #tpu.memory_space<vmem>>, %arg2: memref<16x32xf32, #tpu.memory_space<vmem>>, %arg3: memref<32x32xf32, #tpu.memory_space<vmem>>, %arg4: memref<1x32xf32, #tpu.memory_space<vmem>>, %arg5: memref<1x32xf32, #tpu.memory_space<vmem>>, %arg6: memref<1x32xf32, #tpu.memory_space<vmem>>, %arg7: memref<16x32xf32, #tpu.memory_space<vmem>>) attributes {dimension_semantics = [#tpu.dimension_semantics<parallel>], iteration_bounds = array<i64: 1>, scalar_prefetch = 0 : i64, scratch_operands = 0 : i64, tpu.core_type = #tpu.core_type<tc>, window_params = [{transform_indices = @transform_0, window_bounds = array<i64: 16, 32>}, {transform_indices = @transform_1, window_bounds = array<i64: 16, 32>}, {pipeline_mode = #tpu.pipeline_mode<synchronous>, transform_indices = @transform_2, window_bounds = array<i64: 32, 32>}, {pipeline_mode = #tpu.pipeline_mode<synchronous>, transform_indices = @transform_3, window_bounds = array<i64: 1, 32>}, {pipeline_mode = #tpu.pipeline_mode<synchronous>, transform_indices = @transform_4, window_bounds = array<i64: 1, 32>}, {pipeline_mode = #tpu.pipeline_mode<synchronous>, transform_indices = @transform_5, window_bounds = array<i64: 1, 32>}, {transform_indices = @transform_6, window_bounds = array<i64: 16, 32>}]} {
    %c0 = arith.constant 0 : index
    %c0_0 = arith.constant 0 : index
    %0 = vector.load %arg1[%c0, %c0_0] : memref<16x32xf32, #tpu.memory_space<vmem>>, vector<16x32xf32>
    %c0_1 = arith.constant 0 : index
    %c0_2 = arith.constant 0 : index
    %1 = vector.load %arg3[%c0_1, %c0_2] : memref<32x32xf32, #tpu.memory_space<vmem>>, vector<32x32xf32>
    %cst = arith.constant dense<0.000000e+00> : vector<16x32xf32>
    %2 = tpu.matmul %0, %1, %cst {dimension_numbers = #tpu.dot_dimension_numbers<[1], [0], [0], [1], [0, 0, 1, 1], [], []>} : vector<16x32xf32>, vector<32x32xf32>, vector<16x32xf32> -> vector<16x32xf32>
    %c0_3 = arith.constant 0 : index
    %c0_4 = arith.constant 0 : index
    %3 = vector.load %arg4[%c0_3, %c0_4] : memref<1x32xf32, #tpu.memory_space<vmem>>, vector<1x32xf32>
    %4 = vector.broadcast %3 : vector<1x32xf32> to vector<16x32xf32>
    %5 = arith.addf %2, %4 : vector<16x32xf32>
    %c0_5 = arith.constant 0 : index
    %c0_6 = arith.constant 0 : index
    %6 = vector.load %arg2[%c0_5, %c0_6] : memref<16x32xf32, #tpu.memory_space<vmem>>, vector<16x32xf32>
    %7 = arith.addf %5, %6 : vector<16x32xf32>
    %cst_7 = arith.constant dense<0.000000e+00> : vector<16xf32>
    %8 = vector.multi_reduction <add>, %7, %cst_7 [1] : vector<16x32xf32> to vector<16xf32>
    %9 = vector.shape_cast %8 : vector<16xf32> to vector<16x1xf32>
    %cst_8 = arith.constant 3.200000e+01 : f32
    %10 = vector.broadcast %cst_8 : f32 to vector<16x1xf32>
    %11 = arith.divf %9, %10 : vector<16x1xf32>
    %12 = vector.broadcast %11 : vector<16x1xf32> to vector<16x32xf32>
    %13 = arith.subf %7, %12 : vector<16x32xf32>
    %14 = arith.mulf %13, %13 : vector<16x32xf32>
    %cst_9 = arith.constant dense<0.000000e+00> : vector<16xf32>
    %15 = vector.multi_reduction <add>, %14, %cst_9 [1] : vector<16x32xf32> to vector<16xf32>
    %16 = vector.shape_cast %15 : vector<16xf32> to vector<16x1xf32>
    %cst_10 = arith.constant 3.200000e+01 : f32
    %17 = vector.broadcast %cst_10 : f32 to vector<16x1xf32>
    %18 = arith.divf %16, %17 : vector<16x1xf32>
    %cst_11 = arith.constant 9.99999974E-6 : f32
    %19 = vector.broadcast %cst_11 : f32 to vector<16x1xf32>
    %20 = arith.addf %18, %19 : vector<16x1xf32>
    %21 = math.rsqrt %20 : vector<16x1xf32>
    %22 = vector.broadcast %11 : vector<16x1xf32> to vector<16x32xf32>
    %23 = arith.subf %7, %22 : vector<16x32xf32>
    %24 = vector.broadcast %21 : vector<16x1xf32> to vector<16x32xf32>
    %25 = arith.mulf %23, %24 : vector<16x32xf32>
    %c0_12 = arith.constant 0 : index
    %c0_13 = arith.constant 0 : index
    %26 = vector.load %arg5[%c0_12, %c0_13] : memref<1x32xf32, #tpu.memory_space<vmem>>, vector<1x32xf32>
    %27 = vector.broadcast %26 : vector<1x32xf32> to vector<16x32xf32>
    %28 = arith.mulf %25, %27 : vector<16x32xf32>
    %c0_14 = arith.constant 0 : index
    %c0_15 = arith.constant 0 : index
    %29 = vector.load %arg6[%c0_14, %c0_15] : memref<1x32xf32, #tpu.memory_space<vmem>>, vector<1x32xf32>
    %30 = vector.broadcast %29 : vector<1x32xf32> to vector<16x32xf32>
    %31 = arith.addf %28, %30 : vector<16x32xf32>
    %c0_16 = arith.constant 0 : index
    %c0_17 = arith.constant 0 : index
    %32 = vector.load %arg7[%c0_16, %c0_17] : memref<16x32xf32, #tpu.memory_space<vmem>>, vector<16x32xf32>
    tpu.vector_store %arg7[%c0_16, %c0_17], %31 {strides = array<i32>} : memref<16x32xf32, #tpu.memory_space<vmem>>, vector<16x32xf32>,
    return
  }
  func.func @transform_0(%arg0: i32) -> (i32, i32) {
    %c0_i32 = arith.constant 0 : i32
    %c0_i32_0 = arith.constant 0 : i32
    return %arg0, %c0_i32 : i32, i32
  }
  func.func @transform_1(%arg0: i32) -> (i32, i32) {
    %c0_i32 = arith.constant 0 : i32
    %c0_i32_0 = arith.constant 0 : i32
    return %arg0, %c0_i32 : i32, i32
  }
  func.func @transform_2(%arg0: i32) -> (i32, i32) {
    %c0_i32 = arith.constant 0 : i32
    %c0_i32_0 = arith.constant 0 : i32
    %c0_i32_1 = arith.constant 0 : i32
    return %c0_i32, %c0_i32_0 : i32, i32
  }
  func.func @transform_3(%arg0: i32) -> (i32, i32) {
    %c0_i32 = arith.constant 0 : i32
    %c0_i32_0 = arith.constant 0 : i32
    %c0_i32_1 = arith.constant 0 : i32
    return %c0_i32, %c0_i32_0 : i32, i32
  }
  func.func @transform_4(%arg0: i32) -> (i32, i32) {
    %c0_i32 = arith.constant 0 : i32
    %c0_i32_0 = arith.constant 0 : i32
    %c0_i32_1 = arith.constant 0 : i32
    return %c0_i32, %c0_i32_0 : i32, i32
  }
  func.func @transform_5(%arg0: i32) -> (i32, i32) {
    %c0_i32 = arith.constant 0 : i32
    %c0_i32_0 = arith.constant 0 : i32
    %c0_i32_1 = arith.constant 0 : i32
    return %c0_i32, %c0_i32_0 : i32, i32
  }
  func.func @transform_6(%arg0: i32) -> (i32, i32) {
    %c0_i32 = arith.constant 0 : i32
    %c0_i32_0 = arith.constant 0 : i32
    return %arg0, %c0_i32 : i32, i32
  }
}

module attributes {stable_mosaic.version = 11 : i64} {
  func.func @_ffn_kernel(%arg0: i32, %arg1: i32, %arg2: memref<16x32xf32, #tpu.memory_space<vmem>>, %arg3: memref<32x512xf32, #tpu.memory_space<vmem>>, %arg4: memref<1x512xf32, #tpu.memory_space<vmem>>, %arg5: memref<512x32xf32, #tpu.memory_space<vmem>>, %arg6: memref<1x32xf32, #tpu.memory_space<vmem>>, %arg7: memref<1x32xf32, #tpu.memory_space<vmem>>, %arg8: memref<1x32xf32, #tpu.memory_space<vmem>>, %arg9: memref<16x32xf32, #tpu.memory_space<vmem>>, %arg10: memref<16x32xf32, #tpu.memory_space<vmem>>) attributes {dimension_semantics = [#tpu.dimension_semantics<parallel>, #tpu.dimension_semantics<arbitrary>], iteration_bounds = array<i64: 1, 4>, scalar_prefetch = 0 : i64, scratch_operands = 1 : i64, tpu.core_type = #tpu.core_type<tc>, window_params = [{transform_indices = @transform_0, window_bounds = array<i64: 16, 32>}, {transform_indices = @transform_1, window_bounds = array<i64: 32, 512>}, {transform_indices = @transform_2, window_bounds = array<i64: 1, 512>}, {transform_indices = @transform_3, window_bounds = array<i64: 512, 32>}, {pipeline_mode = #tpu.pipeline_mode<synchronous>, transform_indices = @transform_4, window_bounds = array<i64: 1, 32>}, {pipeline_mode = #tpu.pipeline_mode<synchronous>, transform_indices = @transform_5, window_bounds = array<i64: 1, 32>}, {pipeline_mode = #tpu.pipeline_mode<synchronous>, transform_indices = @transform_6, window_bounds = array<i64: 1, 32>}, {transform_indices = @transform_7, window_bounds = array<i64: 16, 32>}]} {
    %c0_i32 = arith.constant 0 : i32
    %0 = arith.cmpi eq, %arg1, %c0_i32 : i32
    %1 = arith.extui %0 : i1 to i32
    %c0_i32_0 = arith.constant 0 : i32
    %2 = arith.cmpi ne, %1, %c0_i32_0 : i32
    scf.if %2 {
      %cst_15 = arith.constant 0.000000e+00 : f32
      %19 = vector.broadcast %cst_15 : f32 to vector<16x32xf32>
      %c0_16 = arith.constant 0 : index
      %c0_17 = arith.constant 0 : index
      %20 = vector.load %arg10[%c0_16, %c0_17] : memref<16x32xf32, #tpu.memory_space<vmem>>, vector<16x32xf32>
      tpu.vector_store %arg10[%c0_16, %c0_17], %19 {strides = array<i32>} : memref<16x32xf32, #tpu.memory_space<vmem>>, vector<16x32xf32>,
    } else {
    }
    %c0 = arith.constant 0 : index
    %c0_1 = arith.constant 0 : index
    %3 = vector.load %arg2[%c0, %c0_1] : memref<16x32xf32, #tpu.memory_space<vmem>>, vector<16x32xf32>
    %c0_2 = arith.constant 0 : index
    %c0_3 = arith.constant 0 : index
    %4 = vector.load %arg3[%c0_2, %c0_3] : memref<32x512xf32, #tpu.memory_space<vmem>>, vector<32x512xf32>
    %cst = arith.constant dense<0.000000e+00> : vector<16x512xf32>
    %5 = tpu.matmul %3, %4, %cst {dimension_numbers = #tpu.dot_dimension_numbers<[1], [0], [0], [1], [0, 0, 1, 1], [], []>} : vector<16x32xf32>, vector<32x512xf32>, vector<16x512xf32> -> vector<16x512xf32>
    %c0_4 = arith.constant 0 : index
    %c0_5 = arith.constant 0 : index
    %6 = vector.load %arg4[%c0_4, %c0_5] : memref<1x512xf32, #tpu.memory_space<vmem>>, vector<1x512xf32>
    %7 = vector.broadcast %6 : vector<1x512xf32> to vector<16x512xf32>
    %8 = arith.addf %5, %7 : vector<16x512xf32>
    %cst_6 = arith.constant 0.000000e+00 : f32
    %9 = vector.broadcast %cst_6 : f32 to vector<16x512xf32>
    %10 = arith.maximumf %8, %9 : vector<16x512xf32>
    %c0_7 = arith.constant 0 : index
    %c0_8 = arith.constant 0 : index
    %11 = vector.load %arg10[%c0_7, %c0_8] : memref<16x32xf32, #tpu.memory_space<vmem>>, vector<16x32xf32>
    %c0_9 = arith.constant 0 : index
    %c0_10 = arith.constant 0 : index
    %12 = vector.load %arg5[%c0_9, %c0_10] : memref<512x32xf32, #tpu.memory_space<vmem>>, vector<512x32xf32>
    %cst_11 = arith.constant dense<0.000000e+00> : vector<16x32xf32>
    %13 = tpu.matmul %10, %12, %cst_11 {dimension_numbers = #tpu.dot_dimension_numbers<[1], [0], [0], [1], [0, 0, 1, 1], [], []>} : vector<16x512xf32>, vector<512x32xf32>, vector<16x32xf32> -> vector<16x32xf32>
    %14 = arith.addf %11, %13 : vector<16x32xf32>
    %c0_12 = arith.constant 0 : index
    %c0_13 = arith.constant 0 : index
    %15 = vector.load %arg10[%c0_12, %c0_13] : memref<16x32xf32, #tpu.memory_space<vmem>>, vector<16x32xf32>
    tpu.vector_store %arg10[%c0_12, %c0_13], %14 {strides = array<i32>} : memref<16x32xf32, #tpu.memory_space<vmem>>, vector<16x32xf32>,
    %c3_i32 = arith.constant 3 : i32
    %16 = arith.cmpi eq, %arg1, %c3_i32 : i32
    %17 = arith.extui %16 : i1 to i32
    %c0_i32_14 = arith.constant 0 : i32
    %18 = arith.cmpi ne, %17, %c0_i32_14 : i32
    scf.if %18 {
      %c0_15 = arith.constant 0 : index
      %c0_16 = arith.constant 0 : index
      %19 = vector.load %arg10[%c0_15, %c0_16] : memref<16x32xf32, #tpu.memory_space<vmem>>, vector<16x32xf32>
      %c0_17 = arith.constant 0 : index
      %c0_18 = arith.constant 0 : index
      %20 = vector.load %arg6[%c0_17, %c0_18] : memref<1x32xf32, #tpu.memory_space<vmem>>, vector<1x32xf32>
      %21 = vector.broadcast %20 : vector<1x32xf32> to vector<16x32xf32>
      %22 = arith.addf %19, %21 : vector<16x32xf32>
      %c0_19 = arith.constant 0 : index
      %c0_20 = arith.constant 0 : index
      %23 = vector.load %arg2[%c0_19, %c0_20] : memref<16x32xf32, #tpu.memory_space<vmem>>, vector<16x32xf32>
      %24 = arith.addf %22, %23 : vector<16x32xf32>
      %cst_21 = arith.constant dense<0.000000e+00> : vector<16xf32>
      %25 = vector.multi_reduction <add>, %24, %cst_21 [1] : vector<16x32xf32> to vector<16xf32>
      %26 = vector.shape_cast %25 : vector<16xf32> to vector<16x1xf32>
      %cst_22 = arith.constant 3.200000e+01 : f32
      %27 = vector.broadcast %cst_22 : f32 to vector<16x1xf32>
      %28 = arith.divf %26, %27 : vector<16x1xf32>
      %29 = vector.broadcast %28 : vector<16x1xf32> to vector<16x32xf32>
      %30 = arith.subf %24, %29 : vector<16x32xf32>
      %31 = arith.mulf %30, %30 : vector<16x32xf32>
      %cst_23 = arith.constant dense<0.000000e+00> : vector<16xf32>
      %32 = vector.multi_reduction <add>, %31, %cst_23 [1] : vector<16x32xf32> to vector<16xf32>
      %33 = vector.shape_cast %32 : vector<16xf32> to vector<16x1xf32>
      %cst_24 = arith.constant 3.200000e+01 : f32
      %34 = vector.broadcast %cst_24 : f32 to vector<16x1xf32>
      %35 = arith.divf %33, %34 : vector<16x1xf32>
      %cst_25 = arith.constant 9.99999974E-6 : f32
      %36 = vector.broadcast %cst_25 : f32 to vector<16x1xf32>
      %37 = arith.addf %35, %36 : vector<16x1xf32>
      %38 = math.rsqrt %37 : vector<16x1xf32>
      %39 = vector.broadcast %28 : vector<16x1xf32> to vector<16x32xf32>
      %40 = arith.subf %24, %39 : vector<16x32xf32>
      %41 = vector.broadcast %38 : vector<16x1xf32> to vector<16x32xf32>
      %42 = arith.mulf %40, %41 : vector<16x32xf32>
      %c0_26 = arith.constant 0 : index
      %c0_27 = arith.constant 0 : index
      %43 = vector.load %arg7[%c0_26, %c0_27] : memref<1x32xf32, #tpu.memory_space<vmem>>, vector<1x32xf32>
      %44 = vector.broadcast %43 : vector<1x32xf32> to vector<16x32xf32>
      %45 = arith.mulf %42, %44 : vector<16x32xf32>
      %c0_28 = arith.constant 0 : index
      %c0_29 = arith.constant 0 : index
      %46 = vector.load %arg8[%c0_28, %c0_29] : memref<1x32xf32, #tpu.memory_space<vmem>>, vector<1x32xf32>
      %47 = vector.broadcast %46 : vector<1x32xf32> to vector<16x32xf32>
      %48 = arith.addf %45, %47 : vector<16x32xf32>
      %c0_30 = arith.constant 0 : index
      %c0_31 = arith.constant 0 : index
      %49 = vector.load %arg9[%c0_30, %c0_31] : memref<16x32xf32, #tpu.memory_space<vmem>>, vector<16x32xf32>
      tpu.vector_store %arg9[%c0_30, %c0_31], %48 {strides = array<i32>} : memref<16x32xf32, #tpu.memory_space<vmem>>, vector<16x32xf32>,
    } else {
    }
    return
  }
  func.func @transform_0(%arg0: i32, %arg1: i32) -> (i32, i32) {
    %c0_i32 = arith.constant 0 : i32
    %c0_i32_0 = arith.constant 0 : i32
    return %arg0, %c0_i32 : i32, i32
  }
  func.func @transform_1(%arg0: i32, %arg1: i32) -> (i32, i32) {
    %c0_i32 = arith.constant 0 : i32
    %c0_i32_0 = arith.constant 0 : i32
    return %c0_i32, %arg1 : i32, i32
  }
  func.func @transform_2(%arg0: i32, %arg1: i32) -> (i32, i32) {
    %c0_i32 = arith.constant 0 : i32
    %c0_i32_0 = arith.constant 0 : i32
    return %c0_i32, %arg1 : i32, i32
  }
  func.func @transform_3(%arg0: i32, %arg1: i32) -> (i32, i32) {
    %c0_i32 = arith.constant 0 : i32
    %c0_i32_0 = arith.constant 0 : i32
    return %arg1, %c0_i32 : i32, i32
  }
  func.func @transform_4(%arg0: i32, %arg1: i32) -> (i32, i32) {
    %c0_i32 = arith.constant 0 : i32
    %c0_i32_0 = arith.constant 0 : i32
    %c0_i32_1 = arith.constant 0 : i32
    return %c0_i32, %c0_i32_0 : i32, i32
  }
  func.func @transform_5(%arg0: i32, %arg1: i32) -> (i32, i32) {
    %c0_i32 = arith.constant 0 : i32
    %c0_i32_0 = arith.constant 0 : i32
    %c0_i32_1 = arith.constant 0 : i32
    return %c0_i32, %c0_i32_0 : i32, i32
  }
  func.func @transform_6(%arg0: i32, %arg1: i32) -> (i32, i32) {
    %c0_i32 = arith.constant 0 : i32
    %c0_i32_0 = arith.constant 0 : i32
    %c0_i32_1 = arith.constant 0 : i32
    return %c0_i32, %c0_i32_0 : i32, i32
  }
  func.func @transform_7(%arg0: i32, %arg1: i32) -> (i32, i32) {
    %c0_i32 = arith.constant 0 : i32
    %c0_i32_0 = arith.constant 0 : i32
    return %arg0, %c0_i32 : i32, i32
  }
}

module attributes {stable_mosaic.version = 11 : i64} {
  func.func @_qkv_kernel(%arg0: i32, %arg1: memref<16x32xf32, #tpu.memory_space<vmem>>, %arg2: memref<32x32xf32, #tpu.memory_space<vmem>>, %arg3: memref<32x32xf32, #tpu.memory_space<vmem>>, %arg4: memref<32x32xf32, #tpu.memory_space<vmem>>, %arg5: memref<1x32xf32, #tpu.memory_space<vmem>>, %arg6: memref<1x32xf32, #tpu.memory_space<vmem>>, %arg7: memref<1x32xf32, #tpu.memory_space<vmem>>, %arg8: memref<16x32xf32, #tpu.memory_space<vmem>>, %arg9: memref<16x32xf32, #tpu.memory_space<vmem>>, %arg10: memref<16x32xf32, #tpu.memory_space<vmem>>) attributes {dimension_semantics = [#tpu.dimension_semantics<parallel>], iteration_bounds = array<i64: 1>, scalar_prefetch = 0 : i64, scratch_operands = 0 : i64, tpu.core_type = #tpu.core_type<tc>, window_params = [{transform_indices = @transform_0, window_bounds = array<i64: 16, 32>}, {pipeline_mode = #tpu.pipeline_mode<synchronous>, transform_indices = @transform_1, window_bounds = array<i64: 32, 32>}, {pipeline_mode = #tpu.pipeline_mode<synchronous>, transform_indices = @transform_2, window_bounds = array<i64: 32, 32>}, {pipeline_mode = #tpu.pipeline_mode<synchronous>, transform_indices = @transform_3, window_bounds = array<i64: 32, 32>}, {pipeline_mode = #tpu.pipeline_mode<synchronous>, transform_indices = @transform_4, window_bounds = array<i64: 1, 32>}, {pipeline_mode = #tpu.pipeline_mode<synchronous>, transform_indices = @transform_5, window_bounds = array<i64: 1, 32>}, {pipeline_mode = #tpu.pipeline_mode<synchronous>, transform_indices = @transform_6, window_bounds = array<i64: 1, 32>}, {transform_indices = @transform_7, window_bounds = array<i64: 16, 32>}, {transform_indices = @transform_8, window_bounds = array<i64: 16, 32>}, {transform_indices = @transform_9, window_bounds = array<i64: 16, 32>}]} {
    %c0 = arith.constant 0 : index
    %c0_0 = arith.constant 0 : index
    %0 = vector.load %arg1[%c0, %c0_0] : memref<16x32xf32, #tpu.memory_space<vmem>>, vector<16x32xf32>
    %c0_1 = arith.constant 0 : index
    %c0_2 = arith.constant 0 : index
    %1 = vector.load %arg2[%c0_1, %c0_2] : memref<32x32xf32, #tpu.memory_space<vmem>>, vector<32x32xf32>
    %cst = arith.constant dense<0.000000e+00> : vector<16x32xf32>
    %2 = tpu.matmul %0, %1, %cst {dimension_numbers = #tpu.dot_dimension_numbers<[1], [0], [0], [1], [0, 0, 1, 1], [], []>} : vector<16x32xf32>, vector<32x32xf32>, vector<16x32xf32> -> vector<16x32xf32>
    %c0_3 = arith.constant 0 : index
    %c0_4 = arith.constant 0 : index
    %3 = vector.load %arg5[%c0_3, %c0_4] : memref<1x32xf32, #tpu.memory_space<vmem>>, vector<1x32xf32>
    %4 = vector.broadcast %3 : vector<1x32xf32> to vector<16x32xf32>
    %5 = arith.addf %2, %4 : vector<16x32xf32>
    %c0_5 = arith.constant 0 : index
    %c0_6 = arith.constant 0 : index
    %6 = vector.load %arg8[%c0_5, %c0_6] : memref<16x32xf32, #tpu.memory_space<vmem>>, vector<16x32xf32>
    tpu.vector_store %arg8[%c0_5, %c0_6], %5 {strides = array<i32>} : memref<16x32xf32, #tpu.memory_space<vmem>>, vector<16x32xf32>,
    %c0_7 = arith.constant 0 : index
    %c0_8 = arith.constant 0 : index
    %7 = vector.load %arg3[%c0_7, %c0_8] : memref<32x32xf32, #tpu.memory_space<vmem>>, vector<32x32xf32>
    %cst_9 = arith.constant dense<0.000000e+00> : vector<16x32xf32>
    %8 = tpu.matmul %0, %7, %cst_9 {dimension_numbers = #tpu.dot_dimension_numbers<[1], [0], [0], [1], [0, 0, 1, 1], [], []>} : vector<16x32xf32>, vector<32x32xf32>, vector<16x32xf32> -> vector<16x32xf32>
    %c0_10 = arith.constant 0 : index
    %c0_11 = arith.constant 0 : index
    %9 = vector.load %arg6[%c0_10, %c0_11] : memref<1x32xf32, #tpu.memory_space<vmem>>, vector<1x32xf32>
    %10 = vector.broadcast %9 : vector<1x32xf32> to vector<16x32xf32>
    %11 = arith.addf %8, %10 : vector<16x32xf32>
    %c0_12 = arith.constant 0 : index
    %c0_13 = arith.constant 0 : index
    %12 = vector.load %arg9[%c0_12, %c0_13] : memref<16x32xf32, #tpu.memory_space<vmem>>, vector<16x32xf32>
    tpu.vector_store %arg9[%c0_12, %c0_13], %11 {strides = array<i32>} : memref<16x32xf32, #tpu.memory_space<vmem>>, vector<16x32xf32>,
    %c0_14 = arith.constant 0 : index
    %c0_15 = arith.constant 0 : index
    %13 = vector.load %arg4[%c0_14, %c0_15] : memref<32x32xf32, #tpu.memory_space<vmem>>, vector<32x32xf32>
    %cst_16 = arith.constant dense<0.000000e+00> : vector<16x32xf32>
    %14 = tpu.matmul %0, %13, %cst_16 {dimension_numbers = #tpu.dot_dimension_numbers<[1], [0], [0], [1], [0, 0, 1, 1], [], []>} : vector<16x32xf32>, vector<32x32xf32>, vector<16x32xf32> -> vector<16x32xf32>
    %c0_17 = arith.constant 0 : index
    %c0_18 = arith.constant 0 : index
    %15 = vector.load %arg7[%c0_17, %c0_18] : memref<1x32xf32, #tpu.memory_space<vmem>>, vector<1x32xf32>
    %16 = vector.broadcast %15 : vector<1x32xf32> to vector<16x32xf32>
    %17 = arith.addf %14, %16 : vector<16x32xf32>
    %c0_19 = arith.constant 0 : index
    %c0_20 = arith.constant 0 : index
    %18 = vector.load %arg10[%c0_19, %c0_20] : memref<16x32xf32, #tpu.memory_space<vmem>>, vector<16x32xf32>
    tpu.vector_store %arg10[%c0_19, %c0_20], %17 {strides = array<i32>} : memref<16x32xf32, #tpu.memory_space<vmem>>, vector<16x32xf32>,
    return
  }
  func.func @transform_0(%arg0: i32) -> (i32, i32) {
    %c0_i32 = arith.constant 0 : i32
    %c0_i32_0 = arith.constant 0 : i32
    return %arg0, %c0_i32 : i32, i32
  }
  func.func @transform_1(%arg0: i32) -> (i32, i32) {
    %c0_i32 = arith.constant 0 : i32
    %c0_i32_0 = arith.constant 0 : i32
    %c0_i32_1 = arith.constant 0 : i32
    return %c0_i32, %c0_i32_0 : i32, i32
  }
  func.func @transform_2(%arg0: i32) -> (i32, i32) {
    %c0_i32 = arith.constant 0 : i32
    %c0_i32_0 = arith.constant 0 : i32
    %c0_i32_1 = arith.constant 0 : i32
    return %c0_i32, %c0_i32_0 : i32, i32
  }
  func.func @transform_3(%arg0: i32) -> (i32, i32) {
    %c0_i32 = arith.constant 0 : i32
    %c0_i32_0 = arith.constant 0 : i32
    %c0_i32_1 = arith.constant 0 : i32
    return %c0_i32, %c0_i32_0 : i32, i32
  }
  func.func @transform_4(%arg0: i32) -> (i32, i32) {
    %c0_i32 = arith.constant 0 : i32
    %c0_i32_0 = arith.constant 0 : i32
    %c0_i32_1 = arith.constant 0 : i32
    return %c0_i32, %c0_i32_0 : i32, i32
  }
  func.func @transform_5(%arg0: i32) -> (i32, i32) {
    %c0_i32 = arith.constant 0 : i32
    %c0_i32_0 = arith.constant 0 : i32
    %c0_i32_1 = arith.constant 0 : i32
    return %c0_i32, %c0_i32_0 : i32, i32
  }
  func.func @transform_6(%arg0: i32) -> (i32, i32) {
    %c0_i32 = arith.constant 0 : i32
    %c0_i32_0 = arith.constant 0 : i32
    %c0_i32_1 = arith.constant 0 : i32
    return %c0_i32, %c0_i32_0 : i32, i32
  }
  func.func @transform_7(%arg0: i32) -> (i32, i32) {
    %c0_i32 = arith.constant 0 : i32
    %c0_i32_0 = arith.constant 0 : i32
    return %arg0, %c0_i32 : i32, i32
  }
  func.func @transform_8(%arg0: i32) -> (i32, i32) {
    %c0_i32 = arith.constant 0 : i32
    %c0_i32_0 = arith.constant 0 : i32
    return %arg0, %c0_i32 : i32, i32
  }
  func.func @transform_9(%arg0: i32) -> (i32, i32) {
    %c0_i32 = arith.constant 0 : i32
    %c0_i32_0 = arith.constant 0 : i32
    return %arg0, %c0_i32 : i32, i32
  }
}

module attributes {stable_mosaic.version = 11 : i64} {
  func.func @_outproj_ln_kernel(%arg0: i32, %arg1: memref<16x32xf32, #tpu.memory_space<vmem>>, %arg2: memref<16x32xf32, #tpu.memory_space<vmem>>, %arg3: memref<32x32xf32, #tpu.memory_space<vmem>>, %arg4: memref<1x32xf32, #tpu.memory_space<vmem>>, %arg5: memref<1x32xf32, #tpu.memory_space<vmem>>, %arg6: memref<1x32xf32, #tpu.memory_space<vmem>>, %arg7: memref<16x32xf32, #tpu.memory_space<vmem>>) attributes {dimension_semantics = [#tpu.dimension_semantics<parallel>], iteration_bounds = array<i64: 1>, scalar_prefetch = 0 : i64, scratch_operands = 0 : i64, tpu.core_type = #tpu.core_type<tc>, window_params = [{transform_indices = @transform_0, window_bounds = array<i64: 16, 32>}, {transform_indices = @transform_1, window_bounds = array<i64: 16, 32>}, {pipeline_mode = #tpu.pipeline_mode<synchronous>, transform_indices = @transform_2, window_bounds = array<i64: 32, 32>}, {pipeline_mode = #tpu.pipeline_mode<synchronous>, transform_indices = @transform_3, window_bounds = array<i64: 1, 32>}, {pipeline_mode = #tpu.pipeline_mode<synchronous>, transform_indices = @transform_4, window_bounds = array<i64: 1, 32>}, {pipeline_mode = #tpu.pipeline_mode<synchronous>, transform_indices = @transform_5, window_bounds = array<i64: 1, 32>}, {transform_indices = @transform_6, window_bounds = array<i64: 16, 32>}]} {
    %c0 = arith.constant 0 : index
    %c0_0 = arith.constant 0 : index
    %0 = vector.load %arg1[%c0, %c0_0] : memref<16x32xf32, #tpu.memory_space<vmem>>, vector<16x32xf32>
    %c0_1 = arith.constant 0 : index
    %c0_2 = arith.constant 0 : index
    %1 = vector.load %arg3[%c0_1, %c0_2] : memref<32x32xf32, #tpu.memory_space<vmem>>, vector<32x32xf32>
    %cst = arith.constant dense<0.000000e+00> : vector<16x32xf32>
    %2 = tpu.matmul %0, %1, %cst {dimension_numbers = #tpu.dot_dimension_numbers<[1], [0], [0], [1], [0, 0, 1, 1], [], []>} : vector<16x32xf32>, vector<32x32xf32>, vector<16x32xf32> -> vector<16x32xf32>
    %c0_3 = arith.constant 0 : index
    %c0_4 = arith.constant 0 : index
    %3 = vector.load %arg4[%c0_3, %c0_4] : memref<1x32xf32, #tpu.memory_space<vmem>>, vector<1x32xf32>
    %4 = vector.broadcast %3 : vector<1x32xf32> to vector<16x32xf32>
    %5 = arith.addf %2, %4 : vector<16x32xf32>
    %c0_5 = arith.constant 0 : index
    %c0_6 = arith.constant 0 : index
    %6 = vector.load %arg2[%c0_5, %c0_6] : memref<16x32xf32, #tpu.memory_space<vmem>>, vector<16x32xf32>
    %7 = arith.addf %5, %6 : vector<16x32xf32>
    %cst_7 = arith.constant dense<0.000000e+00> : vector<16xf32>
    %8 = vector.multi_reduction <add>, %7, %cst_7 [1] : vector<16x32xf32> to vector<16xf32>
    %9 = vector.shape_cast %8 : vector<16xf32> to vector<16x1xf32>
    %cst_8 = arith.constant 3.200000e+01 : f32
    %10 = vector.broadcast %cst_8 : f32 to vector<16x1xf32>
    %11 = arith.divf %9, %10 : vector<16x1xf32>
    %12 = vector.broadcast %11 : vector<16x1xf32> to vector<16x32xf32>
    %13 = arith.subf %7, %12 : vector<16x32xf32>
    %14 = arith.mulf %13, %13 : vector<16x32xf32>
    %cst_9 = arith.constant dense<0.000000e+00> : vector<16xf32>
    %15 = vector.multi_reduction <add>, %14, %cst_9 [1] : vector<16x32xf32> to vector<16xf32>
    %16 = vector.shape_cast %15 : vector<16xf32> to vector<16x1xf32>
    %cst_10 = arith.constant 3.200000e+01 : f32
    %17 = vector.broadcast %cst_10 : f32 to vector<16x1xf32>
    %18 = arith.divf %16, %17 : vector<16x1xf32>
    %cst_11 = arith.constant 9.99999974E-6 : f32
    %19 = vector.broadcast %cst_11 : f32 to vector<16x1xf32>
    %20 = arith.addf %18, %19 : vector<16x1xf32>
    %21 = math.rsqrt %20 : vector<16x1xf32>
    %22 = vector.broadcast %11 : vector<16x1xf32> to vector<16x32xf32>
    %23 = arith.subf %7, %22 : vector<16x32xf32>
    %24 = vector.broadcast %21 : vector<16x1xf32> to vector<16x32xf32>
    %25 = arith.mulf %23, %24 : vector<16x32xf32>
    %c0_12 = arith.constant 0 : index
    %c0_13 = arith.constant 0 : index
    %26 = vector.load %arg5[%c0_12, %c0_13] : memref<1x32xf32, #tpu.memory_space<vmem>>, vector<1x32xf32>
    %27 = vector.broadcast %26 : vector<1x32xf32> to vector<16x32xf32>
    %28 = arith.mulf %25, %27 : vector<16x32xf32>
    %c0_14 = arith.constant 0 : index
    %c0_15 = arith.constant 0 : index
    %29 = vector.load %arg6[%c0_14, %c0_15] : memref<1x32xf32, #tpu.memory_space<vmem>>, vector<1x32xf32>
    %30 = vector.broadcast %29 : vector<1x32xf32> to vector<16x32xf32>
    %31 = arith.addf %28, %30 : vector<16x32xf32>
    %c0_16 = arith.constant 0 : index
    %c0_17 = arith.constant 0 : index
    %32 = vector.load %arg7[%c0_16, %c0_17] : memref<16x32xf32, #tpu.memory_space<vmem>>, vector<16x32xf32>
    tpu.vector_store %arg7[%c0_16, %c0_17], %31 {strides = array<i32>} : memref<16x32xf32, #tpu.memory_space<vmem>>, vector<16x32xf32>,
    return
  }
  func.func @transform_0(%arg0: i32) -> (i32, i32) {
    %c0_i32 = arith.constant 0 : i32
    %c0_i32_0 = arith.constant 0 : i32
    return %arg0, %c0_i32 : i32, i32
  }
  func.func @transform_1(%arg0: i32) -> (i32, i32) {
    %c0_i32 = arith.constant 0 : i32
    %c0_i32_0 = arith.constant 0 : i32
    return %arg0, %c0_i32 : i32, i32
  }
  func.func @transform_2(%arg0: i32) -> (i32, i32) {
    %c0_i32 = arith.constant 0 : i32
    %c0_i32_0 = arith.constant 0 : i32
    %c0_i32_1 = arith.constant 0 : i32
    return %c0_i32, %c0_i32_0 : i32, i32
  }
  func.func @transform_3(%arg0: i32) -> (i32, i32) {
    %c0_i32 = arith.constant 0 : i32
    %c0_i32_0 = arith.constant 0 : i32
    %c0_i32_1 = arith.constant 0 : i32
    return %c0_i32, %c0_i32_0 : i32, i32
  }
  func.func @transform_4(%arg0: i32) -> (i32, i32) {
    %c0_i32 = arith.constant 0 : i32
    %c0_i32_0 = arith.constant 0 : i32
    %c0_i32_1 = arith.constant 0 : i32
    return %c0_i32, %c0_i32_0 : i32, i32
  }
  func.func @transform_5(%arg0: i32) -> (i32, i32) {
    %c0_i32 = arith.constant 0 : i32
    %c0_i32_0 = arith.constant 0 : i32
    %c0_i32_1 = arith.constant 0 : i32
    return %c0_i32, %c0_i32_0 : i32, i32
  }
  func.func @transform_6(%arg0: i32) -> (i32, i32) {
    %c0_i32 = arith.constant 0 : i32
    %c0_i32_0 = arith.constant 0 : i32
    return %arg0, %c0_i32 : i32, i32
  }
}

module attributes {stable_mosaic.version = 11 : i64} {
  func.func @_matmul_kernel(%arg0: i32, %arg1: i32, %arg2: i32, %arg3: memref<16x32xf32, #tpu.memory_space<vmem>>, %arg4: memref<32x16xf32, #tpu.memory_space<vmem>>, %arg5: memref<1x16xf32, #tpu.memory_space<vmem>>, %arg6: memref<16x16xf32, #tpu.memory_space<vmem>>, %arg7: memref<16x16xf32, #tpu.memory_space<vmem>>) attributes {dimension_semantics = [#tpu.dimension_semantics<parallel>, #tpu.dimension_semantics<parallel>, #tpu.dimension_semantics<arbitrary>], iteration_bounds = array<i64: 1, 1, 1>, scalar_prefetch = 0 : i64, scratch_operands = 1 : i64, tpu.core_type = #tpu.core_type<tc>, window_params = [{transform_indices = @transform_0, window_bounds = array<i64: 16, 32>}, {transform_indices = @transform_1, window_bounds = array<i64: 32, 16>}, {transform_indices = @transform_2, window_bounds = array<i64: 1, 16>}, {transform_indices = @transform_3, window_bounds = array<i64: 16, 16>}]} {
    %c0_i32 = arith.constant 0 : i32
    %0 = arith.cmpi eq, %arg2, %c0_i32 : i32
    %1 = arith.extui %0 : i1 to i32
    %c0_i32_0 = arith.constant 0 : i32
    %2 = arith.cmpi ne, %1, %c0_i32_0 : i32
    scf.if %2 {
      %cst_10 = arith.constant 0.000000e+00 : f32
      %12 = vector.broadcast %cst_10 : f32 to vector<16x16xf32>
      %c0_11 = arith.constant 0 : index
      %c0_12 = arith.constant 0 : index
      %13 = vector.load %arg7[%c0_11, %c0_12] : memref<16x16xf32, #tpu.memory_space<vmem>>, vector<16x16xf32>
      tpu.vector_store %arg7[%c0_11, %c0_12], %12 {strides = array<i32>} : memref<16x16xf32, #tpu.memory_space<vmem>>, vector<16x16xf32>,
    } else {
    }
    %c0 = arith.constant 0 : index
    %c0_1 = arith.constant 0 : index
    %3 = vector.load %arg7[%c0, %c0_1] : memref<16x16xf32, #tpu.memory_space<vmem>>, vector<16x16xf32>
    %c0_2 = arith.constant 0 : index
    %c0_3 = arith.constant 0 : index
    %4 = vector.load %arg3[%c0_2, %c0_3] : memref<16x32xf32, #tpu.memory_space<vmem>>, vector<16x32xf32>
    %c0_4 = arith.constant 0 : index
    %c0_5 = arith.constant 0 : index
    %5 = vector.load %arg4[%c0_4, %c0_5] : memref<32x16xf32, #tpu.memory_space<vmem>>, vector<32x16xf32>
    %cst = arith.constant dense<0.000000e+00> : vector<16x16xf32>
    %6 = tpu.matmul %4, %5, %cst {dimension_numbers = #tpu.dot_dimension_numbers<[1], [0], [0], [1], [0, 0, 1, 1], [], []>} : vector<16x32xf32>, vector<32x16xf32>, vector<16x16xf32> -> vector<16x16xf32>
    %7 = arith.addf %3, %6 : vector<16x16xf32>
    %c0_6 = arith.constant 0 : index
    %c0_7 = arith.constant 0 : index
    %8 = vector.load %arg7[%c0_6, %c0_7] : memref<16x16xf32, #tpu.memory_space<vmem>>, vector<16x16xf32>
    tpu.vector_store %arg7[%c0_6, %c0_7], %7 {strides = array<i32>} : memref<16x16xf32, #tpu.memory_space<vmem>>, vector<16x16xf32>,
    %c0_i32_8 = arith.constant 0 : i32
    %9 = arith.cmpi eq, %arg2, %c0_i32_8 : i32
    %10 = arith.extui %9 : i1 to i32
    %c0_i32_9 = arith.constant 0 : i32
    %11 = arith.cmpi ne, %10, %c0_i32_9 : i32
    scf.if %11 {
      %c0_10 = arith.constant 0 : index
      %c0_11 = arith.constant 0 : index
      %12 = vector.load %arg7[%c0_10, %c0_11] : memref<16x16xf32, #tpu.memory_space<vmem>>, vector<16x16xf32>
      %c0_12 = arith.constant 0 : index
      %c0_13 = arith.constant 0 : index
      %13 = vector.load %arg5[%c0_12, %c0_13] : memref<1x16xf32, #tpu.memory_space<vmem>>, vector<1x16xf32>
      %14 = vector.broadcast %13 : vector<1x16xf32> to vector<16x16xf32>
      %15 = arith.addf %12, %14 : vector<16x16xf32>
      %c0_14 = arith.constant 0 : index
      %c0_15 = arith.constant 0 : index
      %16 = vector.load %arg6[%c0_14, %c0_15] : memref<16x16xf32, #tpu.memory_space<vmem>>, vector<16x16xf32>
      tpu.vector_store %arg6[%c0_14, %c0_15], %15 {strides = array<i32>} : memref<16x16xf32, #tpu.memory_space<vmem>>, vector<16x16xf32>,
    } else {
    }
    return
  }
  func.func @transform_0(%arg0: i32, %arg1: i32, %arg2: i32) -> (i32, i32) {
    %c0_i32 = arith.constant 0 : i32
    return %arg0, %arg2 : i32, i32
  }
  func.func @transform_1(%arg0: i32, %arg1: i32, %arg2: i32) -> (i32, i32) {
    %c0_i32 = arith.constant 0 : i32
    return %arg2, %arg1 : i32, i32
  }
  func.func @transform_2(%arg0: i32, %arg1: i32, %arg2: i32) -> (i32, i32) {
    %c0_i32 = arith.constant 0 : i32
    %c0_i32_0 = arith.constant 0 : i32
    return %c0_i32, %arg1 : i32, i32
  }
  func.func @transform_3(%arg0: i32, %arg1: i32, %arg2: i32) -> (i32, i32) {
    %c0_i32 = arith.constant 0 : i32
    return %arg0, %arg1 : i32, i32
  }
}

</mosaic_0001>

<llo_original>
// kernel: transformer_encoder_forward.10
$region0: #{transformer_encoder_forward.10}
  #allocation0 [shape = 'u32[]', space=smem, size = 0x4, offset = 0x4, fixed_abs, tag = 'smem constant byte address 0x4 - core index']
  #allocation1 [shape = 'u32[144,128]{1,0:T(1,128)}', space=vmem, size = 0x12000, scoped, tag = 'internal scratch']
  %s0 = inlined_call_operand.vmem [shape: f32[2,8,16], index: 0, kind: input, shape index: {}]
  %s1 = inlined_call_operand.hbm [shape: f32[16,32], index: 1, kind: input, shape index: {}]
  %s2 = inlined_call_operand.vmem [shape: f32[1,32], index: 2, kind: input, shape index: {}]
  %s3 = inlined_call_operand.vmem [shape: f32[8,32], index: 3, kind: input, shape index: {}]
  %s4 = inlined_call_operand.vmem [shape: f32[2,8,32], index: 4, kind: output, shape index: {}]
  %s5 = sld [smem:[#allocation0]]
  $region53: #{transformer_encoder_forward.10} parent=0
    _
  %s7 = ssub.s32 1, %s5
  %s8 = scalar_select 0, %s7, %s5
  $region1: #{transformer_encoder_forward.10} parent=0
    #allocation2 [shape = 'u8[8192]{0}', space=vmem, size = 0x2000, scoped, tag = 'input window, operand 1, single buffered']
    #allocation3 [shape = 's32[2]{0}', space=sflag, size = 0x8, scoped, tag = 'scoped memory for transformer_encoder_forward.10']
    %9 = vsyncpa [#allocation3], 0
    loop: start=0, step=1, limit=4
    $region2: #{transformer_encoder_forward.10} parent=1 // loop_pre_header
      _
    $region3: #{transformer_encoder_forward.10} parent=1 // loop_header
      %s11 = sphi 0, %s15
      %p12 = scmp.ge.s32.totalorder %s11, 4
      %s18 = sphi 0, %s30
      %s19 = sphi 0, %s26
      %s20 = sphi 0, %s18
      %s21 = sphi 0, %s19
      %s22 = sphi 0, %s20
      %s23 = sphi 0, %s21
      %s35 = sphi 0, %s37
      %s38 = sphi 0, %s35
      %s39 = sphi 0, %s38
      %s55 = sphi 0, %s39
      %s59 = sphi 0, %s59
      %s61 = sphi 0, %s59
      %s62 = sphi 0, %s61
      %s76 = sphi 0, %s62
      %s80 = sphi 0, %s80
      %s82 = sphi 0, %s80
      %s83 = sphi 0, %s82
      %s97 = sphi 0, %s83
      %s103 = sphi 0, %s105
      %s106 = sphi 0, %s103
      %s107 = sphi 0, %s106
      %s123 = sphi 0, %s107
      %s131 = sphi 0, %s133
      %s134 = sphi 0, %s131
      %s135 = sphi 0, %s134
      %s151 = sphi 0, %s135
    $region4: #{transformer_encoder_forward.10} parent=1 // loop_header_branch
      %14 = sbr.rel (%p12) target = $region8
    $region5: #{transformer_encoder_forward.10} parent=1 // loop_body
      %s16 = ssub.s32 %s11, 1
      %s17 = ssub.s32 %s11, 2
      %s24 = sadd.s32 1, %s19
      %p25 = scmp.ge.s32.totalorder %s24, 1
      %s26 = scalar_select %p25, 0, %s24
      %s27 = sadd.s32 1, %s18
      %s28 = scalar_select %p25, %s27, %s18
      %p29 = scmp.ge.s32.totalorder %s28, 2
      %s30 = scalar_select %p29, 0, %s28
      %s31 = ssub.s32 %s18, %s30
      %s32 = ssub.s32 %s19, %s26
      %s33 = sor.u32 %s31, %s32
      %p34 = scmp.eq.s32.totalorder %s33, 0
      %s36 = sadd.s32 %s35, 1
      %s37 = scalar_select %p34, %s35, %s36
      %p40 = pneg %p34
      %p41 = scmp.eq.s32.totalorder %s11, 1
      %p42 = por %p40, %p41
      %p43 = scmp.ne.s32.totalorder %s35, %s38
      %p44 = scmp.eq.s32.totalorder %s11, 0
      %p45 = por %p43, %p44
      %p46 = scmp.ne.s32.totalorder %s35, %s38
      %p47 = scmp.eq.s32.totalorder %s16, 1
      %p48 = por %p46, %p47
      %p49 = scmp.ne.s32.totalorder %s38, %s39
      %p50 = scmp.eq.s32.totalorder %s16, 0
      %p51 = por %p49, %p50
      %p52 = scmp.ne.s32.totalorder %s38, %s39
      %p53 = scmp.eq.s32.totalorder %s17, 1
      %p54 = por %p52, %p53
      %p56 = scmp.ne.s32.totalorder %s39, %s55
      %p57 = scmp.eq.s32.totalorder %s17, 0
      %p58 = por %p56, %p57
      %s60 = sadd.s32 %s59, 1
      %p63 = scmp.eq.s32.totalorder %s11, 1
      %p64 = scmp.ne.s32.totalorder %s59, %s61
      %p65 = scmp.eq.s32.totalorder %s11, 0
      %p66 = por %p64, %p65
      %p67 = scmp.ne.s32.totalorder %s59, %s61
      %p68 = scmp.eq.s32.totalorder %s16, 1
      %p69 = por %p67, %p68
      %p70 = scmp.ne.s32.totalorder %s61, %s62
      %p71 = scmp.eq.s32.totalorder %s16, 0
      %p72 = por %p70, %p71
      %p73 = scmp.ne.s32.totalorder %s61, %s62
      %p74 = scmp.eq.s32.totalorder %s17, 1
      %p75 = por %p73, %p74
      %p77 = scmp.ne.s32.totalorder %s62, %s76
      %p78 = scmp.eq.s32.totalorder %s17, 0
      %p79 = por %p77, %p78
      %s81 = sadd.s32 %s80, 1
      %p84 = scmp.eq.s32.totalorder %s11, 1
      %p85 = scmp.ne.s32.totalorder %s80, %s82
      %p86 = scmp.eq.s32.totalorder %s11, 0
      %p87 = por %p85, %p86
      %p88 = scmp.ne.s32.totalorder %s80, %s82
      %p89 = scmp.eq.s32.totalorder %s16, 1
      %p90 = por %p88, %p89
      %p91 = scmp.ne.s32.totalorder %s82, %s83
      %p92 = scmp.eq.s32.totalorder %s16, 0
      %p93 = por %p91, %p92
      %p94 = scmp.ne.s32.totalorder %s82, %s83
      %p95 = scmp.eq.s32.totalorder %s17, 1
      %p96 = por %p94, %p95
      %p98 = scmp.ne.s32.totalorder %s83, %s97
      %p99 = scmp.eq.s32.totalorder %s17, 0
      %p100 = por %p98, %p99
      %s101 = ssub.s32 %s19, %s26
      %p102 = scmp.eq.s32.totalorder %s101, 0
      %s104 = sadd.s32 %s103, 1
      %s105 = scalar_select %p102, %s103, %s104
      %p108 = pneg %p102
      %p109 = scmp.eq.s32.totalorder %s11, 1
      %p110 = por %p108, %p109
      %p111 = scmp.ne.s32.totalorder %s103, %s106
      %p112 = scmp.eq.s32.totalorder %s11, 0
      %p113 = por %p111, %p112
      %p114 = scmp.ne.s32.totalorder %s103, %s106
      %p115 = scmp.eq.s32.totalorder %s16, 1
      %p116 = por %p114, %p115
      %p117 = scmp.ne.s32.totalorder %s106, %s107
      %p118 = scmp.eq.s32.totalorder %s16, 0
      %p119 = por %p117, %p118
      %p120 = scmp.ne.s32.totalorder %s106, %s107
      %p121 = scmp.eq.s32.totalorder %s17, 1
      %p122 = por %p120, %p121
      %p124 = scmp.ne.s32.totalorder %s107, %s123
      %p125 = scmp.eq.s32.totalorder %s17, 0
      %p126 = por %p124, %p125
      %s127 = ssub.s32 %s18, %s30
      %s128 = ssub.s32 %s19, %s26
      %s129 = sor.u32 %s127, %s128
      %p130 = scmp.eq.s32.totalorder %s129, 0
      %s132 = sadd.s32 %s131, 1
      %s133 = scalar_select %p130, %s131, %s132
      %p136 = pneg %p130
      %p137 = scmp.eq.s32.totalorder %s11, 1
      %p138 = por %p136, %p137
      %p139 = scmp.ne.s32.totalorder %s131, %s134
      %p140 = scmp.eq.s32.totalorder %s11, 0
      %p141 = por %p139, %p140
      %p142 = scmp.ne.s32.totalorder %s131, %s134
      %p143 = scmp.eq.s32.totalorder %s16, 1
      %p144 = por %p142, %p143
      %p145 = scmp.ne.s32.totalorder %s134, %s135
      %p146 = scmp.eq.s32.totalorder %s16, 0
      %p147 = por %p145, %p146
      %p148 = scmp.ne.s32.totalorder %s134, %s135
      %p149 = scmp.eq.s32.totalorder %s17, 1
      %p150 = por %p148, %p149
      %p152 = scmp.ne.s32.totalorder %s135, %s151
      %p153 = scmp.eq.s32.totalorder %s17, 0
      %p154 = por %p152, %p153
      %p155 = scmp.le.s32.totalorder 1, %s11
      %p156 = scmp.lt.s32.totalorder %s11, 3
      %p157 = pnand %p155, %p156
      %p158 = pneg %p157
      // Predicated region
      $region9: #{transformer_encoder_forward.10} parent=5 // pred_check
        _
      $region10: #{transformer_encoder_forward.10} parent=5 // pred_check_branch
        %160 = sbr.rel (%p157) target = $region12
      $region11: #{transformer_encoder_forward.10} parent=5 // pred_region
        %s161 = ssub.s32 %s11, 1
        // Predicated region
        $region13: #{transformer_encoder_forward.10} parent=11 // pred_check
          %p162 = pneg %p72
        $region14: #{transformer_encoder_forward.10} parent=11 // pred_check_branch
          %164 = sbr.rel (%p162) target = $region16
        $region15: #{transformer_encoder_forward.10} parent=11 // pred_region
          %s166 = ssub.s32 256, 256
          %167 = vsyncadd [#allocation3], %s166
          %s168 = sshll.u32 [#allocation2], 4
          %s169 = int_to_ptr.vmem [resolvable:$true] %s168
          %174 = dma.hbm_to_vmem [thread:$0]  %s1, 256, %s169, [#allocation3], 128, 128, 8
        $region16: #{transformer_encoder_forward.10} parent=11 // pred_fallthru
          _
        // Predicated region
        $region17: #{transformer_encoder_forward.10} parent=11 // pred_check
          %p175 = pneg %p93
        $region18: #{transformer_encoder_forward.10} parent=11 // pred_check_branch
          %177 = sbr.rel (%p175) target = $region20
        $region19: #{transformer_encoder_forward.10} parent=11 // pred_region
          _
        $region20: #{transformer_encoder_forward.10} parent=11 // pred_fallthru
          _
        // Predicated region
        $region21: #{transformer_encoder_forward.10} parent=11 // pred_check
          %p178 = pneg %p119
        $region22: #{transformer_encoder_forward.10} parent=11 // pred_check_branch
          %180 = sbr.rel (%p178) target = $region24
        $region23: #{transformer_encoder_forward.10} parent=11 // pred_region
          %p181 = scmp.lt.s32.totalorder %s21, 0
          %s182 = scalar_select %p181, %s21, 0
          %s183 = smul.addr %s182, 8
          %s184 = scalar_lea.vmem %s3, %s183
        $region24: #{transformer_encoder_forward.10} parent=11 // pred_fallthru
          _
      $region12: #{transformer_encoder_forward.10} parent=5 // pred_fallthru
        _
      %p185 = scmp.lt.s32.totalorder %s11, 2
      // Predicated region
      $region25: #{transformer_encoder_forward.10} parent=5 // pred_check
        %p186 = pneg %p185
      $region26: #{transformer_encoder_forward.10} parent=5 // pred_check_branch
        %188 = sbr.rel (%p186) target = $region28
      $region27: #{transformer_encoder_forward.10} parent=5 // pred_region
        // Predicated region
        $region29: #{transformer_encoder_forward.10} parent=27 // pred_check
          %p189 = pneg %p45
        $region30: #{transformer_encoder_forward.10} parent=27 // pred_check_branch
          %191 = sbr.rel (%p189) target = $region32
        $region31: #{transformer_encoder_forward.10} parent=27 // pred_region
          %p192 = scmp.lt.s32.totalorder %s18, 1
          %s193 = scalar_select %p192, %s18, 1
          %p194 = scmp.lt.s32.totalorder %s19, 0
          %s195 = scalar_select %p194, %s19, 0
          %s196 = sadd.s32 %s195, %s193
          %s197 = smul.addr %s196, 8
          %s198 = scalar_lea.vmem %s0, %s197
        $region32: #{transformer_encoder_forward.10} parent=27 // pred_fallthru
          _
      $region28: #{transformer_encoder_forward.10} parent=5 // pred_fallthru
        _
      %p199 = scmp.le.s32.totalorder 1, %s11
      %p200 = scmp.lt.s32.totalorder %s11, 3
      %p201 = pnand %p199, %p200
      %p202 = pneg %p201
      // Predicated region
      $region33: #{transformer_encoder_forward.10} parent=5 // pred_check
        _
      $region34: #{transformer_encoder_forward.10} parent=5 // pred_check_branch
        %204 = sbr.rel (%p201) target = $region36
      $region35: #{transformer_encoder_forward.10} parent=5 // pred_region
        %s205 = ssub.s32 %s11, 1
        // Predicated region
        $region37: #{transformer_encoder_forward.10} parent=35 // pred_check
          %p206 = pneg %p72
        $region38: #{transformer_encoder_forward.10} parent=35 // pred_check_branch
          %208 = sbr.rel (%p206) target = $region40
        $region39: #{transformer_encoder_forward.10} parent=35 // pred_region
          %209 = dma.done [#allocation3], 256
        $region40: #{transformer_encoder_forward.10} parent=35 // pred_fallthru
          _
        %p210 = scmp.lt.s32.totalorder %s20, 1
        %s211 = scalar_select %p210, %s20, 1
        %p212 = scmp.lt.s32.totalorder %s21, 0
        %s213 = scalar_select %p212, %s21, 0
        %s214 = sadd.s32 %s213, %s211
        %s215 = smul.addr %s214, 8
        %s216 = scalar_lea.vmem %s0, %s215
        %p217 = pneg %p51
        %p218 = pneg %p48
        %p219 = pneg %p72
        %p220 = pneg %p69
        %p221 = pneg %p93
        %p222 = pneg %p90
        %p223 = scmp.lt.s32.totalorder %s21, 0
        %s224 = scalar_select %p223, %s21, 0
        %s225 = smul.addr %s224, 8
        %s226 = scalar_lea.vmem %s3, %s225
        %p227 = pneg %p119
        %p228 = pneg %p116
        %p229 = pneg %p147
        %p230 = pneg %p144
        %p231 = scmp.lt.s32.totalorder %s20, 1
        %s232 = scalar_select %p231, %s20, 1
        %p233 = scmp.lt.s32.totalorder %s21, 0
        %s234 = scalar_select %p233, %s21, 0
        %s235 = sadd.s32 %s234, %s232
        %s236 = smul.addr %s235, 8
        %s237 = scalar_lea.vmem %s4, %s236
        %p238 = scmp.lt.s32.totalorder %s20, 1
        %s239 = scalar_select %p238, %s20, 1
        %p240 = scmp.lt.s32.totalorder %s21, 0
        %s241 = scalar_select %p240, %s21, 0
        %s242 = sadd.s32 %s241, %s239
        %s243 = smul.addr %s242, 8
        %s244 = scalar_lea.vmem %s0, %s243
        %p245 = scmp.lt.s32.totalorder %s21, 0
        %s246 = scalar_select %p245, %s21, 0
        %s247 = smul.addr %s246, 8
        %s248 = scalar_lea.vmem %s3, %s247
        %p249 = scmp.lt.s32.totalorder %s20, 1
        %s250 = scalar_select %p249, %s20, 1
        %p251 = scmp.lt.s32.totalorder %s21, 0
        %s252 = scalar_select %p251, %s21, 0
        %s253 = sadd.s32 %s252, %s250
        %s254 = smul.addr %s253, 8
        %s255 = scalar_lea.vmem %s4, %s254
        %v256 = vld [vmem:[%s244] sm:$0xff]
        %v257 = vld [vmem:[#allocation2] sm:$0xff]
        %v258 = vld [vmem:[#allocation2 + $0x8] sm:$0xff]
        %v259 = vld [vmem:[%s2] sm:$0x1]
        %v261 = vlaneseq
        %v262 = vshrl.u32 %v261, 7
        %v263 = vsub.s32 0, %v262
        %v264 = vrot.slane %v259, %v263
        %vm266 = vcmask 130048
        %v268 = vsel %vm266, %v256, 0
        %270 = vmatprep.subr.mxu0 0.0
        %271 = vmatpush1.msra.mxu0 %v257
        %272 = vmatprep.subr.mxu0 0.0
        %273 = vmatpush1.msra.mxu0 %v258
        %274 = vmatprep.subr.mxu0 0.0
        %275 = vmatpush1.msra.mxu0 0.0
        %276 = vmatprep.subr.mxu0 0.0
        %277 = vmatpush1.msra.mxu0 0.0
        %278 = vmatprep.subr.mxu0 0.0
        %279 = vmatpush1.msra.mxu0 0.0
        %280 = vmatprep.subr.mxu0 0.0
        %281 = vmatpush1.msra.mxu0 0.0
        %282 = vmatprep.subr.mxu0 0.0
        %283 = vmatpush1.msra.mxu0 0.0
        %284 = vmatprep.subr.mxu0 0.0
        %285 = vmatpush1.msra.mxu0 0.0
        %286 = vmatprep.subr.mxu0 0.0
        %287 = vmatpush1.msra.mxu0 0.0
        %288 = vmatprep.subr.mxu0 0.0
        %289 = vmatpush1.msra.mxu0 0.0
        %290 = vmatprep.subr.mxu0 0.0
        %291 = vmatpush1.msra.mxu0 0.0
        %292 = vmatprep.subr.mxu0 0.0
        %293 = vmatpush1.msra.mxu0 0.0
        %294 = vmatprep.subr.mxu0 0.0
        %295 = vmatpush1.msra.mxu0 0.0
        %296 = vmatprep.subr.mxu0 0.0
        %297 = vmatpush1.msra.mxu0 0.0
        %298 = vmatprep.subr.mxu0 0.0
        %299 = vmatpush1.msra.mxu0 0.0
        %300 = vmatprep.subr.mxu0 0.0
        %301 = vmatpush1.msra.mxu0 0.0
        %302 = vmatprep.subr.mxu0 0.0
        %303 = vmatpush1.msra.mxu0 0.0
        %304 = vmatprep.subr.mxu0 0.0
        %305 = vmatpush1.msra.mxu0 0.0
        %306 = vmatprep.subr.mxu0 0.0
        %307 = vmatpush1.msra.mxu0 0.0
        %308 = vmatprep.subr.mxu0 0.0
        %309 = vmatpush1.msra.mxu0 0.0
        %310 = vmatprep.subr.mxu0 0.0
        %311 = vmatpush1.msra.mxu0 0.0
        %312 = vmatprep.subr.mxu0 0.0
        %313 = vmatpush1.msra.mxu0 0.0
        %314 = vmatprep.subr.mxu0 0.0
        %315 = vmatpush1.msra.mxu0 0.0
        %316 = vmatprep.subr.mxu0 0.0
        %317 = vmatpush1.msra.mxu0 0.0
        %318 = vmatprep.subr.mxu0 0.0
        %319 = vmatpush1.msra.mxu0 0.0
        %320 = vmatprep.subr.mxu0 0.0
        %321 = vmatpush1.msra.mxu0 0.0
        %322 = vmatprep.subr.mxu0 0.0
        %323 = vmatpush1.msra.mxu0 0.0
        %324 = vmatprep.subr.mxu0 0.0
        %325 = vmatpush1.msra.mxu0 0.0
        %326 = vmatprep.subr.mxu0 0.0
        %327 = vmatpush1.msra.mxu0 0.0
        %328 = vmatprep.subr.mxu0 0.0
        %329 = vmatpush1.msra.mxu0 0.0
        %330 = vmatprep.subr.mxu0 0.0
        %331 = vmatpush1.msra.mxu0 0.0
        %332 = vmatprep.subr.mxu0 0.0
        %333 = vmatpush1.msra.mxu0 0.0
        %334 = vmatprep.mubr.f32.mxu0 0.0
        %335 = vmatmul.mubr.f32.gmra.mrb[0].mxu0 %v268
        %v336 = vpop.f32.mrb[0].mxu0
        %v337 = vadd.f32 %v264, %v336
        %v338 = vpop.f32.mrb[0].mxu0
        %339 = vdwg.mxu0
        %v340 = vld [vmem:[%s248] sm:$0xff]
        %v341 = vadd.f32 %v337, %v340
        %vm342 = vcmask 261120
        %343 = vst.msk [vmem:[%s255] sm:$0xff] %vm342, %v341
        %p344 = scmp.lt.s32.totalorder %s20, 1
        %s345 = scalar_select %p344, %s20, 1
        %p346 = scmp.lt.s32.totalorder %s21, 0
        %s347 = scalar_select %p346, %s21, 0
        %s348 = sadd.s32 %s347, %s345
        %s349 = smul.addr %s348, 8
        %s350 = scalar_lea.vmem %s4, %s349
        // Predicated region
        $region41: #{transformer_encoder_forward.10} parent=35 // pred_check
          %p351 = pneg %p144
        $region42: #{transformer_encoder_forward.10} parent=35 // pred_check_branch
          %353 = sbr.rel (%p351) target = $region44
        $region43: #{transformer_encoder_forward.10} parent=35 // pred_region
          _
        $region44: #{transformer_encoder_forward.10} parent=35 // pred_fallthru
          _
      $region36: #{transformer_encoder_forward.10} parent=5 // pred_fallthru
        _
      %p354 = scmp.le.s32.totalorder 2, %s11
      // Predicated region
      $region45: #{transformer_encoder_forward.10} parent=5 // pred_check
        %p355 = pneg %p354
      $region46: #{transformer_encoder_forward.10} parent=5 // pred_check_branch
        %357 = sbr.rel (%p355) target = $region48
      $region47: #{transformer_encoder_forward.10} parent=5 // pred_region
        %s358 = ssub.s32 %s11, 2
        // Predicated region
        $region49: #{transformer_encoder_forward.10} parent=47 // pred_check
          %p359 = pneg %p150
        $region50: #{transformer_encoder_forward.10} parent=47 // pred_check_branch
          %361 = sbr.rel (%p359) target = $region52
        $region51: #{transformer_encoder_forward.10} parent=47 // pred_region
          %p362 = scmp.lt.s32.totalorder %s22, 1
          %s363 = scalar_select %p362, %s22, 1
          %p364 = scmp.lt.s32.totalorder %s23, 0
          %s365 = scalar_select %p364, %s23, 0
          %s366 = sadd.s32 %s365, %s363
          %s367 = smul.addr %s366, 8
          %s368 = scalar_lea.vmem %s4, %s367
        $region52: #{transformer_encoder_forward.10} parent=47 // pred_fallthru
          _
      $region48: #{transformer_encoder_forward.10} parent=5 // pred_fallthru
        _
    $region6: #{transformer_encoder_forward.10} parent=1 // loop_footer
      %s15 = sadd.s32 1, %s11
    $region7: #{transformer_encoder_forward.10} parent=1 // loop_footer_branch
      %10 = sbr.rel target = $region3
    $region8: #{transformer_encoder_forward.10} parent=1 // loop_exit
      _
    %369 = vsyncpa [#allocation3], 1
    %s370 = scalar_lea.sflag [#allocation3], 1
    %371 = vsyncpa %s370, 1

// kernel: transformer_encoder_forward.11
$region0: #{transformer_encoder_forward.11}
  #allocation0 [shape = 'u32[]', space=smem, size = 0x4, offset = 0x4, fixed_abs, tag = 'smem constant byte address 0x4 - core index']
  #allocation1 [shape = 'u32[144,128]{1,0:T(1,128)}', space=vmem, size = 0x12000, scoped, tag = 'internal scratch']
  %s0 = inlined_call_operand.vmem [shape: f32[16,32], index: 0, kind: input, shape index: {}]
  %s1 = inlined_call_operand.vmem [shape: f32[32,32], index: 1, kind: input, shape index: {}]
  %s2 = inlined_call_operand.vmem [shape: f32[32,32], index: 2, kind: input, shape index: {}]
  %s3 = inlined_call_operand.hbm [shape: f32[32,32], index: 3, kind: input, shape index: {}]
  %s4 = inlined_call_operand.hbm [shape: f32[1,32], index: 4, kind: input, shape index: {}]
  %s5 = inlined_call_operand.hbm [shape: f32[1,32], index: 5, kind: input, shape index: {}]
  %s6 = inlined_call_operand.hbm [shape: f32[1,32], index: 6, kind: input, shape index: {}]
  %s7 = inlined_call_operand.vmem [shape: f32[16,32], index: 7, kind: output, shape index: {0}]
  %s8 = inlined_call_operand.vmem [shape: f32[16,32], index: 8, kind: output, shape index: {1}]
  %s9 = inlined_call_operand.vmem [shape: f32[16,32], index: 9, kind: output, shape index: {2}]
  %10 = xla_tuple %s7, %s8, %s9
  %s11 = sld [smem:[#allocation0]]
  $region70: #{transformer_encoder_forward.11} parent=0
    _
  %s13 = ssub.s32 1, %s11
  %s14 = scalar_select 0, %s13, %s11
  $region1: #{transformer_encoder_forward.11} parent=0
    #allocation2 [shape = 'u8[16384]{0}', space=vmem, size = 0x4000, scoped, tag = 'input window, operand 3, single buffered']
    #allocation3 [shape = 's32[1]{0}', space=sflag, size = 0x4, scoped, tag = 'scoped memory for transformer_encoder_forward.11']
    #allocation4 [shape = 'u8[512]{0}', space=vmem, size = 0x400, scoped, tag = 'input window, operand 4, single buffered']
    #allocation5 [shape = 's32[1]{0}', space=sflag, size = 0x4, scoped, tag = 'scoped memory for transformer_encoder_forward.11']
    #allocation6 [shape = 'u8[512]{0}', space=vmem, size = 0x400, scoped, tag = 'input window, operand 5, single buffered']
    #allocation7 [shape = 'u8[512]{0}', space=vmem, size = 0x400, scoped, tag = 'input window, operand 6, single buffered']
    #allocation8 [shape = 's32[1]{0}', space=sflag, size = 0x4, scoped, tag = 'scoped memory for transformer_encoder_forward.11']
    %15 = vsyncpa [#allocation3], 0
    %16 = vsyncpa [#allocation5], 0
    %17 = vsyncpa [#allocation8], 0
    // Predicated region
    $region2: #{transformer_encoder_forward.11} parent=1 // pred_check
      _
    $region3: #{transformer_encoder_forward.11} parent=1 // pred_check_branch
      %19 = sbr.rel (0) target = $region5
    $region4: #{transformer_encoder_forward.11} parent=1 // pred_region
      _
    $region5: #{transformer_encoder_forward.11} parent=1 // pred_fallthru
      _
    // Predicated region
    $region6: #{transformer_encoder_forward.11} parent=1 // pred_check
      _
    $region7: #{transformer_encoder_forward.11} parent=1 // pred_check_branch
      %21 = sbr.rel (0) target = $region9
    $region8: #{transformer_encoder_forward.11} parent=1 // pred_region
      _
    $region9: #{transformer_encoder_forward.11} parent=1 // pred_fallthru
      _
    // Predicated region
    $region10: #{transformer_encoder_forward.11} parent=1 // pred_check
      _
    $region11: #{transformer_encoder_forward.11} parent=1 // pred_check_branch
      %23 = sbr.rel (0) target = $region13
    $region12: #{transformer_encoder_forward.11} parent=1 // pred_region
      _
    $region13: #{transformer_encoder_forward.11} parent=1 // pred_fallthru
      _
    // Predicated region
    $region14: #{transformer_encoder_forward.11} parent=1 // pred_check
      _
    $region15: #{transformer_encoder_forward.11} parent=1 // pred_check_branch
      %25 = sbr.rel (0) target = $region17
    $region16: #{transformer_encoder_forward.11} parent=1 // pred_region
      %s27 = ssub.s32 512, 512
      %28 = vsyncadd [#allocation3], %s27
      %s29 = sshll.u32 [#allocation2], 4
      %s30 = int_to_ptr.vmem [resolvable:$true] %s29
      %35 = dma.hbm_to_vmem [thread:$0]  %s3, 512, %s30, [#allocation3], 128, 128, 8
    $region17: #{transformer_encoder_forward.11} parent=1 // pred_fallthru
      _
    // Predicated region
    $region18: #{transformer_encoder_forward.11} parent=1 // pred_check
      _
    $region19: #{transformer_encoder_forward.11} parent=1 // pred_check_branch
      %37 = sbr.rel (0) target = $region21
    $region20: #{transformer_encoder_forward.11} parent=1 // pred_region
      %s39 = ssub.s32 16, 16
      %40 = vsyncadd [#allocation5], %s39
      %s42 = sshll.u32 [#allocation4], 4
      %s43 = int_to_ptr.vmem [resolvable:$true] %s42
      %45 = dma.hbm_to_vmem [thread:$0]  %s4, 16, %s43, [#allocation5]
    $region21: #{transformer_encoder_forward.11} parent=1 // pred_fallthru
      _
    // Predicated region
    $region22: #{transformer_encoder_forward.11} parent=1 // pred_check
      _
    $region23: #{transformer_encoder_forward.11} parent=1 // pred_check_branch
      %47 = sbr.rel (0) target = $region25
    $region24: #{transformer_encoder_forward.11} parent=1 // pred_region
      %s49 = ssub.s32 16, 16
      %50 = vsyncadd [#allocation5], %s49
      %s52 = sshll.u32 [#allocation6], 4
      %s53 = int_to_ptr.vmem [resolvable:$true] %s52
      %55 = dma.hbm_to_vmem [thread:$0]  %s5, 16, %s53, [#allocation5]
    $region25: #{transformer_encoder_forward.11} parent=1 // pred_fallthru
      _
    // Predicated region
    $region26: #{transformer_encoder_forward.11} parent=1 // pred_check
      _
    $region27: #{transformer_encoder_forward.11} parent=1 // pred_check_branch
      %57 = sbr.rel (0) target = $region29
    $region28: #{transformer_encoder_forward.11} parent=1 // pred_region
      %s59 = ssub.s32 16, 16
      %60 = vsyncadd [#allocation8], %s59
      %s62 = sshll.u32 [#allocation7], 4
      %s63 = int_to_ptr.vmem [resolvable:$true] %s62
      %65 = dma.hbm_to_vmem [thread:$0]  %s6, 16, %s63, [#allocation8]
    $region29: #{transformer_encoder_forward.11} parent=1 // pred_fallthru
      _
    // Predicated region
    $region30: #{transformer_encoder_forward.11} parent=1 // pred_check
      _
    $region31: #{transformer_encoder_forward.11} parent=1 // pred_check_branch
      %67 = sbr.rel (0) target = $region33
    $region32: #{transformer_encoder_forward.11} parent=1 // pred_region
      %68 = dma.done [#allocation3], 512
    $region33: #{transformer_encoder_forward.11} parent=1 // pred_fallthru
      _
    // Predicated region
    $region34: #{transformer_encoder_forward.11} parent=1 // pred_check
      _
    $region35: #{transformer_encoder_forward.11} parent=1 // pred_check_branch
      %70 = sbr.rel (0) target = $region37
    $region36: #{transformer_encoder_forward.11} parent=1 // pred_region
      %71 = dma.done [#allocation5], 16
    $region37: #{transformer_encoder_forward.11} parent=1 // pred_fallthru
      _
    // Predicated region
    $region38: #{transformer_encoder_forward.11} parent=1 // pred_check
      _
    $region39: #{transformer_encoder_forward.11} parent=1 // pred_check_branch
      %73 = sbr.rel (0) target = $region41
    $region40: #{transformer_encoder_forward.11} parent=1 // pred_region
      %74 = dma.done [#allocation5], 16
    $region41: #{transformer_encoder_forward.11} parent=1 // pred_fallthru
      _
    // Predicated region
    $region42: #{transformer_encoder_forward.11} parent=1 // pred_check
      _
    $region43: #{transformer_encoder_forward.11} parent=1 // pred_check_branch
      %76 = sbr.rel (0) target = $region45
    $region44: #{transformer_encoder_forward.11} parent=1 // pred_region
      %77 = dma.done [#allocation8], 16
    $region45: #{transformer_encoder_forward.11} parent=1 // pred_fallthru
      _
    %v78 = vld [vmem:[%s0] sm:$0xff]
    %v79 = vld [vmem:[%s0 + $0x8] sm:$0xff]
    %v80 = vld [vmem:[%s1] sm:$0xff]
    %v81 = vld [vmem:[%s1 + $0x8] sm:$0xff]
    %v82 = vld [vmem:[%s1 + $0x10] sm:$0xff]
    %v83 = vld [vmem:[%s1 + $0x18] sm:$0xff]
    %v84 = vld [vmem:[#allocation4] sm:$0x1]
    %v86 = vlaneseq
    %v87 = vshrl.u32 %v86, 7
    %v88 = vsub.s32 0, %v87
    %v89 = vrot.slane %v84, %v88
    %vm91 = vcmask 261120
    %v93 = vsel %vm91, %v78, 0
    %v96 = vsel %vm91, %v79, 0
    %98 = vmatprep.subr.mxu0 0.0
    %99 = vmatpush1.msra.mxu0 %v80
    %100 = vmatprep.subr.mxu0 0.0
    %101 = vmatpush1.msra.mxu0 %v81
    %102 = vmatprep.subr.mxu0 0.0
    %103 = vmatpush1.msra.mxu0 %v82
    %104 = vmatprep.subr.mxu0 0.0
    %105 = vmatpush1.msra.mxu0 %v83
    %106 = vmatprep.subr.mxu0 0.0
    %107 = vmatpush1.msra.mxu0 0.0
    %108 = vmatprep.subr.mxu0 0.0
    %109 = vmatpush1.msra.mxu0 0.0
    %110 = vmatprep.subr.mxu0 0.0
    %111 = vmatpush1.msra.mxu0 0.0
    %112 = vmatprep.subr.mxu0 0.0
    %113 = vmatpush1.msra.mxu0 0.0
    %114 = vmatprep.subr.mxu0 0.0
    %115 = vmatpush1.msra.mxu0 0.0
    %116 = vmatprep.subr.mxu0 0.0
    %117 = vmatpush1.msra.mxu0 0.0
    %118 = vmatprep.subr.mxu0 0.0
    %119 = vmatpush1.msra.mxu0 0.0
    %120 = vmatprep.subr.mxu0 0.0
    %121 = vmatpush1.msra.mxu0 0.0
    %122 = vmatprep.subr.mxu0 0.0
    %123 = vmatpush1.msra.mxu0 0.0
    %124 = vmatprep.subr.mxu0 0.0
    %125 = vmatpush1.msra.mxu0 0.0
    %126 = vmatprep.subr.mxu0 0.0
    %127 = vmatpush1.msra.mxu0 0.0
    %128 = vmatprep.subr.mxu0 0.0
    %129 = vmatpush1.msra.mxu0 0.0
    %130 = vmatprep.subr.mxu0 0.0
    %131 = vmatpush1.msra.mxu0 0.0
    %132 = vmatprep.subr.mxu0 0.0
    %133 = vmatpush1.msra.mxu0 0.0
    %134 = vmatprep.subr.mxu0 0.0
    %135 = vmatpush1.msra.mxu0 0.0
    %136 = vmatprep.subr.mxu0 0.0
    %137 = vmatpush1.msra.mxu0 0.0
    %138 = vmatprep.subr.mxu0 0.0
    %139 = vmatpush1.msra.mxu0 0.0
    %140 = vmatprep.subr.mxu0 0.0
    %141 = vmatpush1.msra.mxu0 0.0
    %142 = vmatprep.subr.mxu0 0.0
    %143 = vmatpush1.msra.mxu0 0.0
    %144 = vmatprep.subr.mxu0 0.0
    %145 = vmatpush1.msra.mxu0 0.0
    %146 = vmatprep.subr.mxu0 0.0
    %147 = vmatpush1.msra.mxu0 0.0
    %148 = vmatprep.subr.mxu0 0.0
    %149 = vmatpush1.msra.mxu0 0.0
    %150 = vmatprep.subr.mxu0 0.0
    %151 = vmatpush1.msra.mxu0 0.0
    %152 = vmatprep.subr.mxu0 0.0
    %153 = vmatpush1.msra.mxu0 0.0
    %154 = vmatprep.subr.mxu0 0.0
    %155 = vmatpush1.msra.mxu0 0.0
    %156 = vmatprep.subr.mxu0 0.0
    %157 = vmatpush1.msra.mxu0 0.0
    %158 = vmatprep.subr.mxu0 0.0
    %159 = vmatpush1.msra.mxu0 0.0
    %160 = vmatprep.subr.mxu0 0.0
    %161 = vmatpush1.msra.mxu0 0.0
    %162 = vmatprep.mubr.f32.mxu0 0.0
    %163 = vmatmul.mubr.f32.gmra.mrb[0].mxu0 %v93
    %v164 = vpop.f32.mrb[0].mxu0
    %v165 = vadd.f32 %v89, %v164
    %v166 = vpop.f32.mrb[0].mxu0
    %167 = vmatprep.mubr.f32.mxu0 0.0
    %168 = vmatmul.mubr.f32.gmra.mrb[0].mxu0 %v96
    %v169 = vpop.f32.mrb[0].mxu0
    %v170 = vadd.f32 %v89, %v169
    %v171 = vpop.f32.mrb[0].mxu0
    %172 = vdwg.mxu0
    %173 = vst.msk [vmem:[%s7] sm:$0xff] %vm91, %v165
    %174 = vst.msk [vmem:[%s7 + $0x8] sm:$0xff] %vm91, %v170
    %v175 = vld [vmem:[%s2] sm:$0xff]
    %v176 = vld [vmem:[%s2 + $0x8] sm:$0xff]
    %v177 = vld [vmem:[%s2 + $0x10] sm:$0xff]
    %v178 = vld [vmem:[%s2 + $0x18] sm:$0xff]
    %v179 = vld [vmem:[#allocation6] sm:$0x1]
    %v181 = vlaneseq
    %v182 = vshrl.u32 %v181, 7
    %v183 = vsub.s32 0, %v182
    %v184 = vrot.slane %v179, %v183
    %186 = vmatprep.subr.mxu0 0.0
    %187 = vmatpush1.msra.mxu0 %v175
    %188 = vmatprep.subr.mxu0 0.0
    %189 = vmatpush1.msra.mxu0 %v176
    %190 = vmatprep.subr.mxu0 0.0
    %191 = vmatpush1.msra.mxu0 %v177
    %192 = vmatprep.subr.mxu0 0.0
    %193 = vmatpush1.msra.mxu0 %v178
    %194 = vmatprep.subr.mxu0 0.0
    %195 = vmatpush1.msra.mxu0 0.0
    %196 = vmatprep.subr.mxu0 0.0
    %197 = vmatpush1.msra.mxu0 0.0
    %198 = vmatprep.subr.mxu0 0.0
    %199 = vmatpush1.msra.mxu0 0.0
    %200 = vmatprep.subr.mxu0 0.0
    %201 = vmatpush1.msra.mxu0 0.0
    %202 = vmatprep.subr.mxu0 0.0
    %203 = vmatpush1.msra.mxu0 0.0
    %204 = vmatprep.subr.mxu0 0.0
    %205 = vmatpush1.msra.mxu0 0.0
    %206 = vmatprep.subr.mxu0 0.0
    %207 = vmatpush1.msra.mxu0 0.0
    %208 = vmatprep.subr.mxu0 0.0
    %209 = vmatpush1.msra.mxu0 0.0
    %210 = vmatprep.subr.mxu0 0.0
    %211 = vmatpush1.msra.mxu0 0.0
    %212 = vmatprep.subr.mxu0 0.0
    %213 = vmatpush1.msra.mxu0 0.0
    %214 = vmatprep.subr.mxu0 0.0
    %215 = vmatpush1.msra.mxu0 0.0
    %216 = vmatprep.subr.mxu0 0.0
    %217 = vmatpush1.msra.mxu0 0.0
    %218 = vmatprep.subr.mxu0 0.0
    %219 = vmatpush1.msra.mxu0 0.0
    %220 = vmatprep.subr.mxu0 0.0
    %221 = vmatpush1.msra.mxu0 0.0
    %222 = vmatprep.subr.mxu0 0.0
    %223 = vmatpush1.msra.mxu0 0.0
    %224 = vmatprep.subr.mxu0 0.0
    %225 = vmatpush1.msra.mxu0 0.0
    %226 = vmatprep.subr.mxu0 0.0
    %227 = vmatpush1.msra.mxu0 0.0
    %228 = vmatprep.subr.mxu0 0.0
    %229 = vmatpush1.msra.mxu0 0.0
    %230 = vmatprep.subr.mxu0 0.0
    %231 = vmatpush1.msra.mxu0 0.0
    %232 = vmatprep.subr.mxu0 0.0
    %233 = vmatpush1.msra.mxu0 0.0
    %234 = vmatprep.subr.mxu0 0.0
    %235 = vmatpush1.msra.mxu0 0.0
    %236 = vmatprep.subr.mxu0 0.0
    %237 = vmatpush1.msra.mxu0 0.0
    %238 = vmatprep.subr.mxu0 0.0
    %239 = vmatpush1.msra.mxu0 0.0
    %240 = vmatprep.subr.mxu0 0.0
    %241 = vmatpush1.msra.mxu0 0.0
    %242 = vmatprep.subr.mxu0 0.0
    %243 = vmatpush1.msra.mxu0 0.0
    %244 = vmatprep.subr.mxu0 0.0
    %245 = vmatpush1.msra.mxu0 0.0
    %246 = vmatprep.subr.mxu0 0.0
    %247 = vmatpush1.msra.mxu0 0.0
    %248 = vmatprep.subr.mxu0 0.0
    %249 = vmatpush1.msra.mxu0 0.0
    %250 = vmatprep.mubr.f32.mxu0 0.0
    %251 = vmatmul.mubr.f32.gmra.mrb[0].mxu0 %v93
    %v252 = vpop.f32.mrb[0].mxu0
    %v253 = vadd.f32 %v184, %v252
    %v254 = vpop.f32.mrb[0].mxu0
    %255 = vmatprep.mubr.f32.mxu0 0.0
    %256 = vmatmul.mubr.f32.gmra.mrb[0].mxu0 %v96
    %v257 = vpop.f32.mrb[0].mxu0
    %v258 = vadd.f32 %v184, %v257
    %v259 = vpop.f32.mrb[0].mxu0
    %260 = vdwg.mxu0
    %261 = vst.msk [vmem:[%s8] sm:$0xff] %vm91, %v253
    %262 = vst.msk [vmem:[%s8 + $0x8] sm:$0xff] %vm91, %v258
    %v263 = vld [vmem:[#allocation2] sm:$0xff]
    %v264 = vld [vmem:[#allocation2 + $0x8] sm:$0xff]
    %v265 = vld [vmem:[#allocation2 + $0x10] sm:$0xff]
    %v266 = vld [vmem:[#allocation2 + $0x18] sm:$0xff]
    %v267 = vld [vmem:[#allocation7] sm:$0x1]
    %v269 = vlaneseq
    %v270 = vshrl.u32 %v269, 7
    %v271 = vsub.s32 0, %v270
    %v272 = vrot.slane %v267, %v271
    %274 = vmatprep.subr.mxu0 0.0
    %275 = vmatpush1.msra.mxu0 %v263
    %276 = vmatprep.subr.mxu0 0.0
    %277 = vmatpush1.msra.mxu0 %v264
    %278 = vmatprep.subr.mxu0 0.0
    %279 = vmatpush1.msra.mxu0 %v265
    %280 = vmatprep.subr.mxu0 0.0
    %281 = vmatpush1.msra.mxu0 %v266
    %282 = vmatprep.subr.mxu0 0.0
    %283 = vmatpush1.msra.mxu0 0.0
    %284 = vmatprep.subr.mxu0 0.0
    %285 = vmatpush1.msra.mxu0 0.0
    %286 = vmatprep.subr.mxu0 0.0
    %287 = vmatpush1.msra.mxu0 0.0
    %288 = vmatprep.subr.mxu0 0.0
    %289 = vmatpush1.msra.mxu0 0.0
    %290 = vmatprep.subr.mxu0 0.0
    %291 = vmatpush1.msra.mxu0 0.0
    %292 = vmatprep.subr.mxu0 0.0
    %293 = vmatpush1.msra.mxu0 0.0
    %294 = vmatprep.subr.mxu0 0.0
    %295 = vmatpush1.msra.mxu0 0.0
    %296 = vmatprep.subr.mxu0 0.0
    %297 = vmatpush1.msra.mxu0 0.0
    %298 = vmatprep.subr.mxu0 0.0
    %299 = vmatpush1.msra.mxu0 0.0
    %300 = vmatprep.subr.mxu0 0.0
    %301 = vmatpush1.msra.mxu0 0.0
    %302 = vmatprep.subr.mxu0 0.0
    %303 = vmatpush1.msra.mxu0 0.0
    %304 = vmatprep.subr.mxu0 0.0
    %305 = vmatpush1.msra.mxu0 0.0
    %306 = vmatprep.subr.mxu0 0.0
    %307 = vmatpush1.msra.mxu0 0.0
    %308 = vmatprep.subr.mxu0 0.0
    %309 = vmatpush1.msra.mxu0 0.0
    %310 = vmatprep.subr.mxu0 0.0
    %311 = vmatpush1.msra.mxu0 0.0
    %312 = vmatprep.subr.mxu0 0.0
    %313 = vmatpush1.msra.mxu0 0.0
    %314 = vmatprep.subr.mxu0 0.0
    %315 = vmatpush1.msra.mxu0 0.0
    %316 = vmatprep.subr.mxu0 0.0
    %317 = vmatpush1.msra.mxu0 0.0
    %318 = vmatprep.subr.mxu0 0.0
    %319 = vmatpush1.msra.mxu0 0.0
    %320 = vmatprep.subr.mxu0 0.0
    %321 = vmatpush1.msra.mxu0 0.0
    %322 = vmatprep.subr.mxu0 0.0
    %323 = vmatpush1.msra.mxu0 0.0
    %324 = vmatprep.subr.mxu0 0.0
    %325 = vmatpush1.msra.mxu0 0.0
    %326 = vmatprep.subr.mxu0 0.0
    %327 = vmatpush1.msra.mxu0 0.0
    %328 = vmatprep.subr.mxu0 0.0
    %329 = vmatpush1.msra.mxu0 0.0
    %330 = vmatprep.subr.mxu0 0.0
    %331 = vmatpush1.msra.mxu0 0.0
    %332 = vmatprep.subr.mxu0 0.0
    %333 = vmatpush1.msra.mxu0 0.0
    %334 = vmatprep.subr.mxu0 0.0
    %335 = vmatpush1.msra.mxu0 0.0
    %336 = vmatprep.subr.mxu0 0.0
    %337 = vmatpush1.msra.mxu0 0.0
    %338 = vmatprep.mubr.f32.mxu0 0.0
    %339 = vmatmul.mubr.f32.gmra.mrb[0].mxu0 %v93
    %v340 = vpop.f32.mrb[0].mxu0
    %v341 = vadd.f32 %v272, %v340
    %v342 = vpop.f32.mrb[0].mxu0
    %343 = vmatprep.mubr.f32.mxu0 0.0
    %344 = vmatmul.mubr.f32.gmra.mrb[0].mxu0 %v96
    %v345 = vpop.f32.mrb[0].mxu0
    %v346 = vadd.f32 %v272, %v345
    %v347 = vpop.f32.mrb[0].mxu0
    %348 = vdwg.mxu0
    %349 = vst.msk [vmem:[%s9] sm:$0xff] %vm91, %v341
    %350 = vst.msk [vmem:[%s9 + $0x8] sm:$0xff] %vm91, %v346
    // Predicated region
    $region46: #{transformer_encoder_forward.11} parent=1 // pred_check
      _
    $region47: #{transformer_encoder_forward.11} parent=1 // pred_check_branch
      %352 = sbr.rel (0) target = $region49
    $region48: #{transformer_encoder_forward.11} parent=1 // pred_region
      _
    $region49: #{transformer_encoder_forward.11} parent=1 // pred_fallthru
      _
    // Predicated region
    $region50: #{transformer_encoder_forward.11} parent=1 // pred_check
      _
    $region51: #{transformer_encoder_forward.11} parent=1 // pred_check_branch
      %354 = sbr.rel (0) target = $region53
    $region52: #{transformer_encoder_forward.11} parent=1 // pred_region
      _
    $region53: #{transformer_encoder_forward.11} parent=1 // pred_fallthru
      _
    // Predicated region
    $region54: #{transformer_encoder_forward.11} parent=1 // pred_check
      _
    $region55: #{transformer_encoder_forward.11} parent=1 // pred_check_branch
      %356 = sbr.rel (0) target = $region57
    $region56: #{transformer_encoder_forward.11} parent=1 // pred_region
      _
    $region57: #{transformer_encoder_forward.11} parent=1 // pred_fallthru
      _
    // Predicated region
    $region58: #{transformer_encoder_forward.11} parent=1 // pred_check
      _
    $region59: #{transformer_encoder_forward.11} parent=1 // pred_check_branch
      %358 = sbr.rel (0) target = $region61
    $region60: #{transformer_encoder_forward.11} parent=1 // pred_region
      _
    $region61: #{transformer_encoder_forward.11} parent=1 // pred_fallthru
      _
    // Predicated region
    $region62: #{transformer_encoder_forward.11} parent=1 // pred_check
      _
    $region63: #{transformer_encoder_forward.11} parent=1 // pred_check_branch
      %360 = sbr.rel (0) target = $region65
    $region64: #{transformer_encoder_forward.11} parent=1 // pred_region
      _
    $region65: #{transformer_encoder_forward.11} parent=1 // pred_fallthru
      _
    // Predicated region
    $region66: #{transformer_encoder_forward.11} parent=1 // pred_check
      _
    $region67: #{transformer_encoder_forward.11} parent=1 // pred_check_branch
      %362 = sbr.rel (0) target = $region69
    $region68: #{transformer_encoder_forward.11} parent=1 // pred_region
      _
    $region69: #{transformer_encoder_forward.11} parent=1 // pred_fallthru
      _
    %363 = vsyncpa [#allocation3], 1
    %364 = vsyncpa [#allocation5], 1
    %365 = vsyncpa [#allocation8], 1

// kernel: transformer_encoder_forward.12
$region0: #{transformer_encoder_forward.12}
  #allocation0 [shape = 'u32[]', space=smem, size = 0x4, offset = 0x4, fixed_abs, tag = 'smem constant byte address 0x4 - core index']
  #allocation1 [shape = 'u32[144,128]{1,0:T(1,128)}', space=vmem, size = 0x12000, scoped, tag = 'internal scratch']
  %s0 = inlined_call_operand.vmem [shape: f32[2,8,32], index: 0, kind: input, shape index: {}]
  %s1 = inlined_call_operand.vmem [shape: f32[2,8,32], index: 1, kind: input, shape index: {}]
  %s2 = inlined_call_operand.vmem [shape: f32[2,8,32], index: 2, kind: input, shape index: {}]
  %s3 = inlined_call_operand.vmem [shape: f32[2,8,32], index: 3, kind: output, shape index: {}]
  %s4 = sld [smem:[#allocation0]]
  $region45: #{transformer_encoder_forward.12} parent=0
    _
  %s6 = ssub.s32 1, %s4
  %s7 = scalar_select 0, %s6, %s4
  loop: start=0, step=1, limit=4
  $region2: #{transformer_encoder_forward.12} parent=0 // loop_pre_header
    _
  $region3: #{transformer_encoder_forward.12} parent=0 // loop_header
    %s9 = sphi 0, %s13
    %p10 = scmp.ge.s32.totalorder %s9, 4
    %s19 = sphi 0, %s21
    %s22 = sphi 0, %s19
    %s23 = sphi 0, %s22
    %s39 = sphi 0, %s23
    %s45 = sphi 0, %s47
    %s48 = sphi 0, %s45
    %s49 = sphi 0, %s48
    %s65 = sphi 0, %s49
    %s71 = sphi 0, %s73
    %s74 = sphi 0, %s71
    %s75 = sphi 0, %s74
    %s91 = sphi 0, %s75
    %s97 = sphi 0, %s99
    %s100 = sphi 0, %s97
    %s101 = sphi 0, %s100
    %s117 = sphi 0, %s101
  $region4: #{transformer_encoder_forward.12} parent=0 // loop_header_branch
    %12 = sbr.rel (%p10) target = $region8
  $region5: #{transformer_encoder_forward.12} parent=0 // loop_body
    %s14 = ssub.s32 %s9, 1
    %s15 = ssub.s32 %s9, 2
    %s16 = sadd.s32 %s9, 1
    %s17 = ssub.s32 %s9, %s16
    %p18 = scmp.eq.s32.totalorder %s17, 0
    %s20 = sadd.s32 %s19, 1
    %s21 = scalar_select %p18, %s19, %s20
    %p24 = pneg %p18
    %p25 = scmp.eq.s32.totalorder %s9, 1
    %p26 = por %p24, %p25
    %p27 = scmp.ne.s32.totalorder %s19, %s22
    %p28 = scmp.eq.s32.totalorder %s9, 0
    %p29 = por %p27, %p28
    %p30 = scmp.ne.s32.totalorder %s19, %s22
    %p31 = scmp.eq.s32.totalorder %s14, 1
    %p32 = por %p30, %p31
    %p33 = scmp.ne.s32.totalorder %s22, %s23
    %p34 = scmp.eq.s32.totalorder %s14, 0
    %p35 = por %p33, %p34
    %p36 = scmp.ne.s32.totalorder %s22, %s23
    %p37 = scmp.eq.s32.totalorder %s15, 1
    %p38 = por %p36, %p37
    %p40 = scmp.ne.s32.totalorder %s23, %s39
    %p41 = scmp.eq.s32.totalorder %s15, 0
    %p42 = por %p40, %p41
    %s43 = ssub.s32 %s9, %s16
    %p44 = scmp.eq.s32.totalorder %s43, 0
    %s46 = sadd.s32 %s45, 1
    %s47 = scalar_select %p44, %s45, %s46
    %p50 = pneg %p44
    %p51 = scmp.eq.s32.totalorder %s9, 1
    %p52 = por %p50, %p51
    %p53 = scmp.ne.s32.totalorder %s45, %s48
    %p54 = scmp.eq.s32.totalorder %s9, 0
    %p55 = por %p53, %p54
    %p56 = scmp.ne.s32.totalorder %s45, %s48
    %p57 = scmp.eq.s32.totalorder %s14, 1
    %p58 = por %p56, %p57
    %p59 = scmp.ne.s32.totalorder %s48, %s49
    %p60 = scmp.eq.s32.totalorder %s14, 0
    %p61 = por %p59, %p60
    %p62 = scmp.ne.s32.totalorder %s48, %s49
    %p63 = scmp.eq.s32.totalorder %s15, 1
    %p64 = por %p62, %p63
    %p66 = scmp.ne.s32.totalorder %s49, %s65
    %p67 = scmp.eq.s32.totalorder %s15, 0
    %p68 = por %p66, %p67
    %s69 = ssub.s32 %s9, %s16
    %p70 = scmp.eq.s32.totalorder %s69, 0
    %s72 = sadd.s32 %s71, 1
    %s73 = scalar_select %p70, %s71, %s72
    %p76 = pneg %p70
    %p77 = scmp.eq.s32.totalorder %s9, 1
    %p78 = por %p76, %p77
    %p79 = scmp.ne.s32.totalorder %s71, %s74
    %p80 = scmp.eq.s32.totalorder %s9, 0
    %p81 = por %p79, %p80
    %p82 = scmp.ne.s32.totalorder %s71, %s74
    %p83 = scmp.eq.s32.totalorder %s14, 1
    %p84 = por %p82, %p83
    %p85 = scmp.ne.s32.totalorder %s74, %s75
    %p86 = scmp.eq.s32.totalorder %s14, 0
    %p87 = por %p85, %p86
    %p88 = scmp.ne.s32.totalorder %s74, %s75
    %p89 = scmp.eq.s32.totalorder %s15, 1
    %p90 = por %p88, %p89
    %p92 = scmp.ne.s32.totalorder %s75, %s91
    %p93 = scmp.eq.s32.totalorder %s15, 0
    %p94 = por %p92, %p93
    %s95 = ssub.s32 %s9, %s16
    %p96 = scmp.eq.s32.totalorder %s95, 0
    %s98 = sadd.s32 %s97, 1
    %s99 = scalar_select %p96, %s97, %s98
    %p102 = pneg %p96
    %p103 = scmp.eq.s32.totalorder %s9, 1
    %p104 = por %p102, %p103
    %p105 = scmp.ne.s32.totalorder %s97, %s100
    %p106 = scmp.eq.s32.totalorder %s9, 0
    %p107 = por %p105, %p106
    %p108 = scmp.ne.s32.totalorder %s97, %s100
    %p109 = scmp.eq.s32.totalorder %s14, 1
    %p110 = por %p108, %p109
    %p111 = scmp.ne.s32.totalorder %s100, %s101
    %p112 = scmp.eq.s32.totalorder %s14, 0
    %p113 = por %p111, %p112
    %p114 = scmp.ne.s32.totalorder %s100, %s101
    %p115 = scmp.eq.s32.totalorder %s15, 1
    %p116 = por %p114, %p115
    %p118 = scmp.ne.s32.totalorder %s101, %s117
    %p119 = scmp.eq.s32.totalorder %s15, 0
    %p120 = por %p118, %p119
    %p121 = scmp.le.s32.totalorder 1, %s9
    %p122 = scmp.lt.s32.totalorder %s9, 3
    %p123 = pnand %p121, %p122
    %p124 = pneg %p123
    // Predicated region
    $region9: #{transformer_encoder_forward.12} parent=5 // pred_check
      _
    $region10: #{transformer_encoder_forward.12} parent=5 // pred_check_branch
      %126 = sbr.rel (%p123) target = $region12
    $region11: #{transformer_encoder_forward.12} parent=5 // pred_region
      %s127 = ssub.s32 %s9, 1
    $region12: #{transformer_encoder_forward.12} parent=5 // pred_fallthru
      _
    %p128 = scmp.lt.s32.totalorder %s9, 2
    // Predicated region
    $region13: #{transformer_encoder_forward.12} parent=5 // pred_check
      %p129 = pneg %p128
    $region14: #{transformer_encoder_forward.12} parent=5 // pred_check_branch
      %131 = sbr.rel (%p129) target = $region16
    $region15: #{transformer_encoder_forward.12} parent=5 // pred_region
      // Predicated region
      $region17: #{transformer_encoder_forward.12} parent=15 // pred_check
        %p132 = pneg %p29
      $region18: #{transformer_encoder_forward.12} parent=15 // pred_check_branch
        %134 = sbr.rel (%p132) target = $region20
      $region19: #{transformer_encoder_forward.12} parent=15 // pred_region
        %p135 = scmp.lt.s32.totalorder %s9, 1
        %s136 = scalar_select %p135, %s9, 1
        %s137 = smul.addr %s136, 8
        %s138 = scalar_lea.vmem %s0, %s137
      $region20: #{transformer_encoder_forward.12} parent=15 // pred_fallthru
        _
      // Predicated region
      $region21: #{transformer_encoder_forward.12} parent=15 // pred_check
        %p139 = pneg %p55
      $region22: #{transformer_encoder_forward.12} parent=15 // pred_check_branch
        %141 = sbr.rel (%p139) target = $region24
      $region23: #{transformer_encoder_forward.12} parent=15 // pred_region
        %p142 = scmp.lt.s32.totalorder %s9, 1
        %s143 = scalar_select %p142, %s9, 1
        %s144 = smul.addr %s143, 8
        %s145 = scalar_lea.vmem %s1, %s144
      $region24: #{transformer_encoder_forward.12} parent=15 // pred_fallthru
        _
      // Predicated region
      $region25: #{transformer_encoder_forward.12} parent=15 // pred_check
        %p146 = pneg %p81
      $region26: #{transformer_encoder_forward.12} parent=15 // pred_check_branch
        %148 = sbr.rel (%p146) target = $region28
      $region27: #{transformer_encoder_forward.12} parent=15 // pred_region
        %p149 = scmp.lt.s32.totalorder %s9, 1
        %s150 = scalar_select %p149, %s9, 1
        %s151 = smul.addr %s150, 8
        %s152 = scalar_lea.vmem %s2, %s151
      $region28: #{transformer_encoder_forward.12} parent=15 // pred_fallthru
        _
    $region16: #{transformer_encoder_forward.12} parent=5 // pred_fallthru
      _
    %p153 = scmp.le.s32.totalorder 1, %s9
    %p154 = scmp.lt.s32.totalorder %s9, 3
    %p155 = pnand %p153, %p154
    %p156 = pneg %p155
    // Predicated region
    $region29: #{transformer_encoder_forward.12} parent=5 // pred_check
      _
    $region30: #{transformer_encoder_forward.12} parent=5 // pred_check_branch
      %158 = sbr.rel (%p155) target = $region32
    $region31: #{transformer_encoder_forward.12} parent=5 // pred_region
      %s159 = ssub.s32 %s9, 1
      %p160 = scmp.lt.s32.totalorder %s14, 1
      %s161 = scalar_select %p160, %s14, 1
      %s162 = smul.addr %s161, 8
      %s163 = scalar_lea.vmem %s0, %s162
      %p164 = pneg %p35
      %p165 = pneg %p32
      %p166 = scmp.lt.s32.totalorder %s14, 1
      %s167 = scalar_select %p166, %s14, 1
      %s168 = smul.addr %s167, 8
      %s169 = scalar_lea.vmem %s1, %s168
      %p170 = pneg %p61
      %p171 = pneg %p58
      %p172 = scmp.lt.s32.totalorder %s14, 1
      %s173 = scalar_select %p172, %s14, 1
      %s174 = smul.addr %s173, 8
      %s175 = scalar_lea.vmem %s2, %s174
      %p176 = pneg %p87
      %p177 = pneg %p84
      %p178 = pneg %p113
      %p179 = pneg %p110
      %p180 = scmp.lt.s32.totalorder %s14, 1
      %s181 = scalar_select %p180, %s14, 1
      %s182 = smul.addr %s181, 8
      %s183 = scalar_lea.vmem %s3, %s182
      %p184 = scmp.lt.s32.totalorder %s14, 1
      %s185 = scalar_select %p184, %s14, 1
      %s186 = smul.addr %s185, 8
      %s187 = scalar_lea.vmem %s0, %s186
      %p188 = scmp.lt.s32.totalorder %s14, 1
      %s189 = scalar_select %p188, %s14, 1
      %s190 = smul.addr %s189, 8
      %s191 = scalar_lea.vmem %s1, %s190
      %p192 = scmp.lt.s32.totalorder %s14, 1
      %s193 = scalar_select %p192, %s14, 1
      %s194 = smul.addr %s193, 8
      %s195 = scalar_lea.vmem %s2, %s194
      %p196 = scmp.lt.s32.totalorder %s14, 1
      %s197 = scalar_select %p196, %s14, 1
      %s198 = smul.addr %s197, 8
      %s199 = scalar_lea.vmem %s3, %s198
      %v200 = vld [vmem:[%s187] sm:$0xff]
      %v201 = vld [vmem:[%s191] sm:$0xff]
      %v202 = vld [vmem:[%s195] sm:$0xff]
      %vm203 = vcmask 64512
      %v205 = vsel %vm203, %v200, 0
      %v208 = vsel %vm203, %v201, 0
      %210 = vmatprep.subr.mxu0 0.0
      %211 = vmatpush1.xpose.msra.mxu0 %v208
      %212 = vmatprep.subr.mxu0 0.0
      %213 = vmatpush1.xpose.msra.mxu0 0.0
      %214 = vmatprep.subr.mxu0 0.0
      %215 = vmatpush1.xpose.msra.mxu0 0.0
      %216 = vmatprep.subr.mxu0 0.0
      %217 = vmatpush1.xpose.msra.mxu0 0.0
      %218 = vmatprep.subr.mxu0 0.0
      %219 = vmatpush1.xpose.msra.mxu0 0.0
      %220 = vmatprep.subr.mxu0 0.0
      %221 = vmatpush1.xpose.msra.mxu0 0.0
      %222 = vmatprep.subr.mxu0 0.0
      %223 = vmatpush1.xpose.msra.mxu0 0.0
      %224 = vmatprep.subr.mxu0 0.0
      %225 = vmatpush1.xpose.msra.mxu0 0.0
      %226 = vmatprep.subr.mxu0 0.0
      %227 = vmatpush1.xpose.msra.mxu0 0.0
      %228 = vmatprep.subr.mxu0 0.0
      %229 = vmatpush1.xpose.msra.mxu0 0.0
      %230 = vmatprep.subr.mxu0 0.0
      %231 = vmatpush1.xpose.msra.mxu0 0.0
      %232 = vmatprep.subr.mxu0 0.0
      %233 = vmatpush1.xpose.msra.mxu0 0.0
      %234 = vmatprep.subr.mxu0 0.0
      %235 = vmatpush1.xpose.msra.mxu0 0.0
      %236 = vmatprep.subr.mxu0 0.0
      %237 = vmatpush1.xpose.msra.mxu0 0.0
      %238 = vmatprep.subr.mxu0 0.0
      %239 = vmatpush1.xpose.msra.mxu0 0.0
      %240 = vmatprep.subr.mxu0 0.0
      %241 = vmatpush1.xpose.msra.mxu0 0.0
      %242 = vmatprep.subr.mxu0 0.0
      %243 = vmatpush1.xpose.msra.mxu0 0.0
      %244 = vmatprep.subr.mxu0 0.0
      %245 = vmatpush1.xpose.msra.mxu0 0.0
      %246 = vmatprep.subr.mxu0 0.0
      %247 = vmatpush1.xpose.msra.mxu0 0.0
      %248 = vmatprep.subr.mxu0 0.0
      %249 = vmatpush1.xpose.msra.mxu0 0.0
      %250 = vmatprep.subr.mxu0 0.0
      %251 = vmatpush1.xpose.msra.mxu0 0.0
      %252 = vmatprep.subr.mxu0 0.0
      %253 = vmatpush1.xpose.msra.mxu0 0.0
      %254 = vmatprep.subr.mxu0 0.0
      %255 = vmatpush1.xpose.msra.mxu0 0.0
      %256 = vmatprep.subr.mxu0 0.0
      %257 = vmatpush1.xpose.msra.mxu0 0.0
      %258 = vmatprep.subr.mxu0 0.0
      %259 = vmatpush1.xpose.msra.mxu0 0.0
      %260 = vmatprep.subr.mxu0 0.0
      %261 = vmatpush1.xpose.msra.mxu0 0.0
      %262 = vmatprep.subr.mxu0 0.0
      %263 = vmatpush1.xpose.msra.mxu0 0.0
      %264 = vmatprep.subr.mxu0 0.0
      %265 = vmatpush1.xpose.msra.mxu0 0.0
      %266 = vmatprep.subr.mxu0 0.0
      %267 = vmatpush1.xpose.msra.mxu0 0.0
      %268 = vmatprep.subr.mxu0 0.0
      %269 = vmatpush1.xpose.msra.mxu0 0.0
      %270 = vmatprep.subr.mxu0 0.0
      %271 = vmatpush1.xpose.msra.mxu0 0.0
      %272 = vmatprep.subr.mxu0 0.0
      %273 = vmatpush1.xpose.msra.mxu0 0.0
      %274 = vmatprep.mubr.f32.mxu0 0.0
      %275 = vmatmul.mubr.f32.gmra.mrb[0].mxu0 %v205
      %v276 = vpop.f32.mrb[0].mxu0
      %v277 = vadd.f32 0.0, %v276
      %v278 = vpop.f32.mrb[0].mxu0
      %279 = vdwg.mxu0
      %v280 = vmul.f32 %v277, 0.35355338
      %v281 = vsel %vm203, %v280, -inf
      %282 = vmax.xlane.f32.xlu0 %v281
      %v283 = vpop.xlane.xlu0 %282
      %v284 = vsub.f32 %v280, %v283
      %v285 = vmul.f32 %v284, 1.442695
      %v286 = vpow.pop %v285
      %v287 = vsel %vm203, %v286, 0.0
      %288 = vadd.xlane.f32.xlu0 %v287
      %v289 = vpop.xlane.xlu0 %288
      %v291 = vsel %vm203, %v286, 0
      %293 = vmatprep.subr.mxu0 0.0
      %294 = vmatpush1.msra.mxu0 %v202
      %295 = vmatprep.subr.mxu0 0.0
      %296 = vmatpush1.msra.mxu0 0.0
      %297 = vmatprep.subr.mxu0 0.0
      %298 = vmatpush1.msra.mxu0 0.0
      %299 = vmatprep.subr.mxu0 0.0
      %300 = vmatpush1.msra.mxu0 0.0
      %301 = vmatprep.subr.mxu0 0.0
      %302 = vmatpush1.msra.mxu0 0.0
      %303 = vmatprep.subr.mxu0 0.0
      %304 = vmatpush1.msra.mxu0 0.0
      %305 = vmatprep.subr.mxu0 0.0
      %306 = vmatpush1.msra.mxu0 0.0
      %307 = vmatprep.subr.mxu0 0.0
      %308 = vmatpush1.msra.mxu0 0.0
      %309 = vmatprep.subr.mxu0 0.0
      %310 = vmatpush1.msra.mxu0 0.0
      %311 = vmatprep.subr.mxu0 0.0
      %312 = vmatpush1.msra.mxu0 0.0
      %313 = vmatprep.subr.mxu0 0.0
      %314 = vmatpush1.msra.mxu0 0.0
      %315 = vmatprep.subr.mxu0 0.0
      %316 = vmatpush1.msra.mxu0 0.0
      %317 = vmatprep.subr.mxu0 0.0
      %318 = vmatpush1.msra.mxu0 0.0
      %319 = vmatprep.subr.mxu0 0.0
      %320 = vmatpush1.msra.mxu0 0.0
      %321 = vmatprep.subr.mxu0 0.0
      %322 = vmatpush1.msra.mxu0 0.0
      %323 = vmatprep.subr.mxu0 0.0
      %324 = vmatpush1.msra.mxu0 0.0
      %325 = vmatprep.subr.mxu0 0.0
      %326 = vmatpush1.msra.mxu0 0.0
      %327 = vmatprep.subr.mxu0 0.0
      %328 = vmatpush1.msra.mxu0 0.0
      %329 = vmatprep.subr.mxu0 0.0
      %330 = vmatpush1.msra.mxu0 0.0
      %331 = vmatprep.subr.mxu0 0.0
      %332 = vmatpush1.msra.mxu0 0.0
      %333 = vmatprep.subr.mxu0 0.0
      %334 = vmatpush1.msra.mxu0 0.0
      %335 = vmatprep.subr.mxu0 0.0
      %336 = vmatpush1.msra.mxu0 0.0
      %337 = vmatprep.subr.mxu0 0.0
      %338 = vmatpush1.msra.mxu0 0.0
      %339 = vmatprep.subr.mxu0 0.0
      %340 = vmatpush1.msra.mxu0 0.0
      %341 = vmatprep.subr.mxu0 0.0
      %342 = vmatpush1.msra.mxu0 0.0
      %343 = vmatprep.subr.mxu0 0.0
      %344 = vmatpush1.msra.mxu0 0.0
      %345 = vmatprep.subr.mxu0 0.0
      %346 = vmatpush1.msra.mxu0 0.0
      %347 = vmatprep.subr.mxu0 0.0
      %348 = vmatpush1.msra.mxu0 0.0
      %349 = vmatprep.subr.mxu0 0.0
      %350 = vmatpush1.msra.mxu0 0.0
      %351 = vmatprep.subr.mxu0 0.0
      %352 = vmatpush1.msra.mxu0 0.0
      %353 = vmatprep.subr.mxu0 0.0
      %354 = vmatpush1.msra.mxu0 0.0
      %355 = vmatprep.subr.mxu0 0.0
      %356 = vmatpush1.msra.mxu0 0.0
      %357 = vmatprep.mubr.f32.mxu0 0.0
      %358 = vmatmul.mubr.f32.gmra.mrb[0].mxu0 %v291
      %v359 = vpop.f32.mrb[0].mxu0
      %v360 = vadd.f32 0.0, %v359
      %v361 = vpop.f32.mrb[0].mxu0
      %362 = vdwg.mxu0
      %v363 = vrcp.pop %v289
      %v364 = vmul.f32 %v360, %v363
      %365 = vrot.lane.b32.xlu0 %v200, 120
      %v366 = vpop.permute.xlu0 %365
      %367 = vrot.lane.b32.xlu0 %v201, 120
      %v368 = vpop.permute.xlu0 %367
      %v369 = vsel %vm203, %v366, 0
      %v371 = vsel %vm203, %v368, 0
      %373 = vmatprep.subr.mxu0 0.0
      %374 = vmatpush1.xpose.msra.mxu0 %v371
      %375 = vmatprep.subr.mxu0 0.0
      %376 = vmatpush1.xpose.msra.mxu0 0.0
      %377 = vmatprep.subr.mxu0 0.0
      %378 = vmatpush1.xpose.msra.mxu0 0.0
      %379 = vmatprep.subr.mxu0 0.0
      %380 = vmatpush1.xpose.msra.mxu0 0.0
      %381 = vmatprep.subr.mxu0 0.0
      %382 = vmatpush1.xpose.msra.mxu0 0.0
      %383 = vmatprep.subr.mxu0 0.0
      %384 = vmatpush1.xpose.msra.mxu0 0.0
      %385 = vmatprep.subr.mxu0 0.0
      %386 = vmatpush1.xpose.msra.mxu0 0.0
      %387 = vmatprep.subr.mxu0 0.0
      %388 = vmatpush1.xpose.msra.mxu0 0.0
      %389 = vmatprep.subr.mxu0 0.0
      %390 = vmatpush1.xpose.msra.mxu0 0.0
      %391 = vmatprep.subr.mxu0 0.0
      %392 = vmatpush1.xpose.msra.mxu0 0.0
      %393 = vmatprep.subr.mxu0 0.0
      %394 = vmatpush1.xpose.msra.mxu0 0.0
      %395 = vmatprep.subr.mxu0 0.0
      %396 = vmatpush1.xpose.msra.mxu0 0.0
      %397 = vmatprep.subr.mxu0 0.0
      %398 = vmatpush1.xpose.msra.mxu0 0.0
      %399 = vmatprep.subr.mxu0 0.0
      %400 = vmatpush1.xpose.msra.mxu0 0.0
      %401 = vmatprep.subr.mxu0 0.0
      %402 = vmatpush1.xpose.msra.mxu0 0.0
      %403 = vmatprep.subr.mxu0 0.0
      %404 = vmatpush1.xpose.msra.mxu0 0.0
      %405 = vmatprep.subr.mxu0 0.0
      %406 = vmatpush1.xpose.msra.mxu0 0.0
      %407 = vmatprep.subr.mxu0 0.0
      %408 = vmatpush1.xpose.msra.mxu0 0.0
      %409 = vmatprep.subr.mxu0 0.0
      %410 = vmatpush1.xpose.msra.mxu0 0.0
      %411 = vmatprep.subr.mxu0 0.0
      %412 = vmatpush1.xpose.msra.mxu0 0.0
      %413 = vmatprep.subr.mxu0 0.0
      %414 = vmatpush1.xpose.msra.mxu0 0.0
      %415 = vmatprep.subr.mxu0 0.0
      %416 = vmatpush1.xpose.msra.mxu0 0.0
      %417 = vmatprep.subr.mxu0 0.0
      %418 = vmatpush1.xpose.msra.mxu0 0.0
      %419 = vmatprep.subr.mxu0 0.0
      %420 = vmatpush1.xpose.msra.mxu0 0.0
      %421 = vmatprep.subr.mxu0 0.0
      %422 = vmatpush1.xpose.msra.mxu0 0.0
      %423 = vmatprep.subr.mxu0 0.0
      %424 = vmatpush1.xpose.msra.mxu0 0.0
      %425 = vmatprep.subr.mxu0 0.0
      %426 = vmatpush1.xpose.msra.mxu0 0.0
      %427 = vmatprep.subr.mxu0 0.0
      %428 = vmatpush1.xpose.msra.mxu0 0.0
      %429 = vmatprep.subr.mxu0 0.0
      %430 = vmatpush1.xpose.msra.mxu0 0.0
      %431 = vmatprep.subr.mxu0 0.0
      %432 = vmatpush1.xpose.msra.mxu0 0.0
      %433 = vmatprep.subr.mxu0 0.0
      %434 = vmatpush1.xpose.msra.mxu0 0.0
      %435 = vmatprep.subr.mxu0 0.0
      %436 = vmatpush1.xpose.msra.mxu0 0.0
      %437 = vmatprep.mubr.f32.mxu0 0.0
      %438 = vmatmul.mubr.f32.gmra.mrb[0].mxu0 %v369
      %v439 = vpop.f32.mrb[0].mxu0
      %v440 = vadd.f32 0.0, %v439
      %v441 = vpop.f32.mrb[0].mxu0
      %442 = vdwg.mxu0
      %v443 = vmul.f32 %v440, 0.35355338
      %v444 = vsel %vm203, %v443, -inf
      %445 = vmax.xlane.f32.xlu0 %v444
      %v446 = vpop.xlane.xlu0 %445
      %v447 = vsub.f32 %v443, %v446
      %v448 = vmul.f32 %v447, 1.442695
      %v449 = vpow.pop %v448
      %v450 = vsel %vm203, %v449, 0.0
      %451 = vadd.xlane.f32.xlu0 %v450
      %v452 = vpop.xlane.xlu0 %451
      %454 = vrot.lane.b32.xlu0 %v202, 120
      %v455 = vpop.permute.xlu0 %454
      %v458 = vsel %vm203, %v449, 0
      %460 = vmatprep.subr.mxu0 0.0
      %461 = vmatpush1.msra.mxu0 %v455
      %462 = vmatprep.subr.mxu0 0.0
      %463 = vmatpush1.msra.mxu0 0.0
      %464 = vmatprep.subr.mxu0 0.0
      %465 = vmatpush1.msra.mxu0 0.0
      %466 = vmatprep.subr.mxu0 0.0
      %467 = vmatpush1.msra.mxu0 0.0
      %468 = vmatprep.subr.mxu0 0.0
      %469 = vmatpush1.msra.mxu0 0.0
      %470 = vmatprep.subr.mxu0 0.0
      %471 = vmatpush1.msra.mxu0 0.0
      %472 = vmatprep.subr.mxu0 0.0
      %473 = vmatpush1.msra.mxu0 0.0
      %474 = vmatprep.subr.mxu0 0.0
      %475 = vmatpush1.msra.mxu0 0.0
      %476 = vmatprep.subr.mxu0 0.0
      %477 = vmatpush1.msra.mxu0 0.0
      %478 = vmatprep.subr.mxu0 0.0
      %479 = vmatpush1.msra.mxu0 0.0
      %480 = vmatprep.subr.mxu0 0.0
      %481 = vmatpush1.msra.mxu0 0.0
      %482 = vmatprep.subr.mxu0 0.0
      %483 = vmatpush1.msra.mxu0 0.0
      %484 = vmatprep.subr.mxu0 0.0
      %485 = vmatpush1.msra.mxu0 0.0
      %486 = vmatprep.subr.mxu0 0.0
      %487 = vmatpush1.msra.mxu0 0.0
      %488 = vmatprep.subr.mxu0 0.0
      %489 = vmatpush1.msra.mxu0 0.0
      %490 = vmatprep.subr.mxu0 0.0
      %491 = vmatpush1.msra.mxu0 0.0
      %492 = vmatprep.subr.mxu0 0.0
      %493 = vmatpush1.msra.mxu0 0.0
      %494 = vmatprep.subr.mxu0 0.0
      %495 = vmatpush1.msra.mxu0 0.0
      %496 = vmatprep.subr.mxu0 0.0
      %497 = vmatpush1.msra.mxu0 0.0
      %498 = vmatprep.subr.mxu0 0.0
      %499 = vmatpush1.msra.mxu0 0.0
      %500 = vmatprep.subr.mxu0 0.0
      %501 = vmatpush1.msra.mxu0 0.0
      %502 = vmatprep.subr.mxu0 0.0
      %503 = vmatpush1.msra.mxu0 0.0
      %504 = vmatprep.subr.mxu0 0.0
      %505 = vmatpush1.msra.mxu0 0.0
      %506 = vmatprep.subr.mxu0 0.0
      %507 = vmatpush1.msra.mxu0 0.0
      %508 = vmatprep.subr.mxu0 0.0
      %509 = vmatpush1.msra.mxu0 0.0
      %510 = vmatprep.subr.mxu0 0.0
      %511 = vmatpush1.msra.mxu0 0.0
      %512 = vmatprep.subr.mxu0 0.0
      %513 = vmatpush1.msra.mxu0 0.0
      %514 = vmatprep.subr.mxu0 0.0
      %515 = vmatpush1.msra.mxu0 0.0
      %516 = vmatprep.subr.mxu0 0.0
      %517 = vmatpush1.msra.mxu0 0.0
      %518 = vmatprep.subr.mxu0 0.0
      %519 = vmatpush1.msra.mxu0 0.0
      %520 = vmatprep.subr.mxu0 0.0
      %521 = vmatpush1.msra.mxu0 0.0
      %522 = vmatprep.subr.mxu0 0.0
      %523 = vmatpush1.msra.mxu0 0.0
      %524 = vmatprep.mubr.f32.mxu0 0.0
      %525 = vmatmul.mubr.f32.gmra.mrb[0].mxu0 %v458
      %v526 = vpop.f32.mrb[0].mxu0
      %v527 = vadd.f32 0.0, %v526
      %v528 = vpop.f32.mrb[0].mxu0
      %529 = vdwg.mxu0
      %v530 = vrcp.pop %v452
      %v531 = vmul.f32 %v527, %v530
      %532 = vrot.lane.b32.xlu0 %v200, 112
      %v533 = vpop.permute.xlu0 %532
      %534 = vrot.lane.b32.xlu0 %v201, 112
      %v535 = vpop.permute.xlu0 %534
      %v536 = vsel %vm203, %v533, 0
      %v538 = vsel %vm203, %v535, 0
      %540 = vmatprep.subr.mxu0 0.0
      %541 = vmatpush1.xpose.msra.mxu0 %v538
      %542 = vmatprep.subr.mxu0 0.0
      %543 = vmatpush1.xpose.msra.mxu0 0.0
      %544 = vmatprep.subr.mxu0 0.0
      %545 = vmatpush1.xpose.msra.mxu0 0.0
      %546 = vmatprep.subr.mxu0 0.0
      %547 = vmatpush1.xpose.msra.mxu0 0.0
      %548 = vmatprep.subr.mxu0 0.0
      %549 = vmatpush1.xpose.msra.mxu0 0.0
      %550 = vmatprep.subr.mxu0 0.0
      %551 = vmatpush1.xpose.msra.mxu0 0.0
      %552 = vmatprep.subr.mxu0 0.0
      %553 = vmatpush1.xpose.msra.mxu0 0.0
      %554 = vmatprep.subr.mxu0 0.0
      %555 = vmatpush1.xpose.msra.mxu0 0.0
      %556 = vmatprep.subr.mxu0 0.0
      %557 = vmatpush1.xpose.msra.mxu0 0.0
      %558 = vmatprep.subr.mxu0 0.0
      %559 = vmatpush1.xpose.msra.mxu0 0.0
      %560 = vmatprep.subr.mxu0 0.0
      %561 = vmatpush1.xpose.msra.mxu0 0.0
      %562 = vmatprep.subr.mxu0 0.0
      %563 = vmatpush1.xpose.msra.mxu0 0.0
      %564 = vmatprep.subr.mxu0 0.0
      %565 = vmatpush1.xpose.msra.mxu0 0.0
      %566 = vmatprep.subr.mxu0 0.0
      %567 = vmatpush1.xpose.msra.mxu0 0.0
      %568 = vmatprep.subr.mxu0 0.0
      %569 = vmatpush1.xpose.msra.mxu0 0.0
      %570 = vmatprep.subr.mxu0 0.0
      %571 = vmatpush1.xpose.msra.mxu0 0.0
      %572 = vmatprep.subr.mxu0 0.0
      %573 = vmatpush1.xpose.msra.mxu0 0.0
      %574 = vmatprep.subr.mxu0 0.0
      %575 = vmatpush1.xpose.msra.mxu0 0.0
      %576 = vmatprep.subr.mxu0 0.0
      %577 = vmatpush1.xpose.msra.mxu0 0.0
      %578 = vmatprep.subr.mxu0 0.0
      %579 = vmatpush1.xpose.msra.mxu0 0.0
      %580 = vmatprep.subr.mxu0 0.0
      %581 = vmatpush1.xpose.msra.mxu0 0.0
      %582 = vmatprep.subr.mxu0 0.0
      %583 = vmatpush1.xpose.msra.mxu0 0.0
      %584 = vmatprep.subr.mxu0 0.0
      %585 = vmatpush1.xpose.msra.mxu0 0.0
      %586 = vmatprep.subr.mxu0 0.0
      %587 = vmatpush1.xpose.msra.mxu0 0.0
      %588 = vmatprep.subr.mxu0 0.0
      %589 = vmatpush1.xpose.msra.mxu0 0.0
      %590 = vmatprep.subr.mxu0 0.0
      %591 = vmatpush1.xpose.msra.mxu0 0.0
      %592 = vmatprep.subr.mxu0 0.0
      %593 = vmatpush1.xpose.msra.mxu0 0.0
      %594 = vmatprep.subr.mxu0 0.0
      %595 = vmatpush1.xpose.msra.mxu0 0.0
      %596 = vmatprep.subr.mxu0 0.0
      %597 = vmatpush1.xpose.msra.mxu0 0.0
      %598 = vmatprep.subr.mxu0 0.0
      %599 = vmatpush1.xpose.msra.mxu0 0.0
      %600 = vmatprep.subr.mxu0 0.0
      %601 = vmatpush1.xpose.msra.mxu0 0.0
      %602 = vmatprep.subr.mxu0 0.0
      %603 = vmatpush1.xpose.msra.mxu0 0.0
      %604 = vmatprep.mubr.f32.mxu0 0.0
      %605 = vmatmul.mubr.f32.gmra.mrb[0].mxu0 %v536
      %v606 = vpop.f32.mrb[0].mxu0
      %v607 = vadd.f32 0.0, %v606
      %v608 = vpop.f32.mrb[0].mxu0
      %609 = vdwg.mxu0
      %v610 = vmul.f32 %v607, 0.35355338
      %v611 = vsel %vm203, %v610, -inf
      %612 = vmax.xlane.f32.xlu0 %v611
      %v613 = vpop.xlane.xlu0 %612
      %v614 = vsub.f32 %v610, %v613
      %v615 = vmul.f32 %v614, 1.442695
      %v616 = vpow.pop %v615
      %v617 = vsel %vm203, %v616, 0.0
      %618 = vadd.xlane.f32.xlu0 %v617
      %v619 = vpop.xlane.xlu0 %618
      %620 = vrot.lane.b32.xlu0 %v202, 112
      %v621 = vpop.permute.xlu0 %620
      %v624 = vsel %vm203, %v616, 0
      %626 = vmatprep.subr.mxu0 0.0
      %627 = vmatpush1.msra.mxu0 %v621
      %628 = vmatprep.subr.mxu0 0.0
      %629 = vmatpush1.msra.mxu0 0.0
      %630 = vmatprep.subr.mxu0 0.0
      %631 = vmatpush1.msra.mxu0 0.0
      %632 = vmatprep.subr.mxu0 0.0
      %633 = vmatpush1.msra.mxu0 0.0
      %634 = vmatprep.subr.mxu0 0.0
      %635 = vmatpush1.msra.mxu0 0.0
      %636 = vmatprep.subr.mxu0 0.0
      %637 = vmatpush1.msra.mxu0 0.0
      %638 = vmatprep.subr.mxu0 0.0
      %639 = vmatpush1.msra.mxu0 0.0
      %640 = vmatprep.subr.mxu0 0.0
      %641 = vmatpush1.msra.mxu0 0.0
      %642 = vmatprep.subr.mxu0 0.0
      %643 = vmatpush1.msra.mxu0 0.0
      %644 = vmatprep.subr.mxu0 0.0
      %645 = vmatpush1.msra.mxu0 0.0
      %646 = vmatprep.subr.mxu0 0.0
      %647 = vmatpush1.msra.mxu0 0.0
      %648 = vmatprep.subr.mxu0 0.0
      %649 = vmatpush1.msra.mxu0 0.0
      %650 = vmatprep.subr.mxu0 0.0
      %651 = vmatpush1.msra.mxu0 0.0
      %652 = vmatprep.subr.mxu0 0.0
      %653 = vmatpush1.msra.mxu0 0.0
      %654 = vmatprep.subr.mxu0 0.0
      %655 = vmatpush1.msra.mxu0 0.0
      %656 = vmatprep.subr.mxu0 0.0
      %657 = vmatpush1.msra.mxu0 0.0
      %658 = vmatprep.subr.mxu0 0.0
      %659 = vmatpush1.msra.mxu0 0.0
      %660 = vmatprep.subr.mxu0 0.0
      %661 = vmatpush1.msra.mxu0 0.0
      %662 = vmatprep.subr.mxu0 0.0
      %663 = vmatpush1.msra.mxu0 0.0
      %664 = vmatprep.subr.mxu0 0.0
      %665 = vmatpush1.msra.mxu0 0.0
      %666 = vmatprep.subr.mxu0 0.0
      %667 = vmatpush1.msra.mxu0 0.0
      %668 = vmatprep.subr.mxu0 0.0
      %669 = vmatpush1.msra.mxu0 0.0
      %670 = vmatprep.subr.mxu0 0.0
      %671 = vmatpush1.msra.mxu0 0.0
      %672 = vmatprep.subr.mxu0 0.0
      %673 = vmatpush1.msra.mxu0 0.0
      %674 = vmatprep.subr.mxu0 0.0
      %675 = vmatpush1.msra.mxu0 0.0
      %676 = vmatprep.subr.mxu0 0.0
      %677 = vmatpush1.msra.mxu0 0.0
      %678 = vmatprep.subr.mxu0 0.0
      %679 = vmatpush1.msra.mxu0 0.0
      %680 = vmatprep.subr.mxu0 0.0
      %681 = vmatpush1.msra.mxu0 0.0
      %682 = vmatprep.subr.mxu0 0.0
      %683 = vmatpush1.msra.mxu0 0.0
      %684 = vmatprep.subr.mxu0 0.0
      %685 = vmatpush1.msra.mxu0 0.0
      %686 = vmatprep.subr.mxu0 0.0
      %687 = vmatpush1.msra.mxu0 0.0
      %688 = vmatprep.subr.mxu0 0.0
      %689 = vmatpush1.msra.mxu0 0.0
      %690 = vmatprep.mubr.f32.mxu0 0.0
      %691 = vmatmul.mubr.f32.gmra.mrb[0].mxu0 %v624
      %v692 = vpop.f32.mrb[0].mxu0
      %v693 = vadd.f32 0.0, %v692
      %v694 = vpop.f32.mrb[0].mxu0
      %695 = vdwg.mxu0
      %v696 = vrcp.pop %v619
      %v697 = vmul.f32 %v693, %v696
      %698 = vrot.lane.b32.xlu0 %v200, 104
      %v699 = vpop.permute.xlu0 %698
      %700 = vrot.lane.b32.xlu0 %v201, 104
      %v701 = vpop.permute.xlu0 %700
      %v702 = vsel %vm203, %v699, 0
      %v704 = vsel %vm203, %v701, 0
      %706 = vmatprep.subr.mxu0 0.0
      %707 = vmatpush1.xpose.msra.mxu0 %v704
      %708 = vmatprep.subr.mxu0 0.0
      %709 = vmatpush1.xpose.msra.mxu0 0.0
      %710 = vmatprep.subr.mxu0 0.0
      %711 = vmatpush1.xpose.msra.mxu0 0.0
      %712 = vmatprep.subr.mxu0 0.0
      %713 = vmatpush1.xpose.msra.mxu0 0.0
      %714 = vmatprep.subr.mxu0 0.0
      %715 = vmatpush1.xpose.msra.mxu0 0.0
      %716 = vmatprep.subr.mxu0 0.0
      %717 = vmatpush1.xpose.msra.mxu0 0.0
      %718 = vmatprep.subr.mxu0 0.0
      %719 = vmatpush1.xpose.msra.mxu0 0.0
      %720 = vmatprep.subr.mxu0 0.0
      %721 = vmatpush1.xpose.msra.mxu0 0.0
      %722 = vmatprep.subr.mxu0 0.0
      %723 = vmatpush1.xpose.msra.mxu0 0.0
      %724 = vmatprep.subr.mxu0 0.0
      %725 = vmatpush1.xpose.msra.mxu0 0.0
      %726 = vmatprep.subr.mxu0 0.0
      %727 = vmatpush1.xpose.msra.mxu0 0.0
      %728 = vmatprep.subr.mxu0 0.0
      %729 = vmatpush1.xpose.msra.mxu0 0.0
      %730 = vmatprep.subr.mxu0 0.0
      %731 = vmatpush1.xpose.msra.mxu0 0.0
      %732 = vmatprep.subr.mxu0 0.0
      %733 = vmatpush1.xpose.msra.mxu0 0.0
      %734 = vmatprep.subr.mxu0 0.0
      %735 = vmatpush1.xpose.msra.mxu0 0.0
      %736 = vmatprep.subr.mxu0 0.0
      %737 = vmatpush1.xpose.msra.mxu0 0.0
      %738 = vmatprep.subr.mxu0 0.0
      %739 = vmatpush1.xpose.msra.mxu0 0.0
      %740 = vmatprep.subr.mxu0 0.0
      %741 = vmatpush1.xpose.msra.mxu0 0.0
      %742 = vmatprep.subr.mxu0 0.0
      %743 = vmatpush1.xpose.msra.mxu0 0.0
      %744 = vmatprep.subr.mxu0 0.0
      %745 = vmatpush1.xpose.msra.mxu0 0.0
      %746 = vmatprep.subr.mxu0 0.0
      %747 = vmatpush1.xpose.msra.mxu0 0.0
      %748 = vmatprep.subr.mxu0 0.0
      %749 = vmatpush1.xpose.msra.mxu0 0.0
      %750 = vmatprep.subr.mxu0 0.0
      %751 = vmatpush1.xpose.msra.mxu0 0.0
      %752 = vmatprep.subr.mxu0 0.0
      %753 = vmatpush1.xpose.msra.mxu0 0.0
      %754 = vmatprep.subr.mxu0 0.0
      %755 = vmatpush1.xpose.msra.mxu0 0.0
      %756 = vmatprep.subr.mxu0 0.0
      %757 = vmatpush1.xpose.msra.mxu0 0.0
      %758 = vmatprep.subr.mxu0 0.0
      %759 = vmatpush1.xpose.msra.mxu0 0.0
      %760 = vmatprep.subr.mxu0 0.0
      %761 = vmatpush1.xpose.msra.mxu0 0.0
      %762 = vmatprep.subr.mxu0 0.0
      %763 = vmatpush1.xpose.msra.mxu0 0.0
      %764 = vmatprep.subr.mxu0 0.0
      %765 = vmatpush1.xpose.msra.mxu0 0.0
      %766 = vmatprep.subr.mxu0 0.0
      %767 = vmatpush1.xpose.msra.mxu0 0.0
      %768 = vmatprep.subr.mxu0 0.0
      %769 = vmatpush1.xpose.msra.mxu0 0.0
      %770 = vmatprep.mubr.f32.mxu0 0.0
      %771 = vmatmul.mubr.f32.gmra.mrb[0].mxu0 %v702
      %v772 = vpop.f32.mrb[0].mxu0
      %v773 = vadd.f32 0.0, %v772
      %v774 = vpop.f32.mrb[0].mxu0
      %775 = vdwg.mxu0
      %v776 = vmul.f32 %v773, 0.35355338
      %v777 = vsel %vm203, %v776, -inf
      %778 = vmax.xlane.f32.xlu0 %v777
      %v779 = vpop.xlane.xlu0 %778
      %v780 = vsub.f32 %v776, %v779
      %v781 = vmul.f32 %v780, 1.442695
      %v782 = vpow.pop %v781
      %v783 = vsel %vm203, %v782, 0.0
      %784 = vadd.xlane.f32.xlu0 %v783
      %v785 = vpop.xlane.xlu0 %784
      %786 = vrot.lane.b32.xlu0 %v202, 104
      %v787 = vpop.permute.xlu0 %786
      %v790 = vsel %vm203, %v782, 0
      %792 = vmatprep.subr.mxu0 0.0
      %793 = vmatpush1.msra.mxu0 %v787
      %794 = vmatprep.subr.mxu0 0.0
      %795 = vmatpush1.msra.mxu0 0.0
      %796 = vmatprep.subr.mxu0 0.0
      %797 = vmatpush1.msra.mxu0 0.0
      %798 = vmatprep.subr.mxu0 0.0
      %799 = vmatpush1.msra.mxu0 0.0
      %800 = vmatprep.subr.mxu0 0.0
      %801 = vmatpush1.msra.mxu0 0.0
      %802 = vmatprep.subr.mxu0 0.0
      %803 = vmatpush1.msra.mxu0 0.0
      %804 = vmatprep.subr.mxu0 0.0
      %805 = vmatpush1.msra.mxu0 0.0
      %806 = vmatprep.subr.mxu0 0.0
      %807 = vmatpush1.msra.mxu0 0.0
      %808 = vmatprep.subr.mxu0 0.0
      %809 = vmatpush1.msra.mxu0 0.0
      %810 = vmatprep.subr.mxu0 0.0
      %811 = vmatpush1.msra.mxu0 0.0
      %812 = vmatprep.subr.mxu0 0.0
      %813 = vmatpush1.msra.mxu0 0.0
      %814 = vmatprep.subr.mxu0 0.0
      %815 = vmatpush1.msra.mxu0 0.0
      %816 = vmatprep.subr.mxu0 0.0
      %817 = vmatpush1.msra.mxu0 0.0
      %818 = vmatprep.subr.mxu0 0.0
      %819 = vmatpush1.msra.mxu0 0.0
      %820 = vmatprep.subr.mxu0 0.0
      %821 = vmatpush1.msra.mxu0 0.0
      %822 = vmatprep.subr.mxu0 0.0
      %823 = vmatpush1.msra.mxu0 0.0
      %824 = vmatprep.subr.mxu0 0.0
      %825 = vmatpush1.msra.mxu0 0.0
      %826 = vmatprep.subr.mxu0 0.0
      %827 = vmatpush1.msra.mxu0 0.0
      %828 = vmatprep.subr.mxu0 0.0
      %829 = vmatpush1.msra.mxu0 0.0
      %830 = vmatprep.subr.mxu0 0.0
      %831 = vmatpush1.msra.mxu0 0.0
      %832 = vmatprep.subr.mxu0 0.0
      %833 = vmatpush1.msra.mxu0 0.0
      %834 = vmatprep.subr.mxu0 0.0
      %835 = vmatpush1.msra.mxu0 0.0
      %836 = vmatprep.subr.mxu0 0.0
      %837 = vmatpush1.msra.mxu0 0.0
      %838 = vmatprep.subr.mxu0 0.0
      %839 = vmatpush1.msra.mxu0 0.0
      %840 = vmatprep.subr.mxu0 0.0
      %841 = vmatpush1.msra.mxu0 0.0
      %842 = vmatprep.subr.mxu0 0.0
      %843 = vmatpush1.msra.mxu0 0.0
      %844 = vmatprep.subr.mxu0 0.0
      %845 = vmatpush1.msra.mxu0 0.0
      %846 = vmatprep.subr.mxu0 0.0
      %847 = vmatpush1.msra.mxu0 0.0
      %848 = vmatprep.subr.mxu0 0.0
      %849 = vmatpush1.msra.mxu0 0.0
      %850 = vmatprep.subr.mxu0 0.0
      %851 = vmatpush1.msra.mxu0 0.0
      %852 = vmatprep.subr.mxu0 0.0
      %853 = vmatpush1.msra.mxu0 0.0
      %854 = vmatprep.subr.mxu0 0.0
      %855 = vmatpush1.msra.mxu0 0.0
      %856 = vmatprep.mubr.f32.mxu0 0.0
      %857 = vmatmul.mubr.f32.gmra.mrb[0].mxu0 %v790
      %v858 = vpop.f32.mrb[0].mxu0
      %v859 = vadd.f32 0.0, %v858
      %v860 = vpop.f32.mrb[0].mxu0
      %861 = vdwg.mxu0
      %v862 = vrcp.pop %v785
      %v863 = vmul.f32 %v859, %v862
      %865 = vrot.lane.b32.xlu0 %v531, 8
      %v866 = vpop.permute.xlu0 %865
      %869 = vrot.lane.b32.xlu0 %v697, 16
      %v870 = vpop.permute.xlu0 %869
      %873 = vrot.lane.b32.xlu0 %v863, 24
      %v874 = vpop.permute.xlu0 %873
      %v876 = vsel %vm203, %v364, %v866
      %vm877 = vcmask 130048
      %v878 = vsel %vm877, %v876, %v870
      %vm879 = vcmask 195584
      %v880 = vsel %vm879, %v878, %v874
      %vm881 = vcmask 261120
      %882 = vst.msk [vmem:[%s199] sm:$0xff] %vm881, %v880
      %p883 = scmp.lt.s32.totalorder %s14, 1
      %s884 = scalar_select %p883, %s14, 1
      %s885 = smul.addr %s884, 8
      %s886 = scalar_lea.vmem %s3, %s885
      // Predicated region
      $region33: #{transformer_encoder_forward.12} parent=31 // pred_check
        %p887 = pneg %p110
      $region34: #{transformer_encoder_forward.12} parent=31 // pred_check_branch
        %889 = sbr.rel (%p887) target = $region36
      $region35: #{transformer_encoder_forward.12} parent=31 // pred_region
        _
      $region36: #{transformer_encoder_forward.12} parent=31 // pred_fallthru
        _
    $region32: #{transformer_encoder_forward.12} parent=5 // pred_fallthru
      _
    %p890 = scmp.le.s32.totalorder 2, %s9
    // Predicated region
    $region37: #{transformer_encoder_forward.12} parent=5 // pred_check
      %p891 = pneg %p890
    $region38: #{transformer_encoder_forward.12} parent=5 // pred_check_branch
      %893 = sbr.rel (%p891) target = $region40
    $region39: #{transformer_encoder_forward.12} parent=5 // pred_region
      %s894 = ssub.s32 %s9, 2
      // Predicated region
      $region41: #{transformer_encoder_forward.12} parent=39 // pred_check
        %p895 = pneg %p116
      $region42: #{transformer_encoder_forward.12} parent=39 // pred_check_branch
        %897 = sbr.rel (%p895) target = $region44
      $region43: #{transformer_encoder_forward.12} parent=39 // pred_region
        %p898 = scmp.lt.s32.totalorder %s15, 1
        %s899 = scalar_select %p898, %s15, 1
        %s900 = smul.addr %s899, 8
        %s901 = scalar_lea.vmem %s3, %s900
      $region44: #{transformer_encoder_forward.12} parent=39 // pred_fallthru
        _
    $region40: #{transformer_encoder_forward.12} parent=5 // pred_fallthru
      _
  $region6: #{transformer_encoder_forward.12} parent=0 // loop_footer
    %s13 = sadd.s32 1, %s9
  $region7: #{transformer_encoder_forward.12} parent=0 // loop_footer_branch
    %8 = sbr.rel target = $region3
  $region8: #{transformer_encoder_forward.12} parent=0 // loop_exit
    _

// kernel: transformer_encoder_forward.13
$region0: #{transformer_encoder_forward.13}
  #allocation0 [shape = 'u32[]', space=smem, size = 0x4, offset = 0x4, fixed_abs, tag = 'smem constant byte address 0x4 - core index']
  #allocation1 [shape = 'u32[144,128]{1,0:T(1,128)}', space=vmem, size = 0x12000, scoped, tag = 'internal scratch']
  %s0 = inlined_call_operand.vmem [shape: f32[16,32], index: 0, kind: input, shape index: {}]
  %s1 = inlined_call_operand.vmem [shape: f32[16,32], index: 1, kind: input, shape index: {}]
  %s2 = inlined_call_operand.hbm [shape: f32[32,32], index: 2, kind: input, shape index: {}]
  %s3 = inlined_call_operand.hbm [shape: f32[1,32], index: 3, kind: input, shape index: {}]
  %s4 = inlined_call_operand.hbm [shape: f32[1,32], index: 4, kind: input, shape index: {}]
  %s5 = inlined_call_operand.hbm [shape: f32[1,32], index: 5, kind: input, shape index: {}]
  %s6 = inlined_call_operand.vmem [shape: f32[16,32], index: 6, kind: output, shape index: {}]
  %s7 = sld [smem:[#allocation0]]
  $region50: #{transformer_encoder_forward.13} parent=0
    _
  %s9 = ssub.s32 1, %s7
  %s10 = scalar_select 0, %s9, %s7
  $region1: #{transformer_encoder_forward.13} parent=0
    #allocation2 [shape = 'u8[16384]{0}', space=vmem, size = 0x4000, scoped, tag = 'input window, operand 2, single buffered']
    #allocation3 [shape = 's32[1]{0}', space=sflag, size = 0x4, scoped, tag = 'scoped memory for transformer_encoder_forward.13']
    #allocation4 [shape = 'u8[512]{0}', space=vmem, size = 0x400, scoped, tag = 'input window, operand 3, single buffered']
    #allocation5 [shape = 's32[1]{0}', space=sflag, size = 0x4, scoped, tag = 'scoped memory for transformer_encoder_forward.13']
    #allocation6 [shape = 'u8[512]{0}', space=vmem, size = 0x400, scoped, tag = 'input window, operand 4, single buffered']
    #allocation7 [shape = 'u8[512]{0}', space=vmem, size = 0x400, scoped, tag = 'input window, operand 5, single buffered']
    #allocation8 [shape = 's32[1]{0}', space=sflag, size = 0x4, scoped, tag = 'scoped memory for transformer_encoder_forward.13']
    %11 = vsyncpa [#allocation3], 0
    %12 = vsyncpa [#allocation5], 0
    %13 = vsyncpa [#allocation8], 0
    // Predicated region
    $region2: #{transformer_encoder_forward.13} parent=1 // pred_check
      _
    $region3: #{transformer_encoder_forward.13} parent=1 // pred_check_branch
      %15 = sbr.rel (0) target = $region5
    $region4: #{transformer_encoder_forward.13} parent=1 // pred_region
      _
    $region5: #{transformer_encoder_forward.13} parent=1 // pred_fallthru
      _
    // Predicated region
    $region6: #{transformer_encoder_forward.13} parent=1 // pred_check
      _
    $region7: #{transformer_encoder_forward.13} parent=1 // pred_check_branch
      %17 = sbr.rel (0) target = $region9
    $region8: #{transformer_encoder_forward.13} parent=1 // pred_region
      _
    $region9: #{transformer_encoder_forward.13} parent=1 // pred_fallthru
      _
    // Predicated region
    $region10: #{transformer_encoder_forward.13} parent=1 // pred_check
      _
    $region11: #{transformer_encoder_forward.13} parent=1 // pred_check_branch
      %19 = sbr.rel (0) target = $region13
    $region12: #{transformer_encoder_forward.13} parent=1 // pred_region
      %s21 = ssub.s32 512, 512
      %22 = vsyncadd [#allocation3], %s21
      %s23 = sshll.u32 [#allocation2], 4
      %s24 = int_to_ptr.vmem [resolvable:$true] %s23
      %29 = dma.hbm_to_vmem [thread:$0]  %s2, 512, %s24, [#allocation3], 128, 128, 8
    $region13: #{transformer_encoder_forward.13} parent=1 // pred_fallthru
      _
    // Predicated region
    $region14: #{transformer_encoder_forward.13} parent=1 // pred_check
      _
    $region15: #{transformer_encoder_forward.13} parent=1 // pred_check_branch
      %31 = sbr.rel (0) target = $region17
    $region16: #{transformer_encoder_forward.13} parent=1 // pred_region
      %s33 = ssub.s32 16, 16
      %34 = vsyncadd [#allocation5], %s33
      %s36 = sshll.u32 [#allocation4], 4
      %s37 = int_to_ptr.vmem [resolvable:$true] %s36
      %39 = dma.hbm_to_vmem [thread:$0]  %s3, 16, %s37, [#allocation5]
    $region17: #{transformer_encoder_forward.13} parent=1 // pred_fallthru
      _
    // Predicated region
    $region18: #{transformer_encoder_forward.13} parent=1 // pred_check
      _
    $region19: #{transformer_encoder_forward.13} parent=1 // pred_check_branch
      %41 = sbr.rel (0) target = $region21
    $region20: #{transformer_encoder_forward.13} parent=1 // pred_region
      %s43 = ssub.s32 16, 16
      %44 = vsyncadd [#allocation5], %s43
      %s46 = sshll.u32 [#allocation6], 4
      %s47 = int_to_ptr.vmem [resolvable:$true] %s46
      %49 = dma.hbm_to_vmem [thread:$0]  %s4, 16, %s47, [#allocation5]
    $region21: #{transformer_encoder_forward.13} parent=1 // pred_fallthru
      _
    // Predicated region
    $region22: #{transformer_encoder_forward.13} parent=1 // pred_check
      _
    $region23: #{transformer_encoder_forward.13} parent=1 // pred_check_branch
      %51 = sbr.rel (0) target = $region25
    $region24: #{transformer_encoder_forward.13} parent=1 // pred_region
      %s53 = ssub.s32 16, 16
      %54 = vsyncadd [#allocation8], %s53
      %s56 = sshll.u32 [#allocation7], 4
      %s57 = int_to_ptr.vmem [resolvable:$true] %s56
      %59 = dma.hbm_to_vmem [thread:$0]  %s5, 16, %s57, [#allocation8]
    $region25: #{transformer_encoder_forward.13} parent=1 // pred_fallthru
      _
    // Predicated region
    $region26: #{transformer_encoder_forward.13} parent=1 // pred_check
      _
    $region27: #{transformer_encoder_forward.13} parent=1 // pred_check_branch
      %61 = sbr.rel (0) target = $region29
    $region28: #{transformer_encoder_forward.13} parent=1 // pred_region
      %62 = dma.done [#allocation3], 512
    $region29: #{transformer_encoder_forward.13} parent=1 // pred_fallthru
      _
    // Predicated region
    $region30: #{transformer_encoder_forward.13} parent=1 // pred_check
      _
    $region31: #{transformer_encoder_forward.13} parent=1 // pred_check_branch
      %64 = sbr.rel (0) target = $region33
    $region32: #{transformer_encoder_forward.13} parent=1 // pred_region
      %65 = dma.done [#allocation5], 16
    $region33: #{transformer_encoder_forward.13} parent=1 // pred_fallthru
      _
    // Predicated region
    $region34: #{transformer_encoder_forward.13} parent=1 // pred_check
      _
    $region35: #{transformer_encoder_forward.13} parent=1 // pred_check_branch
      %67 = sbr.rel (0) target = $region37
    $region36: #{transformer_encoder_forward.13} parent=1 // pred_region
      %68 = dma.done [#allocation5], 16
    $region37: #{transformer_encoder_forward.13} parent=1 // pred_fallthru
      _
    // Predicated region
    $region38: #{transformer_encoder_forward.13} parent=1 // pred_check
      _
    $region39: #{transformer_encoder_forward.13} parent=1 // pred_check_branch
      %70 = sbr.rel (0) target = $region41
    $region40: #{transformer_encoder_forward.13} parent=1 // pred_region
      %71 = dma.done [#allocation8], 16
    $region41: #{transformer_encoder_forward.13} parent=1 // pred_fallthru
      _
    %v72 = vld [vmem:[%s0] sm:$0xff]
    %v73 = vld [vmem:[%s0 + $0x8] sm:$0xff]
    %v74 = vld [vmem:[#allocation2] sm:$0xff]
    %v75 = vld [vmem:[#allocation2 + $0x8] sm:$0xff]
    %v76 = vld [vmem:[#allocation2 + $0x10] sm:$0xff]
    %v77 = vld [vmem:[#allocation2 + $0x18] sm:$0xff]
    %v78 = vld [vmem:[#allocation4] sm:$0x1]
    %v80 = vlaneseq
    %v81 = vshrl.u32 %v80, 7
    %v82 = vsub.s32 0, %v81
    %v83 = vrot.slane %v78, %v82
    %vm85 = vcmask 261120
    %v87 = vsel %vm85, %v72, 0
    %v90 = vsel %vm85, %v73, 0
    %92 = vmatprep.subr.mxu0 0.0
    %93 = vmatpush1.msra.mxu0 %v74
    %94 = vmatprep.subr.mxu0 0.0
    %95 = vmatpush1.msra.mxu0 %v75
    %96 = vmatprep.subr.mxu0 0.0
    %97 = vmatpush1.msra.mxu0 %v76
    %98 = vmatprep.subr.mxu0 0.0
    %99 = vmatpush1.msra.mxu0 %v77
    %100 = vmatprep.subr.mxu0 0.0
    %101 = vmatpush1.msra.mxu0 0.0
    %102 = vmatprep.subr.mxu0 0.0
    %103 = vmatpush1.msra.mxu0 0.0
    %104 = vmatprep.subr.mxu0 0.0
    %105 = vmatpush1.msra.mxu0 0.0
    %106 = vmatprep.subr.mxu0 0.0
    %107 = vmatpush1.msra.mxu0 0.0
    %108 = vmatprep.subr.mxu0 0.0
    %109 = vmatpush1.msra.mxu0 0.0
    %110 = vmatprep.subr.mxu0 0.0
    %111 = vmatpush1.msra.mxu0 0.0
    %112 = vmatprep.subr.mxu0 0.0
    %113 = vmatpush1.msra.mxu0 0.0
    %114 = vmatprep.subr.mxu0 0.0
    %115 = vmatpush1.msra.mxu0 0.0
    %116 = vmatprep.subr.mxu0 0.0
    %117 = vmatpush1.msra.mxu0 0.0
    %118 = vmatprep.subr.mxu0 0.0
    %119 = vmatpush1.msra.mxu0 0.0
    %120 = vmatprep.subr.mxu0 0.0
    %121 = vmatpush1.msra.mxu0 0.0
    %122 = vmatprep.subr.mxu0 0.0
    %123 = vmatpush1.msra.mxu0 0.0
    %124 = vmatprep.subr.mxu0 0.0
    %125 = vmatpush1.msra.mxu0 0.0
    %126 = vmatprep.subr.mxu0 0.0
    %127 = vmatpush1.msra.mxu0 0.0
    %128 = vmatprep.subr.mxu0 0.0
    %129 = vmatpush1.msra.mxu0 0.0
    %130 = vmatprep.subr.mxu0 0.0
    %131 = vmatpush1.msra.mxu0 0.0
    %132 = vmatprep.subr.mxu0 0.0
    %133 = vmatpush1.msra.mxu0 0.0
    %134 = vmatprep.subr.mxu0 0.0
    %135 = vmatpush1.msra.mxu0 0.0
    %136 = vmatprep.subr.mxu0 0.0
    %137 = vmatpush1.msra.mxu0 0.0
    %138 = vmatprep.subr.mxu0 0.0
    %139 = vmatpush1.msra.mxu0 0.0
    %140 = vmatprep.subr.mxu0 0.0
    %141 = vmatpush1.msra.mxu0 0.0
    %142 = vmatprep.subr.mxu0 0.0
    %143 = vmatpush1.msra.mxu0 0.0
    %144 = vmatprep.subr.mxu0 0.0
    %145 = vmatpush1.msra.mxu0 0.0
    %146 = vmatprep.subr.mxu0 0.0
    %147 = vmatpush1.msra.mxu0 0.0
    %148 = vmatprep.subr.mxu0 0.0
    %149 = vmatpush1.msra.mxu0 0.0
    %150 = vmatprep.subr.mxu0 0.0
    %151 = vmatpush1.msra.mxu0 0.0
    %152 = vmatprep.subr.mxu0 0.0
    %153 = vmatpush1.msra.mxu0 0.0
    %154 = vmatprep.subr.mxu0 0.0
    %155 = vmatpush1.msra.mxu0 0.0
    %156 = vmatprep.mubr.f32.mxu0 0.0
    %157 = vmatmul.mubr.f32.gmra.mrb[0].mxu0 %v87
    %v158 = vpop.f32.mrb[0].mxu0
    %v159 = vadd.f32 %v83, %v158
    %v160 = vpop.f32.mrb[0].mxu0
    %161 = vmatprep.mubr.f32.mxu0 0.0
    %162 = vmatmul.mubr.f32.gmra.mrb[0].mxu0 %v90
    %v163 = vpop.f32.mrb[0].mxu0
    %v164 = vadd.f32 %v83, %v163
    %v165 = vpop.f32.mrb[0].mxu0
    %166 = vdwg.mxu0
    %v167 = vld [vmem:[%s1] sm:$0xff]
    %v168 = vld [vmem:[%s1 + $0x8] sm:$0xff]
    %v169 = vadd.f32 %v159, %v167
    %v170 = vadd.f32 %v164, %v168
    %v171 = vsel %vm85, %v169, 0.0
    %172 = vadd.xlane.f32.xlu0 %v171
    %v173 = vpop.xlane.xlu0 %172
    %v174 = vsel %vm85, %v170, 0.0
    %175 = vadd.xlane.f32.xlu0 %v174
    %v176 = vpop.xlane.xlu0 %175
    %v177 = vrcp.pop 32.0
    %v178 = vmul.f32 %v173, %v177
    %v179 = vmul.f32 %v176, %v177
    %v180 = vsub.f32 %v169, %v178
    %v181 = vsub.f32 %v170, %v179
    %v182 = vmul.f32 %v180, %v180
    %v183 = vmul.f32 %v181, %v181
    %v184 = vsel %vm85, %v182, 0.0
    %185 = vadd.xlane.f32.xlu0 %v184
    %v186 = vpop.xlane.xlu0 %185
    %v187 = vsel %vm85, %v183, 0.0
    %188 = vadd.xlane.f32.xlu0 %v187
    %v189 = vpop.xlane.xlu0 %188
    %v190 = vmul.f32 %v186, %v177
    %v191 = vmul.f32 %v189, %v177
    %v192 = vadd.f32 %v190, 1e-05
    %v193 = vadd.f32 %v191, 1e-05
    %v194 = vrsqrt.pop %v192
    %v195 = vrsqrt.pop %v193
    %v196 = vmul.f32 %v180, %v194
    %v197 = vmul.f32 %v181, %v195
    %v198 = vld [vmem:[#allocation6] sm:$0x1]
    %v200 = vlaneseq
    %v201 = vshrl.u32 %v200, 7
    %v202 = vsub.s32 0, %v201
    %v203 = vrot.slane %v198, %v202
    %v205 = vmul.f32 %v196, %v203
    %v206 = vmul.f32 %v197, %v203
    %v207 = vld [vmem:[#allocation7] sm:$0x1]
    %v209 = vlaneseq
    %v210 = vshrl.u32 %v209, 7
    %v211 = vsub.s32 0, %v210
    %v212 = vrot.slane %v207, %v211
    %v214 = vadd.f32 %v205, %v212
    %v215 = vadd.f32 %v206, %v212
    %216 = vst.msk [vmem:[%s6] sm:$0xff] %vm85, %v214
    %217 = vst.msk [vmem:[%s6 + $0x8] sm:$0xff] %vm85, %v215
    // Predicated region
    $region42: #{transformer_encoder_forward.13} parent=1 // pred_check
      _
    $region43: #{transformer_encoder_forward.13} parent=1 // pred_check_branch
      %219 = sbr.rel (0) target = $region45
    $region44: #{transformer_encoder_forward.13} parent=1 // pred_region
      _
    $region45: #{transformer_encoder_forward.13} parent=1 // pred_fallthru
      _
    // Predicated region
    $region46: #{transformer_encoder_forward.13} parent=1 // pred_check
      _
    $region47: #{transformer_encoder_forward.13} parent=1 // pred_check_branch
      %221 = sbr.rel (0) target = $region49
    $region48: #{transformer_encoder_forward.13} parent=1 // pred_region
      _
    $region49: #{transformer_encoder_forward.13} parent=1 // pred_fallthru
      _
    %222 = vsyncpa [#allocation3], 1
    %223 = vsyncpa [#allocation5], 1
    %224 = vsyncpa [#allocation8], 1

// kernel: transformer_encoder_forward.17
$region0: #{transformer_encoder_forward.17}
  #allocation0 [shape = 'u32[]', space=smem, size = 0x4, offset = 0x4, fixed_abs, tag = 'smem constant byte address 0x4 - core index']
  #allocation1 [shape = 'u32[144,128]{1,0:T(1,128)}', space=vmem, size = 0x12000, scoped, tag = 'internal scratch']
  %s0 = inlined_call_operand.vmem [shape: f32[16,32], index: 0, kind: input, shape index: {}]
  %s1 = inlined_call_operand.vmem [shape: f32[16,32], index: 1, kind: input, shape index: {}]
  %s2 = inlined_call_operand.vmem [shape: f32[32,32], index: 2, kind: input, shape index: {}]
  %s3 = inlined_call_operand.vmem [shape: f32[1,32], index: 3, kind: input, shape index: {}]
  %s4 = inlined_call_operand.vmem [shape: f32[1,32], index: 4, kind: input, shape index: {}]
  %s5 = inlined_call_operand.vmem [shape: f32[1,32], index: 5, kind: input, shape index: {}]
  %s6 = inlined_call_operand.vmem [shape: f32[16,32], index: 6, kind: output, shape index: {}]
  %s7 = sld [smem:[#allocation0]]
  $region34: #{transformer_encoder_forward.17} parent=0
    _
  %s9 = ssub.s32 1, %s7
  %s10 = scalar_select 0, %s9, %s7
  // Predicated region
  $region2: #{transformer_encoder_forward.17} parent=0 // pred_check
    _
  $region3: #{transformer_encoder_forward.17} parent=0 // pred_check_branch
    %12 = sbr.rel (0) target = $region5
  $region4: #{transformer_encoder_forward.17} parent=0 // pred_region
    _
  $region5: #{transformer_encoder_forward.17} parent=0 // pred_fallthru
    _
  // Predicated region
  $region6: #{transformer_encoder_forward.17} parent=0 // pred_check
    _
  $region7: #{transformer_encoder_forward.17} parent=0 // pred_check_branch
    %14 = sbr.rel (0) target = $region9
  $region8: #{transformer_encoder_forward.17} parent=0 // pred_region
    _
  $region9: #{transformer_encoder_forward.17} parent=0 // pred_fallthru
    _
  // Predicated region
  $region10: #{transformer_encoder_forward.17} parent=0 // pred_check
    _
  $region11: #{transformer_encoder_forward.17} parent=0 // pred_check_branch
    %16 = sbr.rel (0) target = $region13
  $region12: #{transformer_encoder_forward.17} parent=0 // pred_region
    _
  $region13: #{transformer_encoder_forward.17} parent=0 // pred_fallthru
    _
  // Predicated region
  $region14: #{transformer_encoder_forward.17} parent=0 // pred_check
    _
  $region15: #{transformer_encoder_forward.17} parent=0 // pred_check_branch
    %18 = sbr.rel (0) target = $region17
  $region16: #{transformer_encoder_forward.17} parent=0 // pred_region
    _
  $region17: #{transformer_encoder_forward.17} parent=0 // pred_fallthru
    _
  // Predicated region
  $region18: #{transformer_encoder_forward.17} parent=0 // pred_check
    _
  $region19: #{transformer_encoder_forward.17} parent=0 // pred_check_branch
    %20 = sbr.rel (0) target = $region21
  $region20: #{transformer_encoder_forward.17} parent=0 // pred_region
    _
  $region21: #{transformer_encoder_forward.17} parent=0 // pred_fallthru
    _
  // Predicated region
  $region22: #{transformer_encoder_forward.17} parent=0 // pred_check
    _
  $region23: #{transformer_encoder_forward.17} parent=0 // pred_check_branch
    %22 = sbr.rel (0) target = $region25
  $region24: #{transformer_encoder_forward.17} parent=0 // pred_region
    _
  $region25: #{transformer_encoder_forward.17} parent=0 // pred_fallthru
    _
  %v23 = vld [vmem:[%s0] sm:$0xff]
  %v24 = vld [vmem:[%s0 + $0x8] sm:$0xff]
  %v25 = vld [vmem:[%s2] sm:$0xff]
  %v26 = vld [vmem:[%s2 + $0x8] sm:$0xff]
  %v27 = vld [vmem:[%s2 + $0x10] sm:$0xff]
  %v28 = vld [vmem:[%s2 + $0x18] sm:$0xff]
  %v29 = vld [vmem:[%s3] sm:$0x1]
  %v31 = vlaneseq
  %v32 = vshrl.u32 %v31, 7
  %v33 = vsub.s32 0, %v32
  %v34 = vrot.slane %v29, %v33
  %vm36 = vcmask 261120
  %v38 = vsel %vm36, %v23, 0
  %v41 = vsel %vm36, %v24, 0
  %43 = vmatprep.subr.mxu0 0.0
  %44 = vmatpush1.msra.mxu0 %v25
  %45 = vmatprep.subr.mxu0 0.0
  %46 = vmatpush1.msra.mxu0 %v26
  %47 = vmatprep.subr.mxu0 0.0
  %48 = vmatpush1.msra.mxu0 %v27
  %49 = vmatprep.subr.mxu0 0.0
  %50 = vmatpush1.msra.mxu0 %v28
  %51 = vmatprep.subr.mxu0 0.0
  %52 = vmatpush1.msra.mxu0 0.0
  %53 = vmatprep.subr.mxu0 0.0
  %54 = vmatpush1.msra.mxu0 0.0
  %55 = vmatprep.subr.mxu0 0.0
  %56 = vmatpush1.msra.mxu0 0.0
  %57 = vmatprep.subr.mxu0 0.0
  %58 = vmatpush1.msra.mxu0 0.0
  %59 = vmatprep.subr.mxu0 0.0
  %60 = vmatpush1.msra.mxu0 0.0
  %61 = vmatprep.subr.mxu0 0.0
  %62 = vmatpush1.msra.mxu0 0.0
  %63 = vmatprep.subr.mxu0 0.0
  %64 = vmatpush1.msra.mxu0 0.0
  %65 = vmatprep.subr.mxu0 0.0
  %66 = vmatpush1.msra.mxu0 0.0
  %67 = vmatprep.subr.mxu0 0.0
  %68 = vmatpush1.msra.mxu0 0.0
  %69 = vmatprep.subr.mxu0 0.0
  %70 = vmatpush1.msra.mxu0 0.0
  %71 = vmatprep.subr.mxu0 0.0
  %72 = vmatpush1.msra.mxu0 0.0
  %73 = vmatprep.subr.mxu0 0.0
  %74 = vmatpush1.msra.mxu0 0.0
  %75 = vmatprep.subr.mxu0 0.0
  %76 = vmatpush1.msra.mxu0 0.0
  %77 = vmatprep.subr.mxu0 0.0
  %78 = vmatpush1.msra.mxu0 0.0
  %79 = vmatprep.subr.mxu0 0.0
  %80 = vmatpush1.msra.mxu0 0.0
  %81 = vmatprep.subr.mxu0 0.0
  %82 = vmatpush1.msra.mxu0 0.0
  %83 = vmatprep.subr.mxu0 0.0
  %84 = vmatpush1.msra.mxu0 0.0
  %85 = vmatprep.subr.mxu0 0.0
  %86 = vmatpush1.msra.mxu0 0.0
  %87 = vmatprep.subr.mxu0 0.0
  %88 = vmatpush1.msra.mxu0 0.0
  %89 = vmatprep.subr.mxu0 0.0
  %90 = vmatpush1.msra.mxu0 0.0
  %91 = vmatprep.subr.mxu0 0.0
  %92 = vmatpush1.msra.mxu0 0.0
  %93 = vmatprep.subr.mxu0 0.0
  %94 = vmatpush1.msra.mxu0 0.0
  %95 = vmatprep.subr.mxu0 0.0
  %96 = vmatpush1.msra.mxu0 0.0
  %97 = vmatprep.subr.mxu0 0.0
  %98 = vmatpush1.msra.mxu0 0.0
  %99 = vmatprep.subr.mxu0 0.0
  %100 = vmatpush1.msra.mxu0 0.0
  %101 = vmatprep.subr.mxu0 0.0
  %102 = vmatpush1.msra.mxu0 0.0
  %103 = vmatprep.subr.mxu0 0.0
  %104 = vmatpush1.msra.mxu0 0.0
  %105 = vmatprep.subr.mxu0 0.0
  %106 = vmatpush1.msra.mxu0 0.0
  %107 = vmatprep.mubr.f32.mxu0 0.0
  %108 = vmatmul.mubr.f32.gmra.mrb[0].mxu0 %v38
  %v109 = vpop.f32.mrb[0].mxu0
  %v110 = vadd.f32 %v34, %v109
  %v111 = vpop.f32.mrb[0].mxu0
  %112 = vmatprep.mubr.f32.mxu0 0.0
  %113 = vmatmul.mubr.f32.gmra.mrb[0].mxu0 %v41
  %v114 = vpop.f32.mrb[0].mxu0
  %v115 = vadd.f32 %v34, %v114
  %v116 = vpop.f32.mrb[0].mxu0
  %117 = vdwg.mxu0
  %v118 = vld [vmem:[%s1] sm:$0xff]
  %v119 = vld [vmem:[%s1 + $0x8] sm:$0xff]
  %v120 = vadd.f32 %v110, %v118
  %v121 = vadd.f32 %v115, %v119
  %v122 = vsel %vm36, %v120, 0.0
  %123 = vadd.xlane.f32.xlu0 %v122
  %v124 = vpop.xlane.xlu0 %123
  %v125 = vsel %vm36, %v121, 0.0
  %126 = vadd.xlane.f32.xlu0 %v125
  %v127 = vpop.xlane.xlu0 %126
  %v128 = vrcp.pop 32.0
  %v129 = vmul.f32 %v124, %v128
  %v130 = vmul.f32 %v127, %v128
  %v131 = vsub.f32 %v120, %v129
  %v132 = vsub.f32 %v121, %v130
  %v133 = vmul.f32 %v131, %v131
  %v134 = vmul.f32 %v132, %v132
  %v135 = vsel %vm36, %v133, 0.0
  %136 = vadd.xlane.f32.xlu0 %v135
  %v137 = vpop.xlane.xlu0 %136
  %v138 = vsel %vm36, %v134, 0.0
  %139 = vadd.xlane.f32.xlu0 %v138
  %v140 = vpop.xlane.xlu0 %139
  %v141 = vmul.f32 %v137, %v128
  %v142 = vmul.f32 %v140, %v128
  %v143 = vadd.f32 %v141, 1e-05
  %v144 = vadd.f32 %v142, 1e-05
  %v145 = vrsqrt.pop %v143
  %v146 = vrsqrt.pop %v144
  %v147 = vmul.f32 %v131, %v145
  %v148 = vmul.f32 %v132, %v146
  %v149 = vld [vmem:[%s4] sm:$0x1]
  %v151 = vlaneseq
  %v152 = vshrl.u32 %v151, 7
  %v153 = vsub.s32 0, %v152
  %v154 = vrot.slane %v149, %v153
  %v156 = vmul.f32 %v147, %v154
  %v157 = vmul.f32 %v148, %v154
  %v158 = vld [vmem:[%s5] sm:$0x1]
  %v160 = vlaneseq
  %v161 = vshrl.u32 %v160, 7
  %v162 = vsub.s32 0, %v161
  %v163 = vrot.slane %v158, %v162
  %v165 = vadd.f32 %v156, %v163
  %v166 = vadd.f32 %v157, %v163
  %167 = vst.msk [vmem:[%s6] sm:$0xff] %vm36, %v165
  %168 = vst.msk [vmem:[%s6 + $0x8] sm:$0xff] %vm36, %v166
  // Predicated region
  $region26: #{transformer_encoder_forward.17} parent=0 // pred_check
    _
  $region27: #{transformer_encoder_forward.17} parent=0 // pred_check_branch
    %170 = sbr.rel (0) target = $region29
  $region28: #{transformer_encoder_forward.17} parent=0 // pred_region
    _
  $region29: #{transformer_encoder_forward.17} parent=0 // pred_fallthru
    _
  // Predicated region
  $region30: #{transformer_encoder_forward.17} parent=0 // pred_check
    _
  $region31: #{transformer_encoder_forward.17} parent=0 // pred_check_branch
    %172 = sbr.rel (0) target = $region33
  $region32: #{transformer_encoder_forward.17} parent=0 // pred_region
    _
  $region33: #{transformer_encoder_forward.17} parent=0 // pred_fallthru
    _

// kernel: transformer_encoder_forward.15
$region0: #{transformer_encoder_forward.15}
  #allocation0 [shape = 'u32[]', space=smem, size = 0x4, offset = 0x4, fixed_abs, tag = 'smem constant byte address 0x4 - core index']
  #allocation1 [shape = 'u32[144,128]{1,0:T(1,128)}', space=vmem, size = 0x12000, scoped, tag = 'internal scratch']
  %s0 = inlined_call_operand.vmem [shape: f32[16,32], index: 0, kind: input, shape index: {}]
  %s1 = inlined_call_operand.vmem [shape: f32[32,32], index: 1, kind: input, shape index: {}]
  %s2 = inlined_call_operand.vmem [shape: f32[32,32], index: 2, kind: input, shape index: {}]
  %s3 = inlined_call_operand.vmem [shape: f32[32,32], index: 3, kind: input, shape index: {}]
  %s4 = inlined_call_operand.vmem [shape: f32[1,32], index: 4, kind: input, shape index: {}]
  %s5 = inlined_call_operand.vmem [shape: f32[1,32], index: 5, kind: input, shape index: {}]
  %s6 = inlined_call_operand.vmem [shape: f32[1,32], index: 6, kind: input, shape index: {}]
  %s7 = inlined_call_operand.vmem [shape: f32[16,32], index: 7, kind: output, shape index: {0}]
  %s8 = inlined_call_operand.vmem [shape: f32[16,32], index: 8, kind: output, shape index: {1}]
  %s9 = inlined_call_operand.vmem [shape: f32[16,32], index: 9, kind: output, shape index: {2}]
  %10 = xla_tuple %s7, %s8, %s9
  %s11 = sld [smem:[#allocation0]]
  $region54: #{transformer_encoder_forward.15} parent=0
    _
  %s13 = ssub.s32 1, %s11
  %s14 = scalar_select 0, %s13, %s11
  // Predicated region
  $region2: #{transformer_encoder_forward.15} parent=0 // pred_check
    _
  $region3: #{transformer_encoder_forward.15} parent=0 // pred_check_branch
    %16 = sbr.rel (0) target = $region5
  $region4: #{transformer_encoder_forward.15} parent=0 // pred_region
    _
  $region5: #{transformer_encoder_forward.15} parent=0 // pred_fallthru
    _
  // Predicated region
  $region6: #{transformer_encoder_forward.15} parent=0 // pred_check
    _
  $region7: #{transformer_encoder_forward.15} parent=0 // pred_check_branch
    %18 = sbr.rel (0) target = $region9
  $region8: #{transformer_encoder_forward.15} parent=0 // pred_region
    _
  $region9: #{transformer_encoder_forward.15} parent=0 // pred_fallthru
    _
  // Predicated region
  $region10: #{transformer_encoder_forward.15} parent=0 // pred_check
    _
  $region11: #{transformer_encoder_forward.15} parent=0 // pred_check_branch
    %20 = sbr.rel (0) target = $region13
  $region12: #{transformer_encoder_forward.15} parent=0 // pred_region
    _
  $region13: #{transformer_encoder_forward.15} parent=0 // pred_fallthru
    _
  // Predicated region
  $region14: #{transformer_encoder_forward.15} parent=0 // pred_check
    _
  $region15: #{transformer_encoder_forward.15} parent=0 // pred_check_branch
    %22 = sbr.rel (0) target = $region17
  $region16: #{transformer_encoder_forward.15} parent=0 // pred_region
    _
  $region17: #{transformer_encoder_forward.15} parent=0 // pred_fallthru
    _
  // Predicated region
  $region18: #{transformer_encoder_forward.15} parent=0 // pred_check
    _
  $region19: #{transformer_encoder_forward.15} parent=0 // pred_check_branch
    %24 = sbr.rel (0) target = $region21
  $region20: #{transformer_encoder_forward.15} parent=0 // pred_region
    _
  $region21: #{transformer_encoder_forward.15} parent=0 // pred_fallthru
    _
  // Predicated region
  $region22: #{transformer_encoder_forward.15} parent=0 // pred_check
    _
  $region23: #{transformer_encoder_forward.15} parent=0 // pred_check_branch
    %26 = sbr.rel (0) target = $region25
  $region24: #{transformer_encoder_forward.15} parent=0 // pred_region
    _
  $region25: #{transformer_encoder_forward.15} parent=0 // pred_fallthru
    _
  // Predicated region
  $region26: #{transformer_encoder_forward.15} parent=0 // pred_check
    _
  $region27: #{transformer_encoder_forward.15} parent=0 // pred_check_branch
    %28 = sbr.rel (0) target = $region29
  $region28: #{transformer_encoder_forward.15} parent=0 // pred_region
    _
  $region29: #{transformer_encoder_forward.15} parent=0 // pred_fallthru
    _
  %v29 = vld [vmem:[%s0] sm:$0xff]
  %v30 = vld [vmem:[%s0 + $0x8] sm:$0xff]
  %v31 = vld [vmem:[%s1] sm:$0xff]
  %v32 = vld [vmem:[%s1 + $0x8] sm:$0xff]
  %v33 = vld [vmem:[%s1 + $0x10] sm:$0xff]
  %v34 = vld [vmem:[%s1 + $0x18] sm:$0xff]
  %v35 = vld [vmem:[%s4] sm:$0x1]
  %v37 = vlaneseq
  %v38 = vshrl.u32 %v37, 7
  %v39 = vsub.s32 0, %v38
  %v40 = vrot.slane %v35, %v39
  %vm42 = vcmask 261120
  %v44 = vsel %vm42, %v29, 0
  %v47 = vsel %vm42, %v30, 0
  %49 = vmatprep.subr.mxu0 0.0
  %50 = vmatpush1.msra.mxu0 %v31
  %51 = vmatprep.subr.mxu0 0.0
  %52 = vmatpush1.msra.mxu0 %v32
  %53 = vmatprep.subr.mxu0 0.0
  %54 = vmatpush1.msra.mxu0 %v33
  %55 = vmatprep.subr.mxu0 0.0
  %56 = vmatpush1.msra.mxu0 %v34
  %57 = vmatprep.subr.mxu0 0.0
  %58 = vmatpush1.msra.mxu0 0.0
  %59 = vmatprep.subr.mxu0 0.0
  %60 = vmatpush1.msra.mxu0 0.0
  %61 = vmatprep.subr.mxu0 0.0
  %62 = vmatpush1.msra.mxu0 0.0
  %63 = vmatprep.subr.mxu0 0.0
  %64 = vmatpush1.msra.mxu0 0.0
  %65 = vmatprep.subr.mxu0 0.0
  %66 = vmatpush1.msra.mxu0 0.0
  %67 = vmatprep.subr.mxu0 0.0
  %68 = vmatpush1.msra.mxu0 0.0
  %69 = vmatprep.subr.mxu0 0.0
  %70 = vmatpush1.msra.mxu0 0.0
  %71 = vmatprep.subr.mxu0 0.0
  %72 = vmatpush1.msra.mxu0 0.0
  %73 = vmatprep.subr.mxu0 0.0
  %74 = vmatpush1.msra.mxu0 0.0
  %75 = vmatprep.subr.mxu0 0.0
  %76 = vmatpush1.msra.mxu0 0.0
  %77 = vmatprep.subr.mxu0 0.0
  %78 = vmatpush1.msra.mxu0 0.0
  %79 = vmatprep.subr.mxu0 0.0
  %80 = vmatpush1.msra.mxu0 0.0
  %81 = vmatprep.subr.mxu0 0.0
  %82 = vmatpush1.msra.mxu0 0.0
  %83 = vmatprep.subr.mxu0 0.0
  %84 = vmatpush1.msra.mxu0 0.0
  %85 = vmatprep.subr.mxu0 0.0
  %86 = vmatpush1.msra.mxu0 0.0
  %87 = vmatprep.subr.mxu0 0.0
  %88 = vmatpush1.msra.mxu0 0.0
  %89 = vmatprep.subr.mxu0 0.0
  %90 = vmatpush1.msra.mxu0 0.0
  %91 = vmatprep.subr.mxu0 0.0
  %92 = vmatpush1.msra.mxu0 0.0
  %93 = vmatprep.subr.mxu0 0.0
  %94 = vmatpush1.msra.mxu0 0.0
  %95 = vmatprep.subr.mxu0 0.0
  %96 = vmatpush1.msra.mxu0 0.0
  %97 = vmatprep.subr.mxu0 0.0
  %98 = vmatpush1.msra.mxu0 0.0
  %99 = vmatprep.subr.mxu0 0.0
  %100 = vmatpush1.msra.mxu0 0.0
  %101 = vmatprep.subr.mxu0 0.0
  %102 = vmatpush1.msra.mxu0 0.0
  %103 = vmatprep.subr.mxu0 0.0
  %104 = vmatpush1.msra.mxu0 0.0
  %105 = vmatprep.subr.mxu0 0.0
  %106 = vmatpush1.msra.mxu0 0.0
  %107 = vmatprep.subr.mxu0 0.0
  %108 = vmatpush1.msra.mxu0 0.0
  %109 = vmatprep.subr.mxu0 0.0
  %110 = vmatpush1.msra.mxu0 0.0
  %111 = vmatprep.subr.mxu0 0.0
  %112 = vmatpush1.msra.mxu0 0.0
  %113 = vmatprep.mubr.f32.mxu0 0.0
  %114 = vmatmul.mubr.f32.gmra.mrb[0].mxu0 %v44
  %v115 = vpop.f32.mrb[0].mxu0
  %v116 = vadd.f32 %v40, %v115
  %v117 = vpop.f32.mrb[0].mxu0
  %118 = vmatprep.mubr.f32.mxu0 0.0
  %119 = vmatmul.mubr.f32.gmra.mrb[0].mxu0 %v47
  %v120 = vpop.f32.mrb[0].mxu0
  %v121 = vadd.f32 %v40, %v120
  %v122 = vpop.f32.mrb[0].mxu0
  %123 = vdwg.mxu0
  %124 = vst.msk [vmem:[%s7] sm:$0xff] %vm42, %v116
  %125 = vst.msk [vmem:[%s7 + $0x8] sm:$0xff] %vm42, %v121
  %v126 = vld [vmem:[%s2] sm:$0xff]
  %v127 = vld [vmem:[%s2 + $0x8] sm:$0xff]
  %v128 = vld [vmem:[%s2 + $0x10] sm:$0xff]
  %v129 = vld [vmem:[%s2 + $0x18] sm:$0xff]
  %v130 = vld [vmem:[%s5] sm:$0x1]
  %v132 = vlaneseq
  %v133 = vshrl.u32 %v132, 7
  %v134 = vsub.s32 0, %v133
  %v135 = vrot.slane %v130, %v134
  %137 = vmatprep.subr.mxu0 0.0
  %138 = vmatpush1.msra.mxu0 %v126
  %139 = vmatprep.subr.mxu0 0.0
  %140 = vmatpush1.msra.mxu0 %v127
  %141 = vmatprep.subr.mxu0 0.0
  %142 = vmatpush1.msra.mxu0 %v128
  %143 = vmatprep.subr.mxu0 0.0
  %144 = vmatpush1.msra.mxu0 %v129
  %145 = vmatprep.subr.mxu0 0.0
  %146 = vmatpush1.msra.mxu0 0.0
  %147 = vmatprep.subr.mxu0 0.0
  %148 = vmatpush1.msra.mxu0 0.0
  %149 = vmatprep.subr.mxu0 0.0
  %150 = vmatpush1.msra.mxu0 0.0
  %151 = vmatprep.subr.mxu0 0.0
  %152 = vmatpush1.msra.mxu0 0.0
  %153 = vmatprep.subr.mxu0 0.0
  %154 = vmatpush1.msra.mxu0 0.0
  %155 = vmatprep.subr.mxu0 0.0
  %156 = vmatpush1.msra.mxu0 0.0
  %157 = vmatprep.subr.mxu0 0.0
  %158 = vmatpush1.msra.mxu0 0.0
  %159 = vmatprep.subr.mxu0 0.0
  %160 = vmatpush1.msra.mxu0 0.0
  %161 = vmatprep.subr.mxu0 0.0
  %162 = vmatpush1.msra.mxu0 0.0
  %163 = vmatprep.subr.mxu0 0.0
  %164 = vmatpush1.msra.mxu0 0.0
  %165 = vmatprep.subr.mxu0 0.0
  %166 = vmatpush1.msra.mxu0 0.0
  %167 = vmatprep.subr.mxu0 0.0
  %168 = vmatpush1.msra.mxu0 0.0
  %169 = vmatprep.subr.mxu0 0.0
  %170 = vmatpush1.msra.mxu0 0.0
  %171 = vmatprep.subr.mxu0 0.0
  %172 = vmatpush1.msra.mxu0 0.0
  %173 = vmatprep.subr.mxu0 0.0
  %174 = vmatpush1.msra.mxu0 0.0
  %175 = vmatprep.subr.mxu0 0.0
  %176 = vmatpush1.msra.mxu0 0.0
  %177 = vmatprep.subr.mxu0 0.0
  %178 = vmatpush1.msra.mxu0 0.0
  %179 = vmatprep.subr.mxu0 0.0
  %180 = vmatpush1.msra.mxu0 0.0
  %181 = vmatprep.subr.mxu0 0.0
  %182 = vmatpush1.msra.mxu0 0.0
  %183 = vmatprep.subr.mxu0 0.0
  %184 = vmatpush1.msra.mxu0 0.0
  %185 = vmatprep.subr.mxu0 0.0
  %186 = vmatpush1.msra.mxu0 0.0
  %187 = vmatprep.subr.mxu0 0.0
  %188 = vmatpush1.msra.mxu0 0.0
  %189 = vmatprep.subr.mxu0 0.0
  %190 = vmatpush1.msra.mxu0 0.0
  %191 = vmatprep.subr.mxu0 0.0
  %192 = vmatpush1.msra.mxu0 0.0
  %193 = vmatprep.subr.mxu0 0.0
  %194 = vmatpush1.msra.mxu0 0.0
  %195 = vmatprep.subr.mxu0 0.0
  %196 = vmatpush1.msra.mxu0 0.0
  %197 = vmatprep.subr.mxu0 0.0
  %198 = vmatpush1.msra.mxu0 0.0
  %199 = vmatprep.subr.mxu0 0.0
  %200 = vmatpush1.msra.mxu0 0.0
  %201 = vmatprep.mubr.f32.mxu0 0.0
  %202 = vmatmul.mubr.f32.gmra.mrb[0].mxu0 %v44
  %v203 = vpop.f32.mrb[0].mxu0
  %v204 = vadd.f32 %v135, %v203
  %v205 = vpop.f32.mrb[0].mxu0
  %206 = vmatprep.mubr.f32.mxu0 0.0
  %207 = vmatmul.mubr.f32.gmra.mrb[0].mxu0 %v47
  %v208 = vpop.f32.mrb[0].mxu0
  %v209 = vadd.f32 %v135, %v208
  %v210 = vpop.f32.mrb[0].mxu0
  %211 = vdwg.mxu0
  %212 = vst.msk [vmem:[%s8] sm:$0xff] %vm42, %v204
  %213 = vst.msk [vmem:[%s8 + $0x8] sm:$0xff] %vm42, %v209
  %v214 = vld [vmem:[%s3] sm:$0xff]
  %v215 = vld [vmem:[%s3 + $0x8] sm:$0xff]
  %v216 = vld [vmem:[%s3 + $0x10] sm:$0xff]
  %v217 = vld [vmem:[%s3 + $0x18] sm:$0xff]
  %v218 = vld [vmem:[%s6] sm:$0x1]
  %v220 = vlaneseq
  %v221 = vshrl.u32 %v220, 7
  %v222 = vsub.s32 0, %v221
  %v223 = vrot.slane %v218, %v222
  %225 = vmatprep.subr.mxu0 0.0
  %226 = vmatpush1.msra.mxu0 %v214
  %227 = vmatprep.subr.mxu0 0.0
  %228 = vmatpush1.msra.mxu0 %v215
  %229 = vmatprep.subr.mxu0 0.0
  %230 = vmatpush1.msra.mxu0 %v216
  %231 = vmatprep.subr.mxu0 0.0
  %232 = vmatpush1.msra.mxu0 %v217
  %233 = vmatprep.subr.mxu0 0.0
  %234 = vmatpush1.msra.mxu0 0.0
  %235 = vmatprep.subr.mxu0 0.0
  %236 = vmatpush1.msra.mxu0 0.0
  %237 = vmatprep.subr.mxu0 0.0
  %238 = vmatpush1.msra.mxu0 0.0
  %239 = vmatprep.subr.mxu0 0.0
  %240 = vmatpush1.msra.mxu0 0.0
  %241 = vmatprep.subr.mxu0 0.0
  %242 = vmatpush1.msra.mxu0 0.0
  %243 = vmatprep.subr.mxu0 0.0
  %244 = vmatpush1.msra.mxu0 0.0
  %245 = vmatprep.subr.mxu0 0.0
  %246 = vmatpush1.msra.mxu0 0.0
  %247 = vmatprep.subr.mxu0 0.0
  %248 = vmatpush1.msra.mxu0 0.0
  %249 = vmatprep.subr.mxu0 0.0
  %250 = vmatpush1.msra.mxu0 0.0
  %251 = vmatprep.subr.mxu0 0.0
  %252 = vmatpush1.msra.mxu0 0.0
  %253 = vmatprep.subr.mxu0 0.0
  %254 = vmatpush1.msra.mxu0 0.0
  %255 = vmatprep.subr.mxu0 0.0
  %256 = vmatpush1.msra.mxu0 0.0
  %257 = vmatprep.subr.mxu0 0.0
  %258 = vmatpush1.msra.mxu0 0.0
  %259 = vmatprep.subr.mxu0 0.0
  %260 = vmatpush1.msra.mxu0 0.0
  %261 = vmatprep.subr.mxu0 0.0
  %262 = vmatpush1.msra.mxu0 0.0
  %263 = vmatprep.subr.mxu0 0.0
  %264 = vmatpush1.msra.mxu0 0.0
  %265 = vmatprep.subr.mxu0 0.0
  %266 = vmatpush1.msra.mxu0 0.0
  %267 = vmatprep.subr.mxu0 0.0
  %268 = vmatpush1.msra.mxu0 0.0
  %269 = vmatprep.subr.mxu0 0.0
  %270 = vmatpush1.msra.mxu0 0.0
  %271 = vmatprep.subr.mxu0 0.0
  %272 = vmatpush1.msra.mxu0 0.0
  %273 = vmatprep.subr.mxu0 0.0
  %274 = vmatpush1.msra.mxu0 0.0
  %275 = vmatprep.subr.mxu0 0.0
  %276 = vmatpush1.msra.mxu0 0.0
  %277 = vmatprep.subr.mxu0 0.0
  %278 = vmatpush1.msra.mxu0 0.0
  %279 = vmatprep.subr.mxu0 0.0
  %280 = vmatpush1.msra.mxu0 0.0
  %281 = vmatprep.subr.mxu0 0.0
  %282 = vmatpush1.msra.mxu0 0.0
  %283 = vmatprep.subr.mxu0 0.0
  %284 = vmatpush1.msra.mxu0 0.0
  %285 = vmatprep.subr.mxu0 0.0
  %286 = vmatpush1.msra.mxu0 0.0
  %287 = vmatprep.subr.mxu0 0.0
  %288 = vmatpush1.msra.mxu0 0.0
  %289 = vmatprep.mubr.f32.mxu0 0.0
  %290 = vmatmul.mubr.f32.gmra.mrb[0].mxu0 %v44
  %v291 = vpop.f32.mrb[0].mxu0
  %v292 = vadd.f32 %v223, %v291
  %v293 = vpop.f32.mrb[0].mxu0
  %294 = vmatprep.mubr.f32.mxu0 0.0
  %295 = vmatmul.mubr.f32.gmra.mrb[0].mxu0 %v47
  %v296 = vpop.f32.mrb[0].mxu0
  %v297 = vadd.f32 %v223, %v296
  %v298 = vpop.f32.mrb[0].mxu0
  %299 = vdwg.mxu0
  %300 = vst.msk [vmem:[%s9] sm:$0xff] %vm42, %v292
  %301 = vst.msk [vmem:[%s9 + $0x8] sm:$0xff] %vm42, %v297
  // Predicated region
  $region30: #{transformer_encoder_forward.15} parent=0 // pred_check
    _
  $region31: #{transformer_encoder_forward.15} parent=0 // pred_check_branch
    %303 = sbr.rel (0) target = $region33
  $region32: #{transformer_encoder_forward.15} parent=0 // pred_region
    _
  $region33: #{transformer_encoder_forward.15} parent=0 // pred_fallthru
    _
  // Predicated region
  $region34: #{transformer_encoder_forward.15} parent=0 // pred_check
    _
  $region35: #{transformer_encoder_forward.15} parent=0 // pred_check_branch
    %305 = sbr.rel (0) target = $region37
  $region36: #{transformer_encoder_forward.15} parent=0 // pred_region
    _
  $region37: #{transformer_encoder_forward.15} parent=0 // pred_fallthru
    _
  // Predicated region
  $region38: #{transformer_encoder_forward.15} parent=0 // pred_check
    _
  $region39: #{transformer_encoder_forward.15} parent=0 // pred_check_branch
    %307 = sbr.rel (0) target = $region41
  $region40: #{transformer_encoder_forward.15} parent=0 // pred_region
    _
  $region41: #{transformer_encoder_forward.15} parent=0 // pred_fallthru
    _
  // Predicated region
  $region42: #{transformer_encoder_forward.15} parent=0 // pred_check
    _
  $region43: #{transformer_encoder_forward.15} parent=0 // pred_check_branch
    %309 = sbr.rel (0) target = $region45
  $region44: #{transformer_encoder_forward.15} parent=0 // pred_region
    _
  $region45: #{transformer_encoder_forward.15} parent=0 // pred_fallthru
    _
  // Predicated region
  $region46: #{transformer_encoder_forward.15} parent=0 // pred_check
    _
  $region47: #{transformer_encoder_forward.15} parent=0 // pred_check_branch
    %311 = sbr.rel (0) target = $region49
  $region48: #{transformer_encoder_forward.15} parent=0 // pred_region
    _
  $region49: #{transformer_encoder_forward.15} parent=0 // pred_fallthru
    _
  // Predicated region
  $region50: #{transformer_encoder_forward.15} parent=0 // pred_check
    _
  $region51: #{transformer_encoder_forward.15} parent=0 // pred_check_branch
    %313 = sbr.rel (0) target = $region53
  $region52: #{transformer_encoder_forward.15} parent=0 // pred_region
    _
  $region53: #{transformer_encoder_forward.15} parent=0 // pred_fallthru
    _

// kernel: transformer_encoder_forward.14
$region0: #{transformer_encoder_forward.14}
  #allocation0 [shape = 'u32[]', space=smem, size = 0x4, offset = 0x4, fixed_abs, tag = 'smem constant byte address 0x4 - core index']
  #allocation1 [shape = 'u32[144,128]{1,0:T(1,128)}', space=vmem, size = 0x12000, scoped, tag = 'internal scratch']
  #allocation2 [shape = 'f32[16,32]{1,0:T(8,128)}', space=vmem, size = 0x2000, scoped, tag = 'scratch operand']
  %s0 = inlined_call_operand.vmem [shape: f32[16,32], index: 0, kind: input, shape index: {}]
  %s1 = inlined_call_operand.vmem [shape: f32[32,2048], index: 1, kind: input, shape index: {}]
  %s2 = inlined_call_operand.vmem [shape: f32[1,2048], index: 2, kind: input, shape index: {}]
  %s3 = inlined_call_operand.vmem [shape: f32[2048,32], index: 3, kind: input, shape index: {}]
  %s4 = inlined_call_operand.vmem [shape: f32[1,32], index: 4, kind: input, shape index: {}]
  %s5 = inlined_call_operand.vmem [shape: f32[1,32], index: 5, kind: input, shape index: {}]
  %s6 = inlined_call_operand.vmem [shape: f32[1,32], index: 6, kind: input, shape index: {}]
  %s7 = inlined_call_operand.vmem [shape: f32[16,32], index: 7, kind: output, shape index: {}]
  %s8 = sld [smem:[#allocation0]]
  $region92: #{transformer_encoder_forward.14} parent=0
    _
  %s10 = ssub.s32 1, %s8
  %s11 = scalar_select 0, %s10, %s8
  $region1: #{transformer_encoder_forward.14} parent=0
    #allocation3 [shape = 'u8[131072]{0}', space=vmem, size = 0x20000, scoped, tag = 'input window, operand 1']
    loop: start=0, step=1, limit=6
    $region2: #{transformer_encoder_forward.14} parent=1 // loop_pre_header
      _
    $region3: #{transformer_encoder_forward.14} parent=1 // loop_header
      %s13 = sphi 0, %s17
      %p14 = scmp.ge.s32.totalorder %s13, 6
      %s20 = sphi 0, %s32
      %s21 = sphi 0, %s28
      %s22 = sphi 0, %s20
      %s23 = sphi 0, %s21
      %s24 = sphi 0, %s22
      %s25 = sphi 0, %s23
      %s35 = sphi 0, %s37
      %s38 = sphi 0, %s35
      %s39 = sphi 0, %s38
      %s55 = sphi 0, %s39
      %s61 = sphi 0, %s63
      %s64 = sphi 0, %s61
      %s65 = sphi 0, %s64
      %s81 = sphi 0, %s65
      %s87 = sphi 0, %s89
      %s90 = sphi 0, %s87
      %s91 = sphi 0, %s90
      %s107 = sphi 0, %s91
      %s113 = sphi 0, %s115
      %s116 = sphi 0, %s113
      %s117 = sphi 0, %s116
      %s133 = sphi 0, %s117
      %s137 = sphi 0, %s137
      %s139 = sphi 0, %s137
      %s140 = sphi 0, %s139
      %s154 = sphi 0, %s140
      %s158 = sphi 0, %s158
      %s160 = sphi 0, %s158
      %s161 = sphi 0, %s160
      %s175 = sphi 0, %s161
      %s179 = sphi 0, %s179
      %s181 = sphi 0, %s179
      %s182 = sphi 0, %s181
      %s196 = sphi 0, %s182
      %s202 = sphi 0, %s204
      %s205 = sphi 0, %s202
      %s206 = sphi 0, %s205
      %s222 = sphi 0, %s206
    $region4: #{transformer_encoder_forward.14} parent=1 // loop_header_branch
      %16 = sbr.rel (%p14) target = $region8
    $region5: #{transformer_encoder_forward.14} parent=1 // loop_body
      %s18 = ssub.s32 %s13, 1
      %s19 = ssub.s32 %s13, 2
      %s26 = sadd.s32 1, %s21
      %p27 = scmp.ge.s32.totalorder %s26, 4
      %s28 = scalar_select %p27, 0, %s26
      %s29 = sadd.s32 1, %s20
      %s30 = scalar_select %p27, %s29, %s20
      %p31 = scmp.ge.s32.totalorder %s30, 1
      %s32 = scalar_select %p31, 0, %s30
      %s33 = ssub.s32 %s20, %s32
      %p34 = scmp.eq.s32.totalorder %s33, 0
      %s36 = sadd.s32 %s35, 1
      %s37 = scalar_select %p34, %s35, %s36
      %p40 = pneg %p34
      %p41 = scmp.eq.s32.totalorder %s13, 3
      %p42 = por %p40, %p41
      %p43 = scmp.ne.s32.totalorder %s35, %s38
      %p44 = scmp.eq.s32.totalorder %s13, 0
      %p45 = por %p43, %p44
      %p46 = scmp.ne.s32.totalorder %s35, %s38
      %p47 = scmp.eq.s32.totalorder %s18, 3
      %p48 = por %p46, %p47
      %p49 = scmp.ne.s32.totalorder %s38, %s39
      %p50 = scmp.eq.s32.totalorder %s18, 0
      %p51 = por %p49, %p50
      %p52 = scmp.ne.s32.totalorder %s38, %s39
      %p53 = scmp.eq.s32.totalorder %s19, 3
      %p54 = por %p52, %p53
      %p56 = scmp.ne.s32.totalorder %s39, %s55
      %p57 = scmp.eq.s32.totalorder %s19, 0
      %p58 = por %p56, %p57
      %s59 = ssub.s32 %s21, %s28
      %p60 = scmp.eq.s32.totalorder %s59, 0
      %s62 = sadd.s32 %s61, 1
      %s63 = scalar_select %p60, %s61, %s62
      %p66 = pneg %p60
      %p67 = scmp.eq.s32.totalorder %s13, 3
      %p68 = por %p66, %p67
      %p69 = scmp.ne.s32.totalorder %s61, %s64
      %p70 = scmp.eq.s32.totalorder %s13, 0
      %p71 = por %p69, %p70
      %p72 = scmp.ne.s32.totalorder %s61, %s64
      %p73 = scmp.eq.s32.totalorder %s18, 3
      %p74 = por %p72, %p73
      %p75 = scmp.ne.s32.totalorder %s64, %s65
      %p76 = scmp.eq.s32.totalorder %s18, 0
      %p77 = por %p75, %p76
      %p78 = scmp.ne.s32.totalorder %s64, %s65
      %p79 = scmp.eq.s32.totalorder %s19, 3
      %p80 = por %p78, %p79
      %p82 = scmp.ne.s32.totalorder %s65, %s81
      %p83 = scmp.eq.s32.totalorder %s19, 0
      %p84 = por %p82, %p83
      %s85 = ssub.s32 %s21, %s28
      %p86 = scmp.eq.s32.totalorder %s85, 0
      %s88 = sadd.s32 %s87, 1
      %s89 = scalar_select %p86, %s87, %s88
      %p92 = pneg %p86
      %p93 = scmp.eq.s32.totalorder %s13, 3
      %p94 = por %p92, %p93
      %p95 = scmp.ne.s32.totalorder %s87, %s90
      %p96 = scmp.eq.s32.totalorder %s13, 0
      %p97 = por %p95, %p96
      %p98 = scmp.ne.s32.totalorder %s87, %s90
      %p99 = scmp.eq.s32.totalorder %s18, 3
      %p100 = por %p98, %p99
      %p101 = scmp.ne.s32.totalorder %s90, %s91
      %p102 = scmp.eq.s32.totalorder %s18, 0
      %p103 = por %p101, %p102
      %p104 = scmp.ne.s32.totalorder %s90, %s91
      %p105 = scmp.eq.s32.totalorder %s19, 3
      %p106 = por %p104, %p105
      %p108 = scmp.ne.s32.totalorder %s91, %s107
      %p109 = scmp.eq.s32.totalorder %s19, 0
      %p110 = por %p108, %p109
      %s111 = ssub.s32 %s21, %s28
      %p112 = scmp.eq.s32.totalorder %s111, 0
      %s114 = sadd.s32 %s113, 1
      %s115 = scalar_select %p112, %s113, %s114
      %p118 = pneg %p112
      %p119 = scmp.eq.s32.totalorder %s13, 3
      %p120 = por %p118, %p119
      %p121 = scmp.ne.s32.totalorder %s113, %s116
      %p122 = scmp.eq.s32.totalorder %s13, 0
      %p123 = por %p121, %p122
      %p124 = scmp.ne.s32.totalorder %s113, %s116
      %p125 = scmp.eq.s32.totalorder %s18, 3
      %p126 = por %p124, %p125
      %p127 = scmp.ne.s32.totalorder %s116, %s117
      %p128 = scmp.eq.s32.totalorder %s18, 0
      %p129 = por %p127, %p128
      %p130 = scmp.ne.s32.totalorder %s116, %s117
      %p131 = scmp.eq.s32.totalorder %s19, 3
      %p132 = por %p130, %p131
      %p134 = scmp.ne.s32.totalorder %s117, %s133
      %p135 = scmp.eq.s32.totalorder %s19, 0
      %p136 = por %p134, %p135
      %s138 = sadd.s32 %s137, 1
      %p141 = scmp.eq.s32.totalorder %s13, 3
      %p142 = scmp.ne.s32.totalorder %s137, %s139
      %p143 = scmp.eq.s32.totalorder %s13, 0
      %p144 = por %p142, %p143
      %p145 = scmp.ne.s32.totalorder %s137, %s139
      %p146 = scmp.eq.s32.totalorder %s18, 3
      %p147 = por %p145, %p146
      %p148 = scmp.ne.s32.totalorder %s139, %s140
      %p149 = scmp.eq.s32.totalorder %s18, 0
      %p150 = por %p148, %p149
      %p151 = scmp.ne.s32.totalorder %s139, %s140
      %p152 = scmp.eq.s32.totalorder %s19, 3
      %p153 = por %p151, %p152
      %p155 = scmp.ne.s32.totalorder %s140, %s154
      %p156 = scmp.eq.s32.totalorder %s19, 0
      %p157 = por %p155, %p156
      %s159 = sadd.s32 %s158, 1
      %p162 = scmp.eq.s32.totalorder %s13, 3
      %p163 = scmp.ne.s32.totalorder %s158, %s160
      %p164 = scmp.eq.s32.totalorder %s13, 0
      %p165 = por %p163, %p164
      %p166 = scmp.ne.s32.totalorder %s158, %s160
      %p167 = scmp.eq.s32.totalorder %s18, 3
      %p168 = por %p166, %p167
      %p169 = scmp.ne.s32.totalorder %s160, %s161
      %p170 = scmp.eq.s32.totalorder %s18, 0
      %p171 = por %p169, %p170
      %p172 = scmp.ne.s32.totalorder %s160, %s161
      %p173 = scmp.eq.s32.totalorder %s19, 3
      %p174 = por %p172, %p173
      %p176 = scmp.ne.s32.totalorder %s161, %s175
      %p177 = scmp.eq.s32.totalorder %s19, 0
      %p178 = por %p176, %p177
      %s180 = sadd.s32 %s179, 1
      %p183 = scmp.eq.s32.totalorder %s13, 3
      %p184 = scmp.ne.s32.totalorder %s179, %s181
      %p185 = scmp.eq.s32.totalorder %s13, 0
      %p186 = por %p184, %p185
      %p187 = scmp.ne.s32.totalorder %s179, %s181
      %p188 = scmp.eq.s32.totalorder %s18, 3
      %p189 = por %p187, %p188
      %p190 = scmp.ne.s32.totalorder %s181, %s182
      %p191 = scmp.eq.s32.totalorder %s18, 0
      %p192 = por %p190, %p191
      %p193 = scmp.ne.s32.totalorder %s181, %s182
      %p194 = scmp.eq.s32.totalorder %s19, 3
      %p195 = por %p193, %p194
      %p197 = scmp.ne.s32.totalorder %s182, %s196
      %p198 = scmp.eq.s32.totalorder %s19, 0
      %p199 = por %p197, %p198
      %s200 = ssub.s32 %s20, %s32
      %p201 = scmp.eq.s32.totalorder %s200, 0
      %s203 = sadd.s32 %s202, 1
      %s204 = scalar_select %p201, %s202, %s203
      %p207 = pneg %p201
      %p208 = scmp.eq.s32.totalorder %s13, 3
      %p209 = por %p207, %p208
      %p210 = scmp.ne.s32.totalorder %s202, %s205
      %p211 = scmp.eq.s32.totalorder %s13, 0
      %p212 = por %p210, %p211
      %p213 = scmp.ne.s32.totalorder %s202, %s205
      %p214 = scmp.eq.s32.totalorder %s18, 3
      %p215 = por %p213, %p214
      %p216 = scmp.ne.s32.totalorder %s205, %s206
      %p217 = scmp.eq.s32.totalorder %s18, 0
      %p218 = por %p216, %p217
      %p219 = scmp.ne.s32.totalorder %s205, %s206
      %p220 = scmp.eq.s32.totalorder %s19, 3
      %p221 = por %p219, %p220
      %p223 = scmp.ne.s32.totalorder %s206, %s222
      %p224 = scmp.eq.s32.totalorder %s19, 0
      %p225 = por %p223, %p224
      %p226 = scmp.le.s32.totalorder 1, %s13
      %p227 = scmp.lt.s32.totalorder %s13, 5
      %p228 = pnand %p226, %p227
      %p229 = pneg %p228
      // Predicated region
      $region9: #{transformer_encoder_forward.14} parent=5 // pred_check
        _
      $region10: #{transformer_encoder_forward.14} parent=5 // pred_check_branch
        %231 = sbr.rel (%p228) target = $region12
      $region11: #{transformer_encoder_forward.14} parent=5 // pred_region
        %s232 = ssub.s32 %s13, 1
        // Predicated region
        $region13: #{transformer_encoder_forward.14} parent=11 // pred_check
          %p233 = pneg %p51
        $region14: #{transformer_encoder_forward.14} parent=11 // pred_check_branch
          %235 = sbr.rel (%p233) target = $region16
        $region15: #{transformer_encoder_forward.14} parent=11 // pred_region
          %s236 = smul.u32 2, %s22
          %p237 = scmp.lt.s32.totalorder %s236, 1
          %s238 = scalar_select %p237, %s236, 1
          %s239 = smul.addr %s238, 8
          %s240 = scalar_lea.vmem %s0, %s239
          %s241 = smul.u32 2, %s22
        $region16: #{transformer_encoder_forward.14} parent=11 // pred_fallthru
          _
        // Predicated region
        $region17: #{transformer_encoder_forward.14} parent=11 // pred_check
          %p242 = pneg %p150
        $region18: #{transformer_encoder_forward.14} parent=11 // pred_check_branch
          %244 = sbr.rel (%p242) target = $region20
        $region19: #{transformer_encoder_forward.14} parent=11 // pred_region
          _
        $region20: #{transformer_encoder_forward.14} parent=11 // pred_fallthru
          _
        // Predicated region
        $region21: #{transformer_encoder_forward.14} parent=11 // pred_check
          %p245 = pneg %p171
        $region22: #{transformer_encoder_forward.14} parent=11 // pred_check_branch
          %247 = sbr.rel (%p245) target = $region24
        $region23: #{transformer_encoder_forward.14} parent=11 // pred_region
          _
        $region24: #{transformer_encoder_forward.14} parent=11 // pred_fallthru
          _
        // Predicated region
        $region25: #{transformer_encoder_forward.14} parent=11 // pred_check
          %p248 = pneg %p192
        $region26: #{transformer_encoder_forward.14} parent=11 // pred_check_branch
          %250 = sbr.rel (%p248) target = $region28
        $region27: #{transformer_encoder_forward.14} parent=11 // pred_region
          _
        $region28: #{transformer_encoder_forward.14} parent=11 // pred_fallthru
          _
      $region12: #{transformer_encoder_forward.14} parent=5 // pred_fallthru
        _
      %p251 = scmp.lt.s32.totalorder %s13, 4
      // Predicated region
      $region29: #{transformer_encoder_forward.14} parent=5 // pred_check
        %p252 = pneg %p251
      $region30: #{transformer_encoder_forward.14} parent=5 // pred_check_branch
        %254 = sbr.rel (%p252) target = $region32
      $region31: #{transformer_encoder_forward.14} parent=5 // pred_region
        // Predicated region
        $region33: #{transformer_encoder_forward.14} parent=31 // pred_check
          %p255 = pneg %p71
        $region34: #{transformer_encoder_forward.14} parent=31 // pred_check_branch
          %257 = sbr.rel (%p255) target = $region36
        $region35: #{transformer_encoder_forward.14} parent=31 // pred_region
          %s258 = sand.u32 %s61, 1
          %s259 = sand.u32 %s61, 1
          %s260 = smul.addr %s259, 128
          %s261 = scalar_lea.vmem [#allocation3], %s260
          %s262 = smul.u32 4, %s21
          %s263 = smul.addr %s262, 8
          %s264 = scalar_lea.vmem %s1, %s263
          // Predicated region
          $region37: #{transformer_encoder_forward.14} parent=35 // pred_check
            _
          $region38: #{transformer_encoder_forward.14} parent=35 // pred_check_branch
            %266 = sbr.rel (0) target = $region40
          $region39: #{transformer_encoder_forward.14} parent=35 // pred_region
            // Predicated region
            $region41: #{transformer_encoder_forward.14} parent=39 // pred_check
              _
            $region42: #{transformer_encoder_forward.14} parent=39 // pred_check_branch
              %268 = sbr.rel (0) target = $region44
            $region43: #{transformer_encoder_forward.14} parent=39 // pred_region
              loop: start=0, step=1, limit=1
              $region45: #{transformer_encoder_forward.14} parent=43 // loop_pre_header
                _
              $region46: #{transformer_encoder_forward.14} parent=43 // loop_header
                %s270 = sphi 0, %s274
                %p271 = scmp.ge.s32.totalorder %s270, 1
                %s275 = sphi %s264, %s264
                %s276 = sphi %s261, %s261
              $region47: #{transformer_encoder_forward.14} parent=43 // loop_header_branch
                %273 = sbr.rel (%p271) target = $region51
              $region48: #{transformer_encoder_forward.14} parent=43 // loop_body
                %v277 = vld [vmem:[%s275] sm:$0xff]
                %278 = vst [vmem:[%s276] sm:$0xff] %v277
                %v279 = vld [vmem:[%s275 + $0x8] sm:$0xff]
                %280 = vst [vmem:[%s276 + $0x8] sm:$0xff] %v279
                %v281 = vld [vmem:[%s275 + $0x10] sm:$0xff]
                %282 = vst [vmem:[%s276 + $0x10] sm:$0xff] %v281
                %v283 = vld [vmem:[%s275 + $0x18] sm:$0xff]
                %284 = vst [vmem:[%s276 + $0x18] sm:$0xff] %v283
                %v285 = vld [vmem:[%s275 + $0x80] sm:$0xff]
                %286 = vst [vmem:[%s276 + $0x20] sm:$0xff] %v285
                %v287 = vld [vmem:[%s275 + $0x88] sm:$0xff]
                %288 = vst [vmem:[%s276 + $0x28] sm:$0xff] %v287
                %v289 = vld [vmem:[%s275 + $0x90] sm:$0xff]
                %290 = vst [vmem:[%s276 + $0x30] sm:$0xff] %v289
                %v291 = vld [vmem:[%s275 + $0x98] sm:$0xff]
                %292 = vst [vmem:[%s276 + $0x38] sm:$0xff] %v291
                %v293 = vld [vmem:[%s275 + $0x100] sm:$0xff]
                %294 = vst [vmem:[%s276 + $0x40] sm:$0xff] %v293
                %v295 = vld [vmem:[%s275 + $0x108] sm:$0xff]
                %296 = vst [vmem:[%s276 + $0x48] sm:$0xff] %v295
                %v297 = vld [vmem:[%s275 + $0x110] sm:$0xff]
                %298 = vst [vmem:[%s276 + $0x50] sm:$0xff] %v297
                %v299 = vld [vmem:[%s275 + $0x118] sm:$0xff]
                %300 = vst [vmem:[%s276 + $0x58] sm:$0xff] %v299
                %v301 = vld [vmem:[%s275 + $0x180] sm:$0xff]
                %302 = vst [vmem:[%s276 + $0x60] sm:$0xff] %v301
                %v303 = vld [vmem:[%s275 + $0x188] sm:$0xff]
                %304 = vst [vmem:[%s276 + $0x68] sm:$0xff] %v303
                %v305 = vld [vmem:[%s275 + $0x190] sm:$0xff]
                %306 = vst [vmem:[%s276 + $0x70] sm:$0xff] %v305
                %v307 = vld [vmem:[%s275 + $0x198] sm:$0xff]
                %308 = vst [vmem:[%s276 + $0x78] sm:$0xff] %v307
              $region49: #{transformer_encoder_forward.14} parent=43 // loop_footer
                %s274 = sadd.s32 1, %s270
              $region50: #{transformer_encoder_forward.14} parent=43 // loop_footer_branch
                %269 = sbr.rel target = $region46
              $region51: #{transformer_encoder_forward.14} parent=43 // loop_exit
                _
            $region44: #{transformer_encoder_forward.14} parent=39 // pred_fallthru
              _
            // Predicated region
            $region52: #{transformer_encoder_forward.14} parent=39 // pred_check
              _
            $region53: #{transformer_encoder_forward.14} parent=39 // pred_check_branch
              %310 = sbr.rel target = $region55
            $region54: #{transformer_encoder_forward.14} parent=39 // pred_region
              _
            $region55: #{transformer_encoder_forward.14} parent=39 // pred_fallthru
              _
          $region40: #{transformer_encoder_forward.14} parent=35 // pred_fallthru
            _
          %311 = vnop
        $region36: #{transformer_encoder_forward.14} parent=31 // pred_fallthru
          _
        // Predicated region
        $region56: #{transformer_encoder_forward.14} parent=31 // pred_check
          %p312 = pneg %p97
        $region57: #{transformer_encoder_forward.14} parent=31 // pred_check_branch
          %314 = sbr.rel (%p312) target = $region59
        $region58: #{transformer_encoder_forward.14} parent=31 // pred_region
          %s315 = smul.u32 4, %s21
          %p316 = scmp.lt.s32.totalorder %s315, 15
          %s317 = scalar_select %p316, %s315, 15
          %s318 = scalar_lea.vmem %s2, %s317
          %s319 = smul.u32 4, %s21
        $region59: #{transformer_encoder_forward.14} parent=31 // pred_fallthru
          _
        // Predicated region
        $region60: #{transformer_encoder_forward.14} parent=31 // pred_check
          %p320 = pneg %p123
        $region61: #{transformer_encoder_forward.14} parent=31 // pred_check_branch
          %322 = sbr.rel (%p320) target = $region63
        $region62: #{transformer_encoder_forward.14} parent=31 // pred_region
          %s323 = smul.u32 64, %s21
          %p324 = scmp.lt.s32.totalorder %s323, 255
          %s325 = scalar_select %p324, %s323, 255
          %s326 = smul.addr %s325, 8
          %s327 = scalar_lea.vmem %s3, %s326
          %s328 = smul.u32 64, %s21
        $region63: #{transformer_encoder_forward.14} parent=31 // pred_fallthru
          _
      $region32: #{transformer_encoder_forward.14} parent=5 // pred_fallthru
        _
      %p329 = scmp.le.s32.totalorder 1, %s13
      %p330 = scmp.lt.s32.totalorder %s13, 5
      %p331 = pnand %p329, %p330
      %p332 = pneg %p331
      // Predicated region
      $region64: #{transformer_encoder_forward.14} parent=5 // pred_check
        _
      $region65: #{transformer_encoder_forward.14} parent=5 // pred_check_branch
        %334 = sbr.rel (%p331) target = $region67
      $region66: #{transformer_encoder_forward.14} parent=5 // pred_region
        %s335 = ssub.s32 %s13, 1
        %s336 = sand.u32 %s64, 1
        %s337 = sand.u32 %s64, 1
        %s338 = smul.addr %s337, 128
        %s339 = scalar_lea.vmem [#allocation3], %s338
        // Predicated region
        $region68: #{transformer_encoder_forward.14} parent=66 // pred_check
          %p340 = pneg %p77
        $region69: #{transformer_encoder_forward.14} parent=66 // pred_check_branch
          %342 = sbr.rel (%p340) target = $region71
        $region70: #{transformer_encoder_forward.14} parent=66 // pred_region
          _
        $region71: #{transformer_encoder_forward.14} parent=66 // pred_fallthru
          _
        %s343 = smul.u32 2, %s22
        %p344 = scmp.lt.s32.totalorder %s343, 1
        %s345 = scalar_select %p344, %s343, 1
        %s346 = smul.addr %s345, 8
        %s347 = scalar_lea.vmem %s0, %s346
        %p348 = pneg %p51
        %p349 = pneg %p48
        %s350 = sand.u32 %s64, 1
        %s351 = sand.u32 %s64, 1
        %s352 = smul.addr %s351, 128
        %s353 = scalar_lea.vmem [#allocation3], %s352
        %p354 = pneg %p77
        %p355 = pneg %p74
        %s356 = smul.u32 4, %s23
        %p357 = scmp.lt.s32.totalorder %s356, 15
        %s358 = scalar_select %p357, %s356, 15
        %s359 = scalar_lea.vmem %s2, %s358
        %p360 = pneg %p103
        %p361 = pneg %p100
        %s362 = smul.u32 64, %s23
        %p363 = scmp.lt.s32.totalorder %s362, 255
        %s364 = scalar_select %p363, %s362, 255
        %s365 = smul.addr %s364, 8
        %s366 = scalar_lea.vmem %s3, %s365
        %p367 = pneg %p129
        %p368 = pneg %p126
        %p369 = pneg %p150
        %p370 = pneg %p147
        %p371 = pneg %p171
        %p372 = pneg %p168
        %p373 = pneg %p192
        %p374 = pneg %p189
        %p375 = pneg %p218
        %p376 = pneg %p215
        %s377 = smul.u32 2, %s22
        %p378 = scmp.lt.s32.totalorder %s377, 1
        %s379 = scalar_select %p378, %s377, 1
        %s380 = smul.addr %s379, 8
        %s381 = scalar_lea.vmem %s7, %s380
        %s382 = smul.u32 2, %s22
        %p383 = scmp.lt.s32.totalorder %s382, 1
        %s384 = scalar_select %p383, %s382, 1
        %s385 = smul.addr %s384, 8
        %s386 = scalar_lea.vmem %s0, %s385
        %s387 = smul.u32 2, %s22
        %s388 = smul.u32 4, %s23
        %s389 = smul.u32 4, %s23
        %p390 = scmp.lt.s32.totalorder %s389, 15
        %s391 = scalar_select %p390, %s389, 15
        %s392 = scalar_lea.vmem %s2, %s391
        %s393 = smul.u32 4, %s23
        %s394 = smul.u32 64, %s23
        %p395 = scmp.lt.s32.totalorder %s394, 255
        %s396 = scalar_select %p395, %s394, 255
        %s397 = smul.addr %s396, 8
        %s398 = scalar_lea.vmem %s3, %s397
        %s399 = smul.u32 64, %s23
        %s400 = smul.u32 2, %s22
        %p401 = scmp.lt.s32.totalorder %s400, 1
        %s402 = scalar_select %p401, %s400, 1
        %s403 = smul.addr %s402, 8
        %s404 = scalar_lea.vmem %s7, %s403
        %s405 = smul.u32 2, %s22
        %p406 = scmp.eq.s32.totalorder %s23, 0
        // Predicated region
        $region72: #{transformer_encoder_forward.14} parent=66 // pred_check
          %p407 = pneg %p406
        $region73: #{transformer_encoder_forward.14} parent=66 // pred_check_branch
          %409 = sbr.rel (%p407) target = $region75
        $region74: #{transformer_encoder_forward.14} parent=66 // pred_region
          %vm410 = vcmask 261120
          %411 = vst.msk [vmem:[#allocation2] sm:$0xff] %vm410, 0.0
          %412 = vst.msk [vmem:[#allocation2 + $0x8] sm:$0xff] %vm410, 0.0
        $region75: #{transformer_encoder_forward.14} parent=66 // pred_fallthru
          _
        %v413 = vld [vmem:[%s386] sm:$0xff]
        %v414 = vld [vmem:[%s386 + $0x8] sm:$0xff]
        %v415 = vld [vmem:[%s339] sm:$0xff]
        %v416 = vld [vmem:[%s339 + $0x8] sm:$0xff]
        %v417 = vld [vmem:[%s339 + $0x10] sm:$0xff]
        %v418 = vld [vmem:[%s339 + $0x18] sm:$0xff]
        %v419 = vld [vmem:[%s339 + $0x20] sm:$0xff]
        %v420 = vld [vmem:[%s339 + $0x28] sm:$0xff]
        %v421 = vld [vmem:[%s339 + $0x30] sm:$0xff]
        %v422 = vld [vmem:[%s339 + $0x38] sm:$0xff]
        %v423 = vld [vmem:[%s339 + $0x40] sm:$0xff]
        %v424 = vld [vmem:[%s339 + $0x48] sm:$0xff]
        %v425 = vld [vmem:[%s339 + $0x50] sm:$0xff]
        %v426 = vld [vmem:[%s339 + $0x58] sm:$0xff]
        %v427 = vld [vmem:[%s339 + $0x60] sm:$0xff]
        %v428 = vld [vmem:[%s339 + $0x68] sm:$0xff]
        %v429 = vld [vmem:[%s339 + $0x70] sm:$0xff]
        %v430 = vld [vmem:[%s339 + $0x78] sm:$0xff]
        %v431 = vld [vmem:[%s392] sm:$0xf]
        %v433 = vlaneseq
        %v434 = vshrl.u32 %v433, 7
        %v435 = vsub.s32 0, %v434
        %v436 = vrot.slane %v431, %v435
        %v437 = vlaneseq
        %v438 = vshrl.u32 %v437, 7
        %v439 = vsub.s32 1, %v438
        %v440 = vrot.slane %v431, %v439
        %v441 = vlaneseq
        %v442 = vshrl.u32 %v441, 7
        %v443 = vsub.s32 2, %v442
        %v444 = vrot.slane %v431, %v443
        %v445 = vlaneseq
        %v446 = vshrl.u32 %v445, 7
        %v447 = vsub.s32 3, %v446
        %v448 = vrot.slane %v431, %v447
        %vm453 = vcmask 261120
        %v455 = vsel %vm453, %v413, 0
        %v458 = vsel %vm453, %v414, 0
        %460 = vmatprep.subr.mxu0 %v416
        %461 = vmatpush1.msra.mxu0 %v415
        %462 = vmatprep.subr.mxu0 %v420
        %463 = vmatpush1.msra.mxu0 %v419
        %464 = vmatprep.subr.mxu0 %v424
        %465 = vmatpush1.msra.mxu0 %v423
        %466 = vmatprep.subr.mxu0 %v428
        %467 = vmatpush1.msra.mxu0 %v427
        %468 = vmatprep.subr.mxu0 0.0
        %469 = vmatpush1.msra.mxu0 0.0
        %470 = vmatprep.subr.mxu0 0.0
        %471 = vmatpush1.msra.mxu0 0.0
        %472 = vmatprep.subr.mxu0 0.0
        %473 = vmatpush1.msra.mxu0 0.0
        %474 = vmatprep.subr.mxu0 0.0
        %475 = vmatpush1.msra.mxu0 0.0
        %476 = vmatprep.subr.mxu0 0.0
        %477 = vmatpush1.msra.mxu0 0.0
        %478 = vmatprep.subr.mxu0 0.0
        %479 = vmatpush1.msra.mxu0 0.0
        %480 = vmatprep.subr.mxu0 0.0
        %481 = vmatpush1.msra.mxu0 0.0
        %482 = vmatprep.subr.mxu0 0.0
        %483 = vmatpush1.msra.mxu0 0.0
        %484 = vmatprep.subr.mxu0 0.0
        %485 = vmatpush1.msra.mxu0 0.0
        %486 = vmatprep.subr.mxu0 0.0
        %487 = vmatpush1.msra.mxu0 0.0
        %488 = vmatprep.subr.mxu0 0.0
        %489 = vmatpush1.msra.mxu0 0.0
        %490 = vmatprep.subr.mxu0 0.0
        %491 = vmatpush1.msra.mxu0 0.0
        %492 = vmatprep.subr.mxu0 0.0
        %493 = vmatpush1.msra.mxu0 0.0
        %494 = vmatprep.subr.mxu0 0.0
        %495 = vmatpush1.msra.mxu0 0.0
        %496 = vmatprep.subr.mxu0 0.0
        %497 = vmatpush1.msra.mxu0 0.0
        %498 = vmatprep.subr.mxu0 0.0
        %499 = vmatpush1.msra.mxu0 0.0
        %500 = vmatprep.subr.mxu0 0.0
        %501 = vmatpush1.msra.mxu0 0.0
        %502 = vmatprep.subr.mxu0 0.0
        %503 = vmatpush1.msra.mxu0 0.0
        %504 = vmatprep.subr.mxu0 0.0
        %505 = vmatpush1.msra.mxu0 0.0
        %506 = vmatprep.subr.mxu0 0.0
        %507 = vmatpush1.msra.mxu0 0.0
        %508 = vmatprep.subr.mxu0 0.0
        %509 = vmatpush1.msra.mxu0 0.0
        %510 = vmatprep.subr.mxu0 0.0
        %511 = vmatpush1.msra.mxu0 0.0
        %512 = vmatprep.subr.mxu0 0.0
        %513 = vmatpush1.msra.mxu0 0.0
        %514 = vmatprep.subr.mxu0 0.0
        %515 = vmatpush1.msra.mxu0 0.0
        %516 = vmatprep.subr.mxu0 0.0
        %517 = vmatpush1.msra.mxu0 0.0
        %518 = vmatprep.subr.mxu0 0.0
        %519 = vmatpush1.msra.mxu0 0.0
        %520 = vmatprep.subr.mxu0 0.0
        %521 = vmatpush1.msra.mxu0 0.0
        %522 = vmatprep.subr.mxu0 0.0
        %523 = vmatpush1.msra.mxu0 0.0
        %524 = vmatprep.mubr.f32.mxu0 0.0
        %525 = vmatmul.mubr.f32.gmra.mrb[0].mxu0 %v455
        %v526 = vpop.f32.mrb[0].mxu0
        %v527 = vadd.f32 %v436, %v526
        %v528 = vpop.f32.mrb[0].mxu0
        %v529 = vadd.f32 %v440, %v528
        %530 = vmatprep.mubr.f32.mxu0 0.0
        %531 = vmatmul.mubr.f32.gmra.mrb[0].mxu0 %v458
        %v532 = vpop.f32.mrb[0].mxu0
        %v533 = vadd.f32 %v436, %v532
        %v534 = vpop.f32.mrb[0].mxu0
        %v535 = vadd.f32 %v440, %v534
        %536 = vdwg.mxu0
        %537 = vmatprep.subr.mxu0 %v418
        %538 = vmatpush1.msra.mxu0 %v417
        %539 = vmatprep.subr.mxu0 %v422
        %540 = vmatpush1.msra.mxu0 %v421
        %541 = vmatprep.subr.mxu0 %v426
        %542 = vmatpush1.msra.mxu0 %v425
        %543 = vmatprep.subr.mxu0 %v430
        %544 = vmatpush1.msra.mxu0 %v429
        %545 = vmatprep.subr.mxu0 0.0
        %546 = vmatpush1.msra.mxu0 0.0
        %547 = vmatprep.subr.mxu0 0.0
        %548 = vmatpush1.msra.mxu0 0.0
        %549 = vmatprep.subr.mxu0 0.0
        %550 = vmatpush1.msra.mxu0 0.0
        %551 = vmatprep.subr.mxu0 0.0
        %552 = vmatpush1.msra.mxu0 0.0
        %553 = vmatprep.subr.mxu0 0.0
        %554 = vmatpush1.msra.mxu0 0.0
        %555 = vmatprep.subr.mxu0 0.0
        %556 = vmatpush1.msra.mxu0 0.0
        %557 = vmatprep.subr.mxu0 0.0
        %558 = vmatpush1.msra.mxu0 0.0
        %559 = vmatprep.subr.mxu0 0.0
        %560 = vmatpush1.msra.mxu0 0.0
        %561 = vmatprep.subr.mxu0 0.0
        %562 = vmatpush1.msra.mxu0 0.0
        %563 = vmatprep.subr.mxu0 0.0
        %564 = vmatpush1.msra.mxu0 0.0
        %565 = vmatprep.subr.mxu0 0.0
        %566 = vmatpush1.msra.mxu0 0.0
        %567 = vmatprep.subr.mxu0 0.0
        %568 = vmatpush1.msra.mxu0 0.0
        %569 = vmatprep.subr.mxu0 0.0
        %570 = vmatpush1.msra.mxu0 0.0
        %571 = vmatprep.subr.mxu0 0.0
        %572 = vmatpush1.msra.mxu0 0.0
        %573 = vmatprep.subr.mxu0 0.0
        %574 = vmatpush1.msra.mxu0 0.0
        %575 = vmatprep.subr.mxu0 0.0
        %576 = vmatpush1.msra.mxu0 0.0
        %577 = vmatprep.subr.mxu0 0.0
        %578 = vmatpush1.msra.mxu0 0.0
        %579 = vmatprep.subr.mxu0 0.0
        %580 = vmatpush1.msra.mxu0 0.0
        %581 = vmatprep.subr.mxu0 0.0
        %582 = vmatpush1.msra.mxu0 0.0
        %583 = vmatprep.subr.mxu0 0.0
        %584 = vmatpush1.msra.mxu0 0.0
        %585 = vmatprep.subr.mxu0 0.0
        %586 = vmatpush1.msra.mxu0 0.0
        %587 = vmatprep.subr.mxu0 0.0
        %588 = vmatpush1.msra.mxu0 0.0
        %589 = vmatprep.subr.mxu0 0.0
        %590 = vmatpush1.msra.mxu0 0.0
        %591 = vmatprep.subr.mxu0 0.0
        %592 = vmatpush1.msra.mxu0 0.0
        %593 = vmatprep.subr.mxu0 0.0
        %594 = vmatpush1.msra.mxu0 0.0
        %595 = vmatprep.subr.mxu0 0.0
        %596 = vmatpush1.msra.mxu0 0.0
        %597 = vmatprep.subr.mxu0 0.0
        %598 = vmatpush1.msra.mxu0 0.0
        %599 = vmatprep.subr.mxu0 0.0
        %600 = vmatpush1.msra.mxu0 0.0
        %601 = vmatprep.mubr.f32.mxu0 0.0
        %602 = vmatmul.mubr.f32.gmra.mrb[0].mxu0 %v455
        %v603 = vpop.f32.mrb[0].mxu0
        %v604 = vadd.f32 %v444, %v603
        %v605 = vpop.f32.mrb[0].mxu0
        %v606 = vadd.f32 %v448, %v605
        %607 = vmatprep.mubr.f32.mxu0 0.0
        %608 = vmatmul.mubr.f32.gmra.mrb[0].mxu0 %v458
        %v609 = vpop.f32.mrb[0].mxu0
        %v610 = vadd.f32 %v444, %v609
        %v611 = vpop.f32.mrb[0].mxu0
        %v612 = vadd.f32 %v448, %v611
        %613 = vdwg.mxu0
        %v614 = vmax.f32 %v527, 0.0
        %v615 = vmax.f32 %v529, 0.0
        %v616 = vmax.f32 %v604, 0.0
        %v617 = vmax.f32 %v606, 0.0
        %v618 = vmax.f32 %v533, 0.0
        %v619 = vmax.f32 %v535, 0.0
        %v620 = vmax.f32 %v610, 0.0
        %v621 = vmax.f32 %v612, 0.0
        %v622 = vld [vmem:[#allocation2] sm:$0xff]
        %v623 = vld [vmem:[#allocation2 + $0x8] sm:$0xff]
        %v624 = vld [vmem:[%s398] sm:$0xff]
        %v625 = vld [vmem:[%s398 + $0x8] sm:$0xff]
        %v626 = vld [vmem:[%s398 + $0x10] sm:$0xff]
        %v627 = vld [vmem:[%s398 + $0x18] sm:$0xff]
        %v628 = vld [vmem:[%s398 + $0x20] sm:$0xff]
        %v629 = vld [vmem:[%s398 + $0x28] sm:$0xff]
        %v630 = vld [vmem:[%s398 + $0x30] sm:$0xff]
        %v631 = vld [vmem:[%s398 + $0x38] sm:$0xff]
        %v632 = vld [vmem:[%s398 + $0x40] sm:$0xff]
        %v633 = vld [vmem:[%s398 + $0x48] sm:$0xff]
        %v634 = vld [vmem:[%s398 + $0x50] sm:$0xff]
        %v635 = vld [vmem:[%s398 + $0x58] sm:$0xff]
        %v636 = vld [vmem:[%s398 + $0x60] sm:$0xff]
        %v637 = vld [vmem:[%s398 + $0x68] sm:$0xff]
        %v638 = vld [vmem:[%s398 + $0x70] sm:$0xff]
        %v639 = vld [vmem:[%s398 + $0x78] sm:$0xff]
        %v640 = vld [vmem:[%s398 + $0x80] sm:$0xff]
        %v641 = vld [vmem:[%s398 + $0x88] sm:$0xff]
        %v642 = vld [vmem:[%s398 + $0x90] sm:$0xff]
        %v643 = vld [vmem:[%s398 + $0x98] sm:$0xff]
        %v644 = vld [vmem:[%s398 + $0xa0] sm:$0xff]
        %v645 = vld [vmem:[%s398 + $0xa8] sm:$0xff]
        %v646 = vld [vmem:[%s398 + $0xb0] sm:$0xff]
        %v647 = vld [vmem:[%s398 + $0xb8] sm:$0xff]
        %v648 = vld [vmem:[%s398 + $0xc0] sm:$0xff]
        %v649 = vld [vmem:[%s398 + $0xc8] sm:$0xff]
        %v650 = vld [vmem:[%s398 + $0xd0] sm:$0xff]
        %v651 = vld [vmem:[%s398 + $0xd8] sm:$0xff]
        %v652 = vld [vmem:[%s398 + $0xe0] sm:$0xff]
        %v653 = vld [vmem:[%s398 + $0xe8] sm:$0xff]
        %v654 = vld [vmem:[%s398 + $0xf0] sm:$0xff]
        %v655 = vld [vmem:[%s398 + $0xf8] sm:$0xff]
        %v656 = vld [vmem:[%s398 + $0x100] sm:$0xff]
        %v657 = vld [vmem:[%s398 + $0x108] sm:$0xff]
        %v658 = vld [vmem:[%s398 + $0x110] sm:$0xff]
        %v659 = vld [vmem:[%s398 + $0x118] sm:$0xff]
        %v660 = vld [vmem:[%s398 + $0x120] sm:$0xff]
        %v661 = vld [vmem:[%s398 + $0x128] sm:$0xff]
        %v662 = vld [vmem:[%s398 + $0x130] sm:$0xff]
        %v663 = vld [vmem:[%s398 + $0x138] sm:$0xff]
        %v664 = vld [vmem:[%s398 + $0x140] sm:$0xff]
        %v665 = vld [vmem:[%s398 + $0x148] sm:$0xff]
        %v666 = vld [vmem:[%s398 + $0x150] sm:$0xff]
        %v667 = vld [vmem:[%s398 + $0x158] sm:$0xff]
        %v668 = vld [vmem:[%s398 + $0x160] sm:$0xff]
        %v669 = vld [vmem:[%s398 + $0x168] sm:$0xff]
        %v670 = vld [vmem:[%s398 + $0x170] sm:$0xff]
        %v671 = vld [vmem:[%s398 + $0x178] sm:$0xff]
        %v672 = vld [vmem:[%s398 + $0x180] sm:$0xff]
        %v673 = vld [vmem:[%s398 + $0x188] sm:$0xff]
        %v674 = vld [vmem:[%s398 + $0x190] sm:$0xff]
        %v675 = vld [vmem:[%s398 + $0x198] sm:$0xff]
        %v676 = vld [vmem:[%s398 + $0x1a0] sm:$0xff]
        %v677 = vld [vmem:[%s398 + $0x1a8] sm:$0xff]
        %v678 = vld [vmem:[%s398 + $0x1b0] sm:$0xff]
        %v679 = vld [vmem:[%s398 + $0x1b8] sm:$0xff]
        %v680 = vld [vmem:[%s398 + $0x1c0] sm:$0xff]
        %v681 = vld [vmem:[%s398 + $0x1c8] sm:$0xff]
        %v682 = vld [vmem:[%s398 + $0x1d0] sm:$0xff]
        %v683 = vld [vmem:[%s398 + $0x1d8] sm:$0xff]
        %v684 = vld [vmem:[%s398 + $0x1e0] sm:$0xff]
        %v685 = vld [vmem:[%s398 + $0x1e8] sm:$0xff]
        %v686 = vld [vmem:[%s398 + $0x1f0] sm:$0xff]
        %v687 = vld [vmem:[%s398 + $0x1f8] sm:$0xff]
        %688 = vmatprep.subr.mxu0 0.0
        %689 = vmatpush1.msra.mxu0 %v624
        %690 = vmatprep.subr.mxu0 0.0
        %691 = vmatpush1.msra.mxu0 %v625
        %692 = vmatprep.subr.mxu0 0.0
        %693 = vmatpush1.msra.mxu0 %v626
        %694 = vmatprep.subr.mxu0 0.0
        %695 = vmatpush1.msra.mxu0 %v627
        %696 = vmatprep.subr.mxu0 0.0
        %697 = vmatpush1.msra.mxu0 %v628
        %698 = vmatprep.subr.mxu0 0.0
        %699 = vmatpush1.msra.mxu0 %v629
        %700 = vmatprep.subr.mxu0 0.0
        %701 = vmatpush1.msra.mxu0 %v630
        %702 = vmatprep.subr.mxu0 0.0
        %703 = vmatpush1.msra.mxu0 %v631
        %704 = vmatprep.subr.mxu0 0.0
        %705 = vmatpush1.msra.mxu0 %v632
        %706 = vmatprep.subr.mxu0 0.0
        %707 = vmatpush1.msra.mxu0 %v633
        %708 = vmatprep.subr.mxu0 0.0
        %709 = vmatpush1.msra.mxu0 %v634
        %710 = vmatprep.subr.mxu0 0.0
        %711 = vmatpush1.msra.mxu0 %v635
        %712 = vmatprep.subr.mxu0 0.0
        %713 = vmatpush1.msra.mxu0 %v636
        %714 = vmatprep.subr.mxu0 0.0
        %715 = vmatpush1.msra.mxu0 %v637
        %716 = vmatprep.subr.mxu0 0.0
        %717 = vmatpush1.msra.mxu0 %v638
        %718 = vmatprep.subr.mxu0 0.0
        %719 = vmatpush1.msra.mxu0 %v639
        %720 = vmatprep.subr.mxu0 0.0
        %721 = vmatpush1.msra.mxu0 %v640
        %722 = vmatprep.subr.mxu0 0.0
        %723 = vmatpush1.msra.mxu0 %v641
        %724 = vmatprep.subr.mxu0 0.0
        %725 = vmatpush1.msra.mxu0 %v642
        %726 = vmatprep.subr.mxu0 0.0
        %727 = vmatpush1.msra.mxu0 %v643
        %728 = vmatprep.subr.mxu0 0.0
        %729 = vmatpush1.msra.mxu0 %v644
        %730 = vmatprep.subr.mxu0 0.0
        %731 = vmatpush1.msra.mxu0 %v645
        %732 = vmatprep.subr.mxu0 0.0
        %733 = vmatpush1.msra.mxu0 %v646
        %734 = vmatprep.subr.mxu0 0.0
        %735 = vmatpush1.msra.mxu0 %v647
        %736 = vmatprep.subr.mxu0 0.0
        %737 = vmatpush1.msra.mxu0 %v648
        %738 = vmatprep.subr.mxu0 0.0
        %739 = vmatpush1.msra.mxu0 %v649
        %740 = vmatprep.subr.mxu0 0.0
        %741 = vmatpush1.msra.mxu0 %v650
        %742 = vmatprep.subr.mxu0 0.0
        %743 = vmatpush1.msra.mxu0 %v651
        %744 = vmatprep.subr.mxu0 0.0
        %745 = vmatpush1.msra.mxu0 %v652
        %746 = vmatprep.subr.mxu0 0.0
        %747 = vmatpush1.msra.mxu0 %v653
        %748 = vmatprep.subr.mxu0 0.0
        %749 = vmatpush1.msra.mxu0 %v654
        %750 = vmatprep.subr.mxu0 0.0
        %751 = vmatpush1.msra.mxu0 %v655
        %752 = vmatprep.mubr.f32.mxu0 %v615
        %753 = vmatmul.mubr.f32.gmra.mrb[0].mxu0 %v614
        %v754 = vpop.f32.mrb[0].mxu0
        %v755 = vadd.f32 0.0, %v754
        %v756 = vpop.f32.mrb[0].mxu0
        %757 = vmatprep.mubr.f32.mxu0 %v619
        %758 = vmatmul.mubr.f32.gmra.mrb[0].mxu0 %v618
        %v759 = vpop.f32.mrb[0].mxu0
        %v760 = vadd.f32 0.0, %v759
        %v761 = vpop.f32.mrb[0].mxu0
        %762 = vdwg.mxu0
        %763 = vmatprep.subr.mxu0 0.0
        %764 = vmatpush1.msra.mxu0 %v656
        %765 = vmatprep.subr.mxu0 0.0
        %766 = vmatpush1.msra.mxu0 %v657
        %767 = vmatprep.subr.mxu0 0.0
        %768 = vmatpush1.msra.mxu0 %v658
        %769 = vmatprep.subr.mxu0 0.0
        %770 = vmatpush1.msra.mxu0 %v659
        %771 = vmatprep.subr.mxu0 0.0
        %772 = vmatpush1.msra.mxu0 %v660
        %773 = vmatprep.subr.mxu0 0.0
        %774 = vmatpush1.msra.mxu0 %v661
        %775 = vmatprep.subr.mxu0 0.0
        %776 = vmatpush1.msra.mxu0 %v662
        %777 = vmatprep.subr.mxu0 0.0
        %778 = vmatpush1.msra.mxu0 %v663
        %779 = vmatprep.subr.mxu0 0.0
        %780 = vmatpush1.msra.mxu0 %v664
        %781 = vmatprep.subr.mxu0 0.0
        %782 = vmatpush1.msra.mxu0 %v665
        %783 = vmatprep.subr.mxu0 0.0
        %784 = vmatpush1.msra.mxu0 %v666
        %785 = vmatprep.subr.mxu0 0.0
        %786 = vmatpush1.msra.mxu0 %v667
        %787 = vmatprep.subr.mxu0 0.0
        %788 = vmatpush1.msra.mxu0 %v668
        %789 = vmatprep.subr.mxu0 0.0
        %790 = vmatpush1.msra.mxu0 %v669
        %791 = vmatprep.subr.mxu0 0.0
        %792 = vmatpush1.msra.mxu0 %v670
        %793 = vmatprep.subr.mxu0 0.0
        %794 = vmatpush1.msra.mxu0 %v671
        %795 = vmatprep.subr.mxu0 0.0
        %796 = vmatpush1.msra.mxu0 %v672
        %797 = vmatprep.subr.mxu0 0.0
        %798 = vmatpush1.msra.mxu0 %v673
        %799 = vmatprep.subr.mxu0 0.0
        %800 = vmatpush1.msra.mxu0 %v674
        %801 = vmatprep.subr.mxu0 0.0
        %802 = vmatpush1.msra.mxu0 %v675
        %803 = vmatprep.subr.mxu0 0.0
        %804 = vmatpush1.msra.mxu0 %v676
        %805 = vmatprep.subr.mxu0 0.0
        %806 = vmatpush1.msra.mxu0 %v677
        %807 = vmatprep.subr.mxu0 0.0
        %808 = vmatpush1.msra.mxu0 %v678
        %809 = vmatprep.subr.mxu0 0.0
        %810 = vmatpush1.msra.mxu0 %v679
        %811 = vmatprep.subr.mxu0 0.0
        %812 = vmatpush1.msra.mxu0 %v680
        %813 = vmatprep.subr.mxu0 0.0
        %814 = vmatpush1.msra.mxu0 %v681
        %815 = vmatprep.subr.mxu0 0.0
        %816 = vmatpush1.msra.mxu0 %v682
        %817 = vmatprep.subr.mxu0 0.0
        %818 = vmatpush1.msra.mxu0 %v683
        %819 = vmatprep.subr.mxu0 0.0
        %820 = vmatpush1.msra.mxu0 %v684
        %821 = vmatprep.subr.mxu0 0.0
        %822 = vmatpush1.msra.mxu0 %v685
        %823 = vmatprep.subr.mxu0 0.0
        %824 = vmatpush1.msra.mxu0 %v686
        %825 = vmatprep.subr.mxu0 0.0
        %826 = vmatpush1.msra.mxu0 %v687
        %827 = vmatprep.mubr.f32.mxu0 %v617
        %828 = vmatmul.mubr.f32.gmra.mrb[0].mxu0 %v616
        %v829 = vpop.f32.mrb[0].mxu0
        %v830 = vadd.f32 %v755, %v829
        %v831 = vpop.f32.mrb[0].mxu0
        %832 = vmatprep.mubr.f32.mxu0 %v621
        %833 = vmatmul.mubr.f32.gmra.mrb[0].mxu0 %v620
        %v834 = vpop.f32.mrb[0].mxu0
        %v835 = vadd.f32 %v760, %v834
        %v836 = vpop.f32.mrb[0].mxu0
        %837 = vdwg.mxu0
        %v838 = vadd.f32 %v622, %v830
        %v839 = vadd.f32 %v623, %v835
        %840 = vst.msk [vmem:[#allocation2] sm:$0xff] %vm453, %v838
        %841 = vst.msk [vmem:[#allocation2 + $0x8] sm:$0xff] %vm453, %v839
        %p842 = scmp.eq.s32.totalorder %s23, 3
        // Predicated region
        $region76: #{transformer_encoder_forward.14} parent=66 // pred_check
          %p843 = pneg %p842
        $region77: #{transformer_encoder_forward.14} parent=66 // pred_check_branch
          %845 = sbr.rel (%p843) target = $region79
        $region78: #{transformer_encoder_forward.14} parent=66 // pred_region
          %v846 = vld [vmem:[#allocation2] sm:$0xff]
          %v847 = vld [vmem:[#allocation2 + $0x8] sm:$0xff]
          %v848 = vld [vmem:[%s4] sm:$0x1]
          %v850 = vlaneseq
          %v851 = vshrl.u32 %v850, 7
          %v852 = vsub.s32 0, %v851
          %v853 = vrot.slane %v848, %v852
          %v855 = vadd.f32 %v846, %v853
          %v856 = vadd.f32 %v847, %v853
          %v857 = vld [vmem:[%s386] sm:$0xff]
          %v858 = vld [vmem:[%s386 + $0x8] sm:$0xff]
          %v859 = vadd.f32 %v855, %v857
          %v860 = vadd.f32 %v856, %v858
          %v861 = vsel %vm453, %v859, 0.0
          %862 = vadd.xlane.f32.xlu0 %v861
          %v863 = vpop.xlane.xlu0 %862
          %v864 = vsel %vm453, %v860, 0.0
          %865 = vadd.xlane.f32.xlu0 %v864
          %v866 = vpop.xlane.xlu0 %865
          %v867 = vrcp.pop 32.0
          %v868 = vmul.f32 %v863, %v867
          %v869 = vmul.f32 %v866, %v867
          %v870 = vsub.f32 %v859, %v868
          %v871 = vsub.f32 %v860, %v869
          %v872 = vmul.f32 %v870, %v870
          %v873 = vmul.f32 %v871, %v871
          %v874 = vsel %vm453, %v872, 0.0
          %875 = vadd.xlane.f32.xlu0 %v874
          %v876 = vpop.xlane.xlu0 %875
          %v877 = vsel %vm453, %v873, 0.0
          %878 = vadd.xlane.f32.xlu0 %v877
          %v879 = vpop.xlane.xlu0 %878
          %v880 = vmul.f32 %v876, %v867
          %v881 = vmul.f32 %v879, %v867
          %v882 = vadd.f32 %v880, 1e-05
          %v883 = vadd.f32 %v881, 1e-05
          %v884 = vrsqrt.pop %v882
          %v885 = vrsqrt.pop %v883
          %v886 = vmul.f32 %v870, %v884
          %v887 = vmul.f32 %v871, %v885
          %v888 = vld [vmem:[%s5] sm:$0x1]
          %v890 = vlaneseq
          %v891 = vshrl.u32 %v890, 7
          %v892 = vsub.s32 0, %v891
          %v893 = vrot.slane %v888, %v892
          %v895 = vmul.f32 %v886, %v893
          %v896 = vmul.f32 %v887, %v893
          %v897 = vld [vmem:[%s6] sm:$0x1]
          %v899 = vlaneseq
          %v900 = vshrl.u32 %v899, 7
          %v901 = vsub.s32 0, %v900
          %v902 = vrot.slane %v897, %v901
          %v904 = vadd.f32 %v895, %v902
          %v905 = vadd.f32 %v896, %v902
          %906 = vst.msk [vmem:[%s404] sm:$0xff] %vm453, %v904
          %907 = vst.msk [vmem:[%s404 + $0x8] sm:$0xff] %vm453, %v905
        $region79: #{transformer_encoder_forward.14} parent=66 // pred_fallthru
          _
        %s908 = smul.u32 2, %s22
        %p909 = scmp.lt.s32.totalorder %s908, 1
        %s910 = scalar_select %p909, %s908, 1
        %s911 = smul.addr %s910, 8
        %s912 = scalar_lea.vmem %s7, %s911
        // Predicated region
        $region80: #{transformer_encoder_forward.14} parent=66 // pred_check
          %p913 = pneg %p215
        $region81: #{transformer_encoder_forward.14} parent=66 // pred_check_branch
          %915 = sbr.rel (%p913) target = $region83
        $region82: #{transformer_encoder_forward.14} parent=66 // pred_region
          %s916 = smul.u32 2, %s22
        $region83: #{transformer_encoder_forward.14} parent=66 // pred_fallthru
          _
        // Predicated region
        $region84: #{transformer_encoder_forward.14} parent=66 // pred_check
          %p917 = pneg %p215
        $region85: #{transformer_encoder_forward.14} parent=66 // pred_check_branch
          %919 = sbr.rel (%p917) target = $region87
        $region86: #{transformer_encoder_forward.14} parent=66 // pred_region
          %s920 = smul.u32 2, %s22
          %p921 = scmp.lt.s32.totalorder %s920, 1
          %s922 = scalar_select %p921, %s920, 1
          %s923 = smul.addr %s922, 8
          %s924 = scalar_lea.vmem %s7, %s923
        $region87: #{transformer_encoder_forward.14} parent=66 // pred_fallthru
          _
      $region67: #{transformer_encoder_forward.14} parent=5 // pred_fallthru
        _
      %p925 = scmp.le.s32.totalorder 2, %s13
      // Predicated region
      $region88: #{transformer_encoder_forward.14} parent=5 // pred_check
        %p926 = pneg %p925
      $region89: #{transformer_encoder_forward.14} parent=5 // pred_check_branch
        %928 = sbr.rel (%p926) target = $region91
      $region90: #{transformer_encoder_forward.14} parent=5 // pred_region
        %s929 = ssub.s32 %s13, 2
      $region91: #{transformer_encoder_forward.14} parent=5 // pred_fallthru
        _
    $region6: #{transformer_encoder_forward.14} parent=1 // loop_footer
      %s17 = sadd.s32 1, %s13
    $region7: #{transformer_encoder_forward.14} parent=1 // loop_footer_branch
      %12 = sbr.rel target = $region3
    $region8: #{transformer_encoder_forward.14} parent=1 // loop_exit
      _

// kernel: transformer_encoder_forward.19
$region0: #{transformer_encoder_forward.19}
  #allocation0 [shape = 'u32[]', space=smem, size = 0x4, offset = 0x4, fixed_abs, tag = 'smem constant byte address 0x4 - core index']
  #allocation1 [shape = 'u32[144,128]{1,0:T(1,128)}', space=vmem, size = 0x12000, scoped, tag = 'internal scratch']
  #allocation2 [shape = 'f32[16,16]{1,0:T(8,128)}', space=vmem, size = 0x2000, scoped, tag = 'scratch operand']
  %s0 = inlined_call_operand.vmem [shape: f32[16,32], index: 0, kind: input, shape index: {}]
  %s1 = inlined_call_operand.vmem [shape: f32[32,16], index: 1, kind: input, shape index: {}]
  %s2 = inlined_call_operand.vmem [shape: f32[1,16], index: 2, kind: input, shape index: {}]
  %s3 = inlined_call_operand.hbm [shape: f32[16,16], index: 3, kind: output, shape index: {}]
  %s4 = sld [smem:[#allocation0]]
  $region30: #{transformer_encoder_forward.19} parent=0
    _
  %s6 = ssub.s32 1, %s4
  %s7 = scalar_select 0, %s6, %s4
  $region1: #{transformer_encoder_forward.19} parent=0
    #allocation3 [shape = 'u8[8192]{0}', space=vmem, size = 0x2000, scoped, tag = 'output window, operand 0, single buffered']
    #allocation4 [shape = 's32[1]{0}', space=sflag, size = 0x4, scoped, tag = 'scoped memory for transformer_encoder_forward.19']
    %8 = vsyncpa [#allocation4], 0
    // Predicated region
    $region2: #{transformer_encoder_forward.19} parent=1 // pred_check
      _
    $region3: #{transformer_encoder_forward.19} parent=1 // pred_check_branch
      %10 = sbr.rel (0) target = $region5
    $region4: #{transformer_encoder_forward.19} parent=1 // pred_region
      _
    $region5: #{transformer_encoder_forward.19} parent=1 // pred_fallthru
      _
    // Predicated region
    $region6: #{transformer_encoder_forward.19} parent=1 // pred_check
      _
    $region7: #{transformer_encoder_forward.19} parent=1 // pred_check_branch
      %12 = sbr.rel (0) target = $region9
    $region8: #{transformer_encoder_forward.19} parent=1 // pred_region
      _
    $region9: #{transformer_encoder_forward.19} parent=1 // pred_fallthru
      _
    // Predicated region
    $region10: #{transformer_encoder_forward.19} parent=1 // pred_check
      _
    $region11: #{transformer_encoder_forward.19} parent=1 // pred_check_branch
      %14 = sbr.rel (0) target = $region13
    $region12: #{transformer_encoder_forward.19} parent=1 // pred_region
      _
    $region13: #{transformer_encoder_forward.19} parent=1 // pred_fallthru
      _
    %p15 = scmp.eq.s32.totalorder 0, 0
    // Predicated region
    $region14: #{transformer_encoder_forward.19} parent=1 // pred_check
      %p16 = pneg %p15
    $region15: #{transformer_encoder_forward.19} parent=1 // pred_check_branch
      %18 = sbr.rel (%p16) target = $region17
    $region16: #{transformer_encoder_forward.19} parent=1 // pred_region
      %vm19 = vcmask 130048
      %20 = vst.msk [vmem:[#allocation2] sm:$0xff] %vm19, 0.0
      %21 = vst.msk [vmem:[#allocation2 + $0x8] sm:$0xff] %vm19, 0.0
    $region17: #{transformer_encoder_forward.19} parent=1 // pred_fallthru
      _
    %v22 = vld [vmem:[#allocation2] sm:$0xff]
    %v23 = vld [vmem:[#allocation2 + $0x8] sm:$0xff]
    %v24 = vld [vmem:[%s0] sm:$0xff]
    %v25 = vld [vmem:[%s0 + $0x8] sm:$0xff]
    %v26 = vld [vmem:[%s1] sm:$0xff]
    %v27 = vld [vmem:[%s1 + $0x8] sm:$0xff]
    %v28 = vld [vmem:[%s1 + $0x10] sm:$0xff]
    %v29 = vld [vmem:[%s1 + $0x18] sm:$0xff]
    %vm30 = vcmask 261120
    %v32 = vsel %vm30, %v24, 0
    %v35 = vsel %vm30, %v25, 0
    %37 = vmatprep.subr.mxu0 0.0
    %38 = vmatpush1.msra.mxu0 %v26
    %39 = vmatprep.subr.mxu0 0.0
    %40 = vmatpush1.msra.mxu0 %v27
    %41 = vmatprep.subr.mxu0 0.0
    %42 = vmatpush1.msra.mxu0 %v28
    %43 = vmatprep.subr.mxu0 0.0
    %44 = vmatpush1.msra.mxu0 %v29
    %45 = vmatprep.subr.mxu0 0.0
    %46 = vmatpush1.msra.mxu0 0.0
    %47 = vmatprep.subr.mxu0 0.0
    %48 = vmatpush1.msra.mxu0 0.0
    %49 = vmatprep.subr.mxu0 0.0
    %50 = vmatpush1.msra.mxu0 0.0
    %51 = vmatprep.subr.mxu0 0.0
    %52 = vmatpush1.msra.mxu0 0.0
    %53 = vmatprep.subr.mxu0 0.0
    %54 = vmatpush1.msra.mxu0 0.0
    %55 = vmatprep.subr.mxu0 0.0
    %56 = vmatpush1.msra.mxu0 0.0
    %57 = vmatprep.subr.mxu0 0.0
    %58 = vmatpush1.msra.mxu0 0.0
    %59 = vmatprep.subr.mxu0 0.0
    %60 = vmatpush1.msra.mxu0 0.0
    %61 = vmatprep.subr.mxu0 0.0
    %62 = vmatpush1.msra.mxu0 0.0
    %63 = vmatprep.subr.mxu0 0.0
    %64 = vmatpush1.msra.mxu0 0.0
    %65 = vmatprep.subr.mxu0 0.0
    %66 = vmatpush1.msra.mxu0 0.0
    %67 = vmatprep.subr.mxu0 0.0
    %68 = vmatpush1.msra.mxu0 0.0
    %69 = vmatprep.subr.mxu0 0.0
    %70 = vmatpush1.msra.mxu0 0.0
    %71 = vmatprep.subr.mxu0 0.0
    %72 = vmatpush1.msra.mxu0 0.0
    %73 = vmatprep.subr.mxu0 0.0
    %74 = vmatpush1.msra.mxu0 0.0
    %75 = vmatprep.subr.mxu0 0.0
    %76 = vmatpush1.msra.mxu0 0.0
    %77 = vmatprep.subr.mxu0 0.0
    %78 = vmatpush1.msra.mxu0 0.0
    %79 = vmatprep.subr.mxu0 0.0
    %80 = vmatpush1.msra.mxu0 0.0
    %81 = vmatprep.subr.mxu0 0.0
    %82 = vmatpush1.msra.mxu0 0.0
    %83 = vmatprep.subr.mxu0 0.0
    %84 = vmatpush1.msra.mxu0 0.0
    %85 = vmatprep.subr.mxu0 0.0
    %86 = vmatpush1.msra.mxu0 0.0
    %87 = vmatprep.subr.mxu0 0.0
    %88 = vmatpush1.msra.mxu0 0.0
    %89 = vmatprep.subr.mxu0 0.0
    %90 = vmatpush1.msra.mxu0 0.0
    %91 = vmatprep.subr.mxu0 0.0
    %92 = vmatpush1.msra.mxu0 0.0
    %93 = vmatprep.subr.mxu0 0.0
    %94 = vmatpush1.msra.mxu0 0.0
    %95 = vmatprep.subr.mxu0 0.0
    %96 = vmatpush1.msra.mxu0 0.0
    %97 = vmatprep.subr.mxu0 0.0
    %98 = vmatpush1.msra.mxu0 0.0
    %99 = vmatprep.subr.mxu0 0.0
    %100 = vmatpush1.msra.mxu0 0.0
    %101 = vmatprep.mubr.f32.mxu0 0.0
    %102 = vmatmul.mubr.f32.gmra.mrb[0].mxu0 %v32
    %v103 = vpop.f32.mrb[0].mxu0
    %v104 = vadd.f32 0.0, %v103
    %v105 = vpop.f32.mrb[0].mxu0
    %106 = vmatprep.mubr.f32.mxu0 0.0
    %107 = vmatmul.mubr.f32.gmra.mrb[0].mxu0 %v35
    %v108 = vpop.f32.mrb[0].mxu0
    %v109 = vadd.f32 0.0, %v108
    %v110 = vpop.f32.mrb[0].mxu0
    %111 = vdwg.mxu0
    %v112 = vadd.f32 %v22, %v104
    %v113 = vadd.f32 %v23, %v109
    %vm114 = vcmask 130048
    %115 = vst.msk [vmem:[#allocation2] sm:$0xff] %vm114, %v112
    %116 = vst.msk [vmem:[#allocation2 + $0x8] sm:$0xff] %vm114, %v113
    // Predicated region
    $region18: #{transformer_encoder_forward.19} parent=1 // pred_check
      %p117 = pneg %p15
    $region19: #{transformer_encoder_forward.19} parent=1 // pred_check_branch
      %119 = sbr.rel (%p117) target = $region21
    $region20: #{transformer_encoder_forward.19} parent=1 // pred_region
      %v120 = vld [vmem:[#allocation2] sm:$0xff]
      %v121 = vld [vmem:[#allocation2 + $0x8] sm:$0xff]
      %v122 = vld [vmem:[%s2] sm:$0x1]
      %v124 = vlaneseq
      %v125 = vshrl.u32 %v124, 7
      %v126 = vsub.s32 0, %v125
      %v127 = vrot.slane %v122, %v126
      %v129 = vadd.f32 %v120, %v127
      %v130 = vadd.f32 %v121, %v127
      %131 = vst.msk [vmem:[#allocation3] sm:$0xff] %vm114, %v129
      %132 = vst.msk [vmem:[#allocation3 + $0x8] sm:$0xff] %vm114, %v130
    $region21: #{transformer_encoder_forward.19} parent=1 // pred_fallthru
      _
    // Predicated region
    $region22: #{transformer_encoder_forward.19} parent=1 // pred_check
      _
    $region23: #{transformer_encoder_forward.19} parent=1 // pred_check_branch
      %134 = sbr.rel (0) target = $region25
    $region24: #{transformer_encoder_forward.19} parent=1 // pred_region
      %s136 = ssub.s32 256, 256
      %137 = vsyncadd [#allocation4], %s136
      %s138 = sshll.u32 [#allocation3], 4
      %s139 = int_to_ptr.vmem [resolvable:$true] %s138
      %144 = dma.vmem_to_hbm [thread:$0]  %s139, 256, %s3, [#allocation4], 128, 128, 8
    $region25: #{transformer_encoder_forward.19} parent=1 // pred_fallthru
      _
    // Predicated region
    $region26: #{transformer_encoder_forward.19} parent=1 // pred_check
      _
    $region27: #{transformer_encoder_forward.19} parent=1 // pred_check_branch
      %146 = sbr.rel (0) target = $region29
    $region28: #{transformer_encoder_forward.19} parent=1 // pred_region
      %147 = dma.done [#allocation4], 256
    $region29: #{transformer_encoder_forward.19} parent=1 // pred_fallthru
      _
    %148 = vsyncpa [#allocation4], 1

</llo_original>
